<compile_context>
chip_gen: v7x
topology: tpu7x:2x2x1
jax: 0.10.0
libtpu: 0.0.40
codegen_flags: <defaults>
</compile_context>

<pallas_src>
import math
import jax
import jax.numpy as jnp
from jax.experimental import pallas as pl
from jax.experimental.pallas import tpu as pltpu

T_STEPS = 8      # forced by torch.zeros(8, 1, 10) inside forward()
INPUT_SIZE = 3   # forced by resized_tensor[:, :, :3] = x[:, p:p+1, :]
HIDDEN = 5       # forced: hidden_size * 2 == 10


def _mdrnn_kernel(x_ref,
                  p_wih_ref, p_whh_ref, p_b_ref,
                  t_wih_ref, t_whh_ref, t_b_ref,
                  d_wih_ref, d_whh_ref, d_b_ref,
                  wout_ref, bout_ref,
                  out_ref, probs_ref, pitch_ref, time_ref, dur_ref):
    P, T, _ = x_ref.shape
    H = p_whh_ref.shape[0] // 2
    H2, H4 = 2 * H, 4 * H

    def run_bilstm(x_flat, batch, h0, c0, wih_ref, whh_ref, b_ref):
        """One bidirectional LSTM layer over the full sequence.

        x_flat : (T*batch, in)  time-major flat rows (row = t*batch + b)
        h0, c0 : (2*batch, H)   rows [:batch] forward dir, [batch:] reverse dir
        wih_ref: (2, in, 4H)    per-direction input->gate weights (gate order i,f,g,o)
        whh_ref: (2H, 4H)       [Whh_fwd.T ; Whh_rev.T] block for the stacked state
        b_ref  : (2*batch, 4H)  per-row combined bias (b_ih + b_hh)
        Returns (out_flat (T*batch, 2H) = [fwd | rev], h_final, c_final).
        """
        whh = whh_ref[...]
        brows = b_ref[...]
        # Hoisted, non-recurrent input projections (one matmul per direction).
        xp_f = jnp.dot(x_flat, wih_ref[0], preferred_element_type=jnp.float32)
        xp_r = jnp.dot(x_flat, wih_ref[1], preferred_element_type=jnp.float32)
        # Direction row masks for the stacked (2*batch, H) state.
        row = jax.lax.broadcasted_iota(jnp.int32, (2 * batch, 1), 0)
        m_f = (row < batch).astype(jnp.float32)
        m_r = 1.0 - m_f

        h, c = h0, c0
        outs_f = [None] * T
        outs_r = [None] * T
        for s in range(T):                       # fully unrolled serial recurrence
            tr = T - 1 - s                       # reverse direction time index
            xg = jnp.concatenate([xp_f[s * batch:(s + 1) * batch, :],
                                  xp_r[tr * batch:(tr + 1) * batch, :]], axis=0)
            # Block-diagonal trick: rows become [h_f | 0] / [0 | h_r] -> one fused dot.
            h_aug = jnp.concatenate([h * m_f, h * m_r], axis=-1)        # (2B, 2H)
            g = xg + jnp.dot(h_aug, whh, preferred_element_type=jnp.float32) + brows
            sg = 0.5 * jnp.tanh(0.5 * g) + 0.5   # sigmoid via tanh (EUP slot)
            tg = jnp.tanh(g)
            i_g = sg[:, 0:H]
            f_g = sg[:, H:H2]
            g_g = tg[:, H2:3 * H]
            o_g = sg[:, 3 * H:H4]
            c = f_g * c + i_g * g_g
            h = o_g * jnp.tanh(c)
            outs_f[s] = h[:batch, :]
            outs_r[tr] = h[batch:, :]
        out_flat = jnp.concatenate(
            [jnp.concatenate([outs_f[t], outs_r[t]], axis=-1) for t in range(T)],
            axis=0)                              # (T*batch, 2H)
        return out_flat, h, c

    def pitch_body(p, carry):
        h_p, c_p, h_t, c_t, h_d, c_d = carry
        x_slice = x_ref[p]                                             # (T, 3) batch=1
        # --- pitch LSTM (batch 1) ---
        p_out, h_p, c_p = run_bilstm(x_slice, 1, h_p, c_p,
                                     p_wih_ref, p_whh_ref, p_b_ref)    # (T, 2H)
        # resized_tensor = zeros(T, 1, 2H); [:, :, :3] = x_slice
        resized = jnp.concatenate(
            [x_slice, jnp.zeros((T, H2 - x_slice.shape[1]), jnp.float32)], axis=-1)
        # torch.cat((pitch_out, resized), dim=1): flat rows ordered (t, batch)
        ci_rows = []
        for t in range(T):
            ci_rows.append(p_out[t:t + 1, :])
            ci_rows.append(resized[t:t + 1, :])
        concat_in = jnp.concatenate(ci_rows, axis=0)                   # (2T, 2H)
        # --- time LSTM (batch 2) ---
        t_out, h_t, c_t = run_bilstm(concat_in, 2, h_t, c_t,
                                     t_wih_ref, t_whh_ref, t_b_ref)    # (2T, 2H)
        # torch.cat((time_out, concatenated_input), dim=1)
        cc_rows = []
        for t in range(T):
            cc_rows.append(t_out[2 * t:2 * t + 2, :])
            cc_rows.append(concat_in[2 * t:2 * t + 2, :])
        concated = jnp.concatenate(cc_rows, axis=0)                    # (4T, 2H)
        # --- duration LSTM (batch 4) ---
        d_out, h_d, c_d = run_bilstm(concated, 4, h_d, c_d,
                                     d_wih_ref, d_whh_ref, d_b_ref)    # (4T, 2H)
        # The module returns the outputs of the LAST pitch iteration; last write wins.
        pitch_ref[...] = p_out
        time_ref[...] = t_out
        dur_ref[...] = d_out
        return h_p, c_p, h_t, c_t, h_d, c_d

    zeros = lambda b: jnp.zeros((2 * b, H), jnp.float32)   # init_hidden: all-zero states
    init = (zeros(1), zeros(1), zeros(2), zeros(2), zeros(4), zeros(4))
    jax.lax.fori_loop(0, P, pitch_body, init)

    # output_layer(cat([pitch_out[-1], time_out[-1], duration_out[-1]], dim=0))
    feat = jnp.concatenate([pitch_ref[T - 1:T, :],
                            time_ref[2 * T - 2:2 * T, :],
                            dur_ref[4 * T - 4:4 * T, :]], axis=0)      # (7, 2H)
    y = jnp.dot(feat, wout_ref[...], preferred_element_type=jnp.float32) + bout_ref[...]
    out_ref[...] = y
    # F.softmax(output.t(), dim=1) == softmax over axis 0 of `output`
    # (the transpose happens outside the kernel).
    m = jnp.max(y, axis=0, keepdims=True)
    e = jnp.exp(y - m)
    probs_ref[...] = e * pl.reciprocal(jnp.sum(e, axis=0, keepdims=True), approx=True)


def init_bilstm_params(key, input_size, hidden_size, batch_size):
    """PyTorch-style uniform(-1/sqrt(H), 1/sqrt(H)) init for one bidirectional
    LSTM layer, repacked into the fused-kernel layout."""
    bound = 1.0 / math.sqrt(hidden_size)
    key, kw1, kw2, kb1, kb2 = jax.random.split(key, 5)
    # PyTorch layout: (dir, 4H, in) / (dir, 4H, H) / (dir, 4H), gate order i,f,g,o.
    w_ih = jax.random.uniform(kw1, (2, 4 * hidden_size, input_size), jnp.float32, -bound, bound)
    w_hh = jax.random.uniform(kw2, (2, 4 * hidden_size, hidden_size), jnp.float32, -bound, bound)
    b_ih = jax.random.uniform(kb1, (2, 4 * hidden_size), jnp.float32, -bound, bound)
    b_hh = jax.random.uniform(kb2, (2, 4 * hidden_size), jnp.float32, -bound, bound)
    wih = jnp.transpose(w_ih, (0, 2, 1))                        # (2, in, 4H)
    whh = jnp.concatenate([w_hh[0].T, w_hh[1].T], axis=0)       # (2H, 4H) fwd/rev block
    b = b_ih + b_hh                                             # (2, 4H) combined bias
    brows = jnp.concatenate(
        [jnp.broadcast_to(b[0:1], (batch_size, 4 * hidden_size)),
         jnp.broadcast_to(b[1:2], (batch_size, 4 * hidden_size))], axis=0)  # (2B, 4H)
    return key, (wih, whh, brows)


def mdrnn_forward(x, pitch_prm, time_prm, dur_prm, out_w_t, out_b):
    seq_len, feature_dim, in_size = x.shape
    assert seq_len == T_STEPS and in_size == INPUT_SIZE
    H2 = 2 * HIDDEN
    out_sz = out_w_t.shape[1]
    vmem = pl.BlockSpec(memory_space=pltpu.MemorySpace.VMEM)
    x_k = jnp.transpose(x, (1, 0, 2))            # (P, T, 3): x_k[p] == x[:, p, :]

    output, probs, p_flat, t_flat, d_flat = pl.pallas_call(
        _mdrnn_kernel,
        out_shape=(
            jax.ShapeDtypeStruct((7, out_sz), jnp.float32),            # linear output
            jax.ShapeDtypeStruct((7, out_sz), jnp.float32),            # softmax (over axis 0)
            jax.ShapeDtypeStruct((T_STEPS, H2), jnp.float32),          # pitch_out (flat)
            jax.ShapeDtypeStruct((2 * T_STEPS, H2), jnp.float32),      # time_out  (flat)
            jax.ShapeDtypeStruct((4 * T_STEPS, H2), jnp.float32),      # dur_out   (flat)
        ),
        in_specs=[vmem] * 12,
        out_specs=(vmem,) * 5,
    )(x_k, *pitch_prm, *time_prm, *dur_prm, out_w_t, out_b)

    pitch_out = p_flat.reshape(T_STEPS, 1, H2)
    time_out = t_flat.reshape(T_STEPS, 2, H2)
    dur_out = d_flat.reshape(T_STEPS, 4, H2)

    length = x.shape[-2]
    output = output[:length]          # no-op whenever the torch code is valid (length >= 7)
    output_probs = probs[:length].T   # (O, 7) == F.softmax(output.t(), dim=1)

    # softmax_output_to_class: argmax over the first three softmax rows, then index
    # the transposed class labels (Python-list glue replaced by jnp.argmax).
    labels_t = x.reshape(-1, x.shape[-1]).T                    # (3, seq*feat)
    predicted = jnp.stack([labels_t[0, jnp.argmax(output_probs[0])],
                           labels_t[1, jnp.argmax(output_probs[1])],
                           labels_t[2, jnp.argmax(output_probs[2])]])

    return output, pitch_out, time_out, dur_out, x, predicted


if __name__ == "__main__":
    SEQ_LEN = T_STEPS      # 8, forced by torch.zeros(8, 1, 10) inside forward
    FEATURE_DIM = 8        # number of pitch steps; `length` in the torch code
    OUTPUT_SIZE = 3        # >= 3 so softmax_output_to_class is well defined
    RNN_LAYERS = 1         # params['rnn_layers'] used by the example config
    # TODO(synk): params['rnn_layers'] > 1 (stacked BiLSTM layers) is not implemented
    # in the fused kernel; the configuration exercised here uses a single layer.

    key = jax.random.PRNGKey(0)
    key, kx = jax.random.split(key)
    x = jax.random.normal(kx, (SEQ_LEN, FEATURE_DIM, INPUT_SIZE), jnp.float32)

    key, pitch_prm = init_bilstm_params(key, INPUT_SIZE, HIDDEN, 1)
    key, time_prm = init_bilstm_params(key, 2 * HIDDEN, HIDDEN, 2)
    key, dur_prm = init_bilstm_params(key, 2 * HIDDEN, HIDDEN, 4)
    key, kw, kb = jax.random.split(key, 3)
    bound = 1.0 / math.sqrt(2 * HIDDEN)
    out_w = jax.random.uniform(kw, (OUTPUT_SIZE, 2 * HIDDEN), jnp.float32, -bound, bound)
    out_b = jax.random.uniform(kb, (OUTPUT_SIZE,), jnp.float32, -bound, bound)

    # TODO(synk): the torch module's informational print() calls and the Python-list
    # .tolist()/.index() glue are not reproduced; the equivalent prediction is
    # computed with jnp.argmax in mdrnn_forward.
    fwd = jax.jit(mdrnn_forward)
    results = fwd(x, pitch_prm, time_prm, dur_prm, out_w.T, out_b.reshape(1, -1))
    jax.block_until_ready(results)
    print("KERNEL_OK")
</pallas_src>

<mosaic_0001>
module attributes {stable_mosaic.version = 11 : i64} {
  func.func @_mdrnn_kernel(%arg0: memref<8x8x3xf32, #tpu.memory_space<vmem>>, %arg1: memref<2x3x20xf32, #tpu.memory_space<vmem>>, %arg2: memref<10x20xf32, #tpu.memory_space<vmem>>, %arg3: memref<2x20xf32, #tpu.memory_space<vmem>>, %arg4: memref<2x10x20xf32, #tpu.memory_space<vmem>>, %arg5: memref<10x20xf32, #tpu.memory_space<vmem>>, %arg6: memref<4x20xf32, #tpu.memory_space<vmem>>, %arg7: memref<2x10x20xf32, #tpu.memory_space<vmem>>, %arg8: memref<10x20xf32, #tpu.memory_space<vmem>>, %arg9: memref<8x20xf32, #tpu.memory_space<vmem>>, %arg10: memref<10x3xf32, #tpu.memory_space<vmem>>, %arg11: memref<1x3xf32, #tpu.memory_space<vmem>>, %arg12: memref<7x3xf32, #tpu.memory_space<vmem>>, %arg13: memref<7x3xf32, #tpu.memory_space<vmem>>, %arg14: memref<8x10xf32, #tpu.memory_space<vmem>>, %arg15: memref<16x10xf32, #tpu.memory_space<vmem>>, %arg16: memref<32x10xf32, #tpu.memory_space<vmem>>) attributes {dimension_semantics = [], scalar_prefetch = 0 : i64, scratch_operands = 0 : i64, tpu.core_type = #tpu.core_type<tc>} {
    %cst = arith.constant 0.000000e+00 : f32
    %0 = vector.broadcast %cst : f32 to vector<2x5xf32>
    %cst_0 = arith.constant 0.000000e+00 : f32
    %1 = vector.broadcast %cst_0 : f32 to vector<2x5xf32>
    %cst_1 = arith.constant 0.000000e+00 : f32
    %2 = vector.broadcast %cst_1 : f32 to vector<4x5xf32>
    %cst_2 = arith.constant 0.000000e+00 : f32
    %3 = vector.broadcast %cst_2 : f32 to vector<4x5xf32>
    %cst_3 = arith.constant 0.000000e+00 : f32
    %4 = vector.broadcast %cst_3 : f32 to vector<8x5xf32>
    %cst_4 = arith.constant 0.000000e+00 : f32
    %5 = vector.broadcast %cst_4 : f32 to vector<8x5xf32>
    %c0_i32 = arith.constant 0 : i32
    %c8_i32 = arith.constant 8 : i32
    %6 = arith.addi %c0_i32, %c8_i32 : i32
    %c1_i32 = arith.constant 1 : i32
    %7:6 = scf.for %arg17 = %c0_i32 to %6 step %c1_i32 iter_args(%arg18 = %0, %arg19 = %1, %arg20 = %2, %arg21 = %3, %arg22 = %4, %arg23 = %5) -> (vector<2x5xf32>, vector<2x5xf32>, vector<4x5xf32>, vector<4x5xf32>, vector<8x5xf32>, vector<8x5xf32>)  : i32 {
      %29 = arith.index_cast %arg17 : i32 to index
      %c0_19 = arith.constant 0 : index
      %c0_20 = arith.constant 0 : index
      %30 = vector.load %arg0[%29, %c0_19, %c0_20] : memref<8x8x3xf32, #tpu.memory_space<vmem>>, vector<1x8x3xf32>
      %31 = vector.shape_cast %30 : vector<1x8x3xf32> to vector<8x3xf32>
      %c0_21 = arith.constant 0 : index
      %c0_22 = arith.constant 0 : index
      %32 = vector.load %arg2[%c0_21, %c0_22] : memref<10x20xf32, #tpu.memory_space<vmem>>, vector<10x20xf32>
      %c0_23 = arith.constant 0 : index
      %c0_24 = arith.constant 0 : index
      %33 = vector.load %arg3[%c0_23, %c0_24] : memref<2x20xf32, #tpu.memory_space<vmem>>, vector<2x20xf32>
      %c0_25 = arith.constant 0 : index
      %c0_26 = arith.constant 0 : index
      %c0_27 = arith.constant 0 : index
      %34 = vector.load %arg1[%c0_25, %c0_26, %c0_27] : memref<2x3x20xf32, #tpu.memory_space<vmem>>, vector<1x3x20xf32>
      %35 = vector.shape_cast %34 : vector<1x3x20xf32> to vector<3x20xf32>
      %cst_28 = arith.constant dense<0.000000e+00> : vector<8x20xf32>
      %36 = tpu.matmul %31, %35, %cst_28 {dimension_numbers = #tpu.dot_dimension_numbers<[1], [0], [0], [1], [0, 0, 1, 1], [], []>} : vector<8x3xf32>, vector<3x20xf32>, vector<8x20xf32> -> vector<8x20xf32>
      %c1 = arith.constant 1 : index
      %c0_29 = arith.constant 0 : index
      %c0_30 = arith.constant 0 : index
      %37 = vector.load %arg1[%c1, %c0_29, %c0_30] : memref<2x3x20xf32, #tpu.memory_space<vmem>>, vector<1x3x20xf32>
      %38 = vector.shape_cast %37 : vector<1x3x20xf32> to vector<3x20xf32>
      %cst_31 = arith.constant dense<0.000000e+00> : vector<8x20xf32>
      %39 = tpu.matmul %31, %38, %cst_31 {dimension_numbers = #tpu.dot_dimension_numbers<[1], [0], [0], [1], [0, 0, 1, 1], [], []>} : vector<8x3xf32>, vector<3x20xf32>, vector<8x20xf32> -> vector<8x20xf32>
      %40 = tpu.iota {dimensions = array<i32: 0>} : vector<2x1xi32>
      %c1_i32_32 = arith.constant 1 : i32
      %41 = vector.broadcast %c1_i32_32 : i32 to vector<2x1xi32>
      %42 = arith.cmpi slt, %40, %41 : vector<2x1xi32>
      %43 = arith.extui %42 : vector<2x1xi1> to vector<2x1xi32>
      %44 = arith.sitofp %43 : vector<2x1xi32> to vector<2x1xf32>
      %cst_33 = arith.constant 1.000000e+00 : f32
      %45 = vector.broadcast %cst_33 : f32 to vector<2x1xf32>
      %46 = arith.subf %45, %44 : vector<2x1xf32>
      %47 = vector.extract_strided_slice %36 {offsets = [0, 0], sizes = [1, 20], strides = [1, 1]} : vector<8x20xf32> to vector<1x20xf32>
      %48 = vector.extract_strided_slice %39 {offsets = [7, 0], sizes = [1, 20], strides = [1, 1]} : vector<8x20xf32> to vector<1x20xf32>
      %49 = tpu.concatenate %47, %48 in 0 : vector<1x20xf32>, vector<1x20xf32> -> vector<2x20xf32>
      %50 = vector.broadcast %44 : vector<2x1xf32> to vector<2x5xf32>
      %51 = arith.mulf %arg18, %50 : vector<2x5xf32>
      %52 = vector.broadcast %46 : vector<2x1xf32> to vector<2x5xf32>
      %53 = arith.mulf %arg18, %52 : vector<2x5xf32>
      %54 = tpu.concatenate %51, %53 in 1 : vector<2x5xf32>, vector<2x5xf32> -> vector<2x10xf32>
      %cst_34 = arith.constant dense<0.000000e+00> : vector<2x20xf32>
      %55 = tpu.matmul %54, %32, %cst_34 {dimension_numbers = #tpu.dot_dimension_numbers<[1], [0], [0], [1], [0, 0, 1, 1], [], []>} : vector<2x10xf32>, vector<10x20xf32>, vector<2x20xf32> -> vector<2x20xf32>
      %56 = arith.addf %49, %55 : vector<2x20xf32>
      %57 = arith.addf %56, %33 : vector<2x20xf32>
      %cst_35 = arith.constant 5.000000e-01 : f32
      %58 = vector.broadcast %cst_35 : f32 to vector<2x20xf32>
      %59 = arith.mulf %58, %57 : vector<2x20xf32>
      %60 = math.tanh %59 : vector<2x20xf32>
      %cst_36 = arith.constant 5.000000e-01 : f32
      %61 = vector.broadcast %cst_36 : f32 to vector<2x20xf32>
      %62 = arith.mulf %61, %60 : vector<2x20xf32>
      %cst_37 = arith.constant 5.000000e-01 : f32
      %63 = vector.broadcast %cst_37 : f32 to vector<2x20xf32>
      %64 = arith.addf %62, %63 : vector<2x20xf32>
      %65 = math.tanh %57 : vector<2x20xf32>
      %66 = vector.extract_strided_slice %64 {offsets = [0, 0], sizes = [2, 5], strides = [1, 1]} : vector<2x20xf32> to vector<2x5xf32>
      %67 = vector.extract_strided_slice %64 {offsets = [0, 5], sizes = [2, 5], strides = [1, 1]} : vector<2x20xf32> to vector<2x5xf32>
      %68 = vector.extract_strided_slice %65 {offsets = [0, 10], sizes = [2, 5], strides = [1, 1]} : vector<2x20xf32> to vector<2x5xf32>
      %69 = vector.extract_strided_slice %64 {offsets = [0, 15], sizes = [2, 5], strides = [1, 1]} : vector<2x20xf32> to vector<2x5xf32>
      %70 = arith.mulf %67, %arg19 : vector<2x5xf32>
      %71 = arith.mulf %66, %68 : vector<2x5xf32>
      %72 = arith.addf %70, %71 : vector<2x5xf32>
      %73 = math.tanh %72 : vector<2x5xf32>
      %74 = arith.mulf %69, %73 : vector<2x5xf32>
      %75 = vector.extract_strided_slice %74 {offsets = [0, 0], sizes = [1, 5], strides = [1, 1]} : vector<2x5xf32> to vector<1x5xf32>
      %76 = vector.extract_strided_slice %74 {offsets = [1, 0], sizes = [1, 5], strides = [1, 1]} : vector<2x5xf32> to vector<1x5xf32>
      %77 = vector.extract_strided_slice %36 {offsets = [1, 0], sizes = [1, 20], strides = [1, 1]} : vector<8x20xf32> to vector<1x20xf32>
      %78 = vector.extract_strided_slice %39 {offsets = [6, 0], sizes = [1, 20], strides = [1, 1]} : vector<8x20xf32> to vector<1x20xf32>
      %79 = tpu.concatenate %77, %78 in 0 : vector<1x20xf32>, vector<1x20xf32> -> vector<2x20xf32>
      %80 = vector.broadcast %44 : vector<2x1xf32> to vector<2x5xf32>
      %81 = arith.mulf %74, %80 : vector<2x5xf32>
      %82 = vector.broadcast %46 : vector<2x1xf32> to vector<2x5xf32>
      %83 = arith.mulf %74, %82 : vector<2x5xf32>
      %84 = tpu.concatenate %81, %83 in 1 : vector<2x5xf32>, vector<2x5xf32> -> vector<2x10xf32>
      %cst_38 = arith.constant dense<0.000000e+00> : vector<2x20xf32>
      %85 = tpu.matmul %84, %32, %cst_38 {dimension_numbers = #tpu.dot_dimension_numbers<[1], [0], [0], [1], [0, 0, 1, 1], [], []>} : vector<2x10xf32>, vector<10x20xf32>, vector<2x20xf32> -> vector<2x20xf32>
      %86 = arith.addf %79, %85 : vector<2x20xf32>
      %87 = arith.addf %86, %33 : vector<2x20xf32>
      %cst_39 = arith.constant 5.000000e-01 : f32
      %88 = vector.broadcast %cst_39 : f32 to vector<2x20xf32>
      %89 = arith.mulf %88, %87 : vector<2x20xf32>
      %90 = math.tanh %89 : vector<2x20xf32>
      %cst_40 = arith.constant 5.000000e-01 : f32
      %91 = vector.broadcast %cst_40 : f32 to vector<2x20xf32>
      %92 = arith.mulf %91, %90 : vector<2x20xf32>
      %cst_41 = arith.constant 5.000000e-01 : f32
      %93 = vector.broadcast %cst_41 : f32 to vector<2x20xf32>
      %94 = arith.addf %92, %93 : vector<2x20xf32>
      %95 = math.tanh %87 : vector<2x20xf32>
      %96 = vector.extract_strided_slice %94 {offsets = [0, 0], sizes = [2, 5], strides = [1, 1]} : vector<2x20xf32> to vector<2x5xf32>
      %97 = vector.extract_strided_slice %94 {offsets = [0, 5], sizes = [2, 5], strides = [1, 1]} : vector<2x20xf32> to vector<2x5xf32>
      %98 = vector.extract_strided_slice %95 {offsets = [0, 10], sizes = [2, 5], strides = [1, 1]} : vector<2x20xf32> to vector<2x5xf32>
      %99 = vector.extract_strided_slice %94 {offsets = [0, 15], sizes = [2, 5], strides = [1, 1]} : vector<2x20xf32> to vector<2x5xf32>
      %100 = arith.mulf %97, %72 : vector<2x5xf32>
      %101 = arith.mulf %96, %98 : vector<2x5xf32>
      %102 = arith.addf %100, %101 : vector<2x5xf32>
      %103 = math.tanh %102 : vector<2x5xf32>
      %104 = arith.mulf %99, %103 : vector<2x5xf32>
      %105 = vector.extract_strided_slice %104 {offsets = [0, 0], sizes = [1, 5], strides = [1, 1]} : vector<2x5xf32> to vector<1x5xf32>
      %106 = vector.extract_strided_slice %104 {offsets = [1, 0], sizes = [1, 5], strides = [1, 1]} : vector<2x5xf32> to vector<1x5xf32>
      %107 = vector.extract_strided_slice %36 {offsets = [2, 0], sizes = [1, 20], strides = [1, 1]} : vector<8x20xf32> to vector<1x20xf32>
      %108 = vector.extract_strided_slice %39 {offsets = [5, 0], sizes = [1, 20], strides = [1, 1]} : vector<8x20xf32> to vector<1x20xf32>
      %109 = tpu.concatenate %107, %108 in 0 : vector<1x20xf32>, vector<1x20xf32> -> vector<2x20xf32>
      %110 = vector.broadcast %44 : vector<2x1xf32> to vector<2x5xf32>
      %111 = arith.mulf %104, %110 : vector<2x5xf32>
      %112 = vector.broadcast %46 : vector<2x1xf32> to vector<2x5xf32>
      %113 = arith.mulf %104, %112 : vector<2x5xf32>
      %114 = tpu.concatenate %111, %113 in 1 : vector<2x5xf32>, vector<2x5xf32> -> vector<2x10xf32>
      %cst_42 = arith.constant dense<0.000000e+00> : vector<2x20xf32>
      %115 = tpu.matmul %114, %32, %cst_42 {dimension_numbers = #tpu.dot_dimension_numbers<[1], [0], [0], [1], [0, 0, 1, 1], [], []>} : vector<2x10xf32>, vector<10x20xf32>, vector<2x20xf32> -> vector<2x20xf32>
      %116 = arith.addf %109, %115 : vector<2x20xf32>
      %117 = arith.addf %116, %33 : vector<2x20xf32>
      %cst_43 = arith.constant 5.000000e-01 : f32
      %118 = vector.broadcast %cst_43 : f32 to vector<2x20xf32>
      %119 = arith.mulf %118, %117 : vector<2x20xf32>
      %120 = math.tanh %119 : vector<2x20xf32>
      %cst_44 = arith.constant 5.000000e-01 : f32
      %121 = vector.broadcast %cst_44 : f32 to vector<2x20xf32>
      %122 = arith.mulf %121, %120 : vector<2x20xf32>
      %cst_45 = arith.constant 5.000000e-01 : f32
      %123 = vector.broadcast %cst_45 : f32 to vector<2x20xf32>
      %124 = arith.addf %122, %123 : vector<2x20xf32>
      %125 = math.tanh %117 : vector<2x20xf32>
      %126 = vector.extract_strided_slice %124 {offsets = [0, 0], sizes = [2, 5], strides = [1, 1]} : vector<2x20xf32> to vector<2x5xf32>
      %127 = vector.extract_strided_slice %124 {offsets = [0, 5], sizes = [2, 5], strides = [1, 1]} : vector<2x20xf32> to vector<2x5xf32>
      %128 = vector.extract_strided_slice %125 {offsets = [0, 10], sizes = [2, 5], strides = [1, 1]} : vector<2x20xf32> to vector<2x5xf32>
      %129 = vector.extract_strided_slice %124 {offsets = [0, 15], sizes = [2, 5], strides = [1, 1]} : vector<2x20xf32> to vector<2x5xf32>
      %130 = arith.mulf %127, %102 : vector<2x5xf32>
      %131 = arith.mulf %126, %128 : vector<2x5xf32>
      %132 = arith.addf %130, %131 : vector<2x5xf32>
      %133 = math.tanh %132 : vector<2x5xf32>
      %134 = arith.mulf %129, %133 : vector<2x5xf32>
      %135 = vector.extract_strided_slice %134 {offsets = [0, 0], sizes = [1, 5], strides = [1, 1]} : vector<2x5xf32> to vector<1x5xf32>
      %136 = vector.extract_strided_slice %134 {offsets = [1, 0], sizes = [1, 5], strides = [1, 1]} : vector<2x5xf32> to vector<1x5xf32>
      %137 = vector.extract_strided_slice %36 {offsets = [3, 0], sizes = [1, 20], strides = [1, 1]} : vector<8x20xf32> to vector<1x20xf32>
      %138 = vector.extract_strided_slice %39 {offsets = [4, 0], sizes = [1, 20], strides = [1, 1]} : vector<8x20xf32> to vector<1x20xf32>
      %139 = tpu.concatenate %137, %138 in 0 : vector<1x20xf32>, vector<1x20xf32> -> vector<2x20xf32>
      %140 = vector.broadcast %44 : vector<2x1xf32> to vector<2x5xf32>
      %141 = arith.mulf %134, %140 : vector<2x5xf32>
      %142 = vector.broadcast %46 : vector<2x1xf32> to vector<2x5xf32>
      %143 = arith.mulf %134, %142 : vector<2x5xf32>
      %144 = tpu.concatenate %141, %143 in 1 : vector<2x5xf32>, vector<2x5xf32> -> vector<2x10xf32>
      %cst_46 = arith.constant dense<0.000000e+00> : vector<2x20xf32>
      %145 = tpu.matmul %144, %32, %cst_46 {dimension_numbers = #tpu.dot_dimension_numbers<[1], [0], [0], [1], [0, 0, 1, 1], [], []>} : vector<2x10xf32>, vector<10x20xf32>, vector<2x20xf32> -> vector<2x20xf32>
      %146 = arith.addf %139, %145 : vector<2x20xf32>
      %147 = arith.addf %146, %33 : vector<2x20xf32>
      %cst_47 = arith.constant 5.000000e-01 : f32
      %148 = vector.broadcast %cst_47 : f32 to vector<2x20xf32>
      %149 = arith.mulf %148, %147 : vector<2x20xf32>
      %150 = math.tanh %149 : vector<2x20xf32>
      %cst_48 = arith.constant 5.000000e-01 : f32
      %151 = vector.broadcast %cst_48 : f32 to vector<2x20xf32>
      %152 = arith.mulf %151, %150 : vector<2x20xf32>
      %cst_49 = arith.constant 5.000000e-01 : f32
      %153 = vector.broadcast %cst_49 : f32 to vector<2x20xf32>
      %154 = arith.addf %152, %153 : vector<2x20xf32>
      %155 = math.tanh %147 : vector<2x20xf32>
      %156 = vector.extract_strided_slice %154 {offsets = [0, 0], sizes = [2, 5], strides = [1, 1]} : vector<2x20xf32> to vector<2x5xf32>
      %157 = vector.extract_strided_slice %154 {offsets = [0, 5], sizes = [2, 5], strides = [1, 1]} : vector<2x20xf32> to vector<2x5xf32>
      %158 = vector.extract_strided_slice %155 {offsets = [0, 10], sizes = [2, 5], strides = [1, 1]} : vector<2x20xf32> to vector<2x5xf32>
      %159 = vector.extract_strided_slice %154 {offsets = [0, 15], sizes = [2, 5], strides = [1, 1]} : vector<2x20xf32> to vector<2x5xf32>
      %160 = arith.mulf %157, %132 : vector<2x5xf32>
      %161 = arith.mulf %156, %158 : vector<2x5xf32>
      %162 = arith.addf %160, %161 : vector<2x5xf32>
      %163 = math.tanh %162 : vector<2x5xf32>
      %164 = arith.mulf %159, %163 : vector<2x5xf32>
      %165 = vector.extract_strided_slice %164 {offsets = [0, 0], sizes = [1, 5], strides = [1, 1]} : vector<2x5xf32> to vector<1x5xf32>
      %166 = vector.extract_strided_slice %164 {offsets = [1, 0], sizes = [1, 5], strides = [1, 1]} : vector<2x5xf32> to vector<1x5xf32>
      %167 = vector.extract_strided_slice %36 {offsets = [4, 0], sizes = [1, 20], strides = [1, 1]} : vector<8x20xf32> to vector<1x20xf32>
      %168 = vector.extract_strided_slice %39 {offsets = [3, 0], sizes = [1, 20], strides = [1, 1]} : vector<8x20xf32> to vector<1x20xf32>
      %169 = tpu.concatenate %167, %168 in 0 : vector<1x20xf32>, vector<1x20xf32> -> vector<2x20xf32>
      %170 = vector.broadcast %44 : vector<2x1xf32> to vector<2x5xf32>
      %171 = arith.mulf %164, %170 : vector<2x5xf32>
      %172 = vector.broadcast %46 : vector<2x1xf32> to vector<2x5xf32>
      %173 = arith.mulf %164, %172 : vector<2x5xf32>
      %174 = tpu.concatenate %171, %173 in 1 : vector<2x5xf32>, vector<2x5xf32> -> vector<2x10xf32>
      %cst_50 = arith.constant dense<0.000000e+00> : vector<2x20xf32>
      %175 = tpu.matmul %174, %32, %cst_50 {dimension_numbers = #tpu.dot_dimension_numbers<[1], [0], [0], [1], [0, 0, 1, 1], [], []>} : vector<2x10xf32>, vector<10x20xf32>, vector<2x20xf32> -> vector<2x20xf32>
      %176 = arith.addf %169, %175 : vector<2x20xf32>
      %177 = arith.addf %176, %33 : vector<2x20xf32>
      %cst_51 = arith.constant 5.000000e-01 : f32
      %178 = vector.broadcast %cst_51 : f32 to vector<2x20xf32>
      %179 = arith.mulf %178, %177 : vector<2x20xf32>
      %180 = math.tanh %179 : vector<2x20xf32>
      %cst_52 = arith.constant 5.000000e-01 : f32
      %181 = vector.broadcast %cst_52 : f32 to vector<2x20xf32>
      %182 = arith.mulf %181, %180 : vector<2x20xf32>
      %cst_53 = arith.constant 5.000000e-01 : f32
      %183 = vector.broadcast %cst_53 : f32 to vector<2x20xf32>
      %184 = arith.addf %182, %183 : vector<2x20xf32>
      %185 = math.tanh %177 : vector<2x20xf32>
      %186 = vector.extract_strided_slice %184 {offsets = [0, 0], sizes = [2, 5], strides = [1, 1]} : vector<2x20xf32> to vector<2x5xf32>
      %187 = vector.extract_strided_slice %184 {offsets = [0, 5], sizes = [2, 5], strides = [1, 1]} : vector<2x20xf32> to vector<2x5xf32>
      %188 = vector.extract_strided_slice %185 {offsets = [0, 10], sizes = [2, 5], strides = [1, 1]} : vector<2x20xf32> to vector<2x5xf32>
      %189 = vector.extract_strided_slice %184 {offsets = [0, 15], sizes = [2, 5], strides = [1, 1]} : vector<2x20xf32> to vector<2x5xf32>
      %190 = arith.mulf %187, %162 : vector<2x5xf32>
      %191 = arith.mulf %186, %188 : vector<2x5xf32>
      %192 = arith.addf %190, %191 : vector<2x5xf32>
      %193 = math.tanh %192 : vector<2x5xf32>
      %194 = arith.mulf %189, %193 : vector<2x5xf32>
      %195 = vector.extract_strided_slice %194 {offsets = [0, 0], sizes = [1, 5], strides = [1, 1]} : vector<2x5xf32> to vector<1x5xf32>
      %196 = vector.extract_strided_slice %194 {offsets = [1, 0], sizes = [1, 5], strides = [1, 1]} : vector<2x5xf32> to vector<1x5xf32>
      %197 = vector.extract_strided_slice %36 {offsets = [5, 0], sizes = [1, 20], strides = [1, 1]} : vector<8x20xf32> to vector<1x20xf32>
      %198 = vector.extract_strided_slice %39 {offsets = [2, 0], sizes = [1, 20], strides = [1, 1]} : vector<8x20xf32> to vector<1x20xf32>
      %199 = tpu.concatenate %197, %198 in 0 : vector<1x20xf32>, vector<1x20xf32> -> vector<2x20xf32>
      %200 = vector.broadcast %44 : vector<2x1xf32> to vector<2x5xf32>
      %201 = arith.mulf %194, %200 : vector<2x5xf32>
      %202 = vector.broadcast %46 : vector<2x1xf32> to vector<2x5xf32>
      %203 = arith.mulf %194, %202 : vector<2x5xf32>
      %204 = tpu.concatenate %201, %203 in 1 : vector<2x5xf32>, vector<2x5xf32> -> vector<2x10xf32>
      %cst_54 = arith.constant dense<0.000000e+00> : vector<2x20xf32>
      %205 = tpu.matmul %204, %32, %cst_54 {dimension_numbers = #tpu.dot_dimension_numbers<[1], [0], [0], [1], [0, 0, 1, 1], [], []>} : vector<2x10xf32>, vector<10x20xf32>, vector<2x20xf32> -> vector<2x20xf32>
      %206 = arith.addf %199, %205 : vector<2x20xf32>
      %207 = arith.addf %206, %33 : vector<2x20xf32>
      %cst_55 = arith.constant 5.000000e-01 : f32
      %208 = vector.broadcast %cst_55 : f32 to vector<2x20xf32>
      %209 = arith.mulf %208, %207 : vector<2x20xf32>
      %210 = math.tanh %209 : vector<2x20xf32>
      %cst_56 = arith.constant 5.000000e-01 : f32
      %211 = vector.broadcast %cst_56 : f32 to vector<2x20xf32>
      %212 = arith.mulf %211, %210 : vector<2x20xf32>
      %cst_57 = arith.constant 5.000000e-01 : f32
      %213 = vector.broadcast %cst_57 : f32 to vector<2x20xf32>
      %214 = arith.addf %212, %213 : vector<2x20xf32>
      %215 = math.tanh %207 : vector<2x20xf32>
      %216 = vector.extract_strided_slice %214 {offsets = [0, 0], sizes = [2, 5], strides = [1, 1]} : vector<2x20xf32> to vector<2x5xf32>
      %217 = vector.extract_strided_slice %214 {offsets = [0, 5], sizes = [2, 5], strides = [1, 1]} : vector<2x20xf32> to vector<2x5xf32>
      %218 = vector.extract_strided_slice %215 {offsets = [0, 10], sizes = [2, 5], strides = [1, 1]} : vector<2x20xf32> to vector<2x5xf32>
      %219 = vector.extract_strided_slice %214 {offsets = [0, 15], sizes = [2, 5], strides = [1, 1]} : vector<2x20xf32> to vector<2x5xf32>
      %220 = arith.mulf %217, %192 : vector<2x5xf32>
      %221 = arith.mulf %216, %218 : vector<2x5xf32>
      %222 = arith.addf %220, %221 : vector<2x5xf32>
      %223 = math.tanh %222 : vector<2x5xf32>
      %224 = arith.mulf %219, %223 : vector<2x5xf32>
      %225 = vector.extract_strided_slice %224 {offsets = [0, 0], sizes = [1, 5], strides = [1, 1]} : vector<2x5xf32> to vector<1x5xf32>
      %226 = vector.extract_strided_slice %224 {offsets = [1, 0], sizes = [1, 5], strides = [1, 1]} : vector<2x5xf32> to vector<1x5xf32>
      %227 = vector.extract_strided_slice %36 {offsets = [6, 0], sizes = [1, 20], strides = [1, 1]} : vector<8x20xf32> to vector<1x20xf32>
      %228 = vector.extract_strided_slice %39 {offsets = [1, 0], sizes = [1, 20], strides = [1, 1]} : vector<8x20xf32> to vector<1x20xf32>
      %229 = tpu.concatenate %227, %228 in 0 : vector<1x20xf32>, vector<1x20xf32> -> vector<2x20xf32>
      %230 = vector.broadcast %44 : vector<2x1xf32> to vector<2x5xf32>
      %231 = arith.mulf %224, %230 : vector<2x5xf32>
      %232 = vector.broadcast %46 : vector<2x1xf32> to vector<2x5xf32>
      %233 = arith.mulf %224, %232 : vector<2x5xf32>
      %234 = tpu.concatenate %231, %233 in 1 : vector<2x5xf32>, vector<2x5xf32> -> vector<2x10xf32>
      %cst_58 = arith.constant dense<0.000000e+00> : vector<2x20xf32>
      %235 = tpu.matmul %234, %32, %cst_58 {dimension_numbers = #tpu.dot_dimension_numbers<[1], [0], [0], [1], [0, 0, 1, 1], [], []>} : vector<2x10xf32>, vector<10x20xf32>, vector<2x20xf32> -> vector<2x20xf32>
      %236 = arith.addf %229, %235 : vector<2x20xf32>
      %237 = arith.addf %236, %33 : vector<2x20xf32>
      %cst_59 = arith.constant 5.000000e-01 : f32
      %238 = vector.broadcast %cst_59 : f32 to vector<2x20xf32>
      %239 = arith.mulf %238, %237 : vector<2x20xf32>
      %240 = math.tanh %239 : vector<2x20xf32>
      %cst_60 = arith.constant 5.000000e-01 : f32
      %241 = vector.broadcast %cst_60 : f32 to vector<2x20xf32>
      %242 = arith.mulf %241, %240 : vector<2x20xf32>
      %cst_61 = arith.constant 5.000000e-01 : f32
      %243 = vector.broadcast %cst_61 : f32 to vector<2x20xf32>
      %244 = arith.addf %242, %243 : vector<2x20xf32>
      %245 = math.tanh %237 : vector<2x20xf32>
      %246 = vector.extract_strided_slice %244 {offsets = [0, 0], sizes = [2, 5], strides = [1, 1]} : vector<2x20xf32> to vector<2x5xf32>
      %247 = vector.extract_strided_slice %244 {offsets = [0, 5], sizes = [2, 5], strides = [1, 1]} : vector<2x20xf32> to vector<2x5xf32>
      %248 = vector.extract_strided_slice %245 {offsets = [0, 10], sizes = [2, 5], strides = [1, 1]} : vector<2x20xf32> to vector<2x5xf32>
      %249 = vector.extract_strided_slice %244 {offsets = [0, 15], sizes = [2, 5], strides = [1, 1]} : vector<2x20xf32> to vector<2x5xf32>
      %250 = arith.mulf %247, %222 : vector<2x5xf32>
      %251 = arith.mulf %246, %248 : vector<2x5xf32>
      %252 = arith.addf %250, %251 : vector<2x5xf32>
      %253 = math.tanh %252 : vector<2x5xf32>
      %254 = arith.mulf %249, %253 : vector<2x5xf32>
      %255 = vector.extract_strided_slice %254 {offsets = [0, 0], sizes = [1, 5], strides = [1, 1]} : vector<2x5xf32> to vector<1x5xf32>
      %256 = vector.extract_strided_slice %254 {offsets = [1, 0], sizes = [1, 5], strides = [1, 1]} : vector<2x5xf32> to vector<1x5xf32>
      %257 = vector.extract_strided_slice %36 {offsets = [7, 0], sizes = [1, 20], strides = [1, 1]} : vector<8x20xf32> to vector<1x20xf32>
      %258 = vector.extract_strided_slice %39 {offsets = [0, 0], sizes = [1, 20], strides = [1, 1]} : vector<8x20xf32> to vector<1x20xf32>
      %259 = tpu.concatenate %257, %258 in 0 : vector<1x20xf32>, vector<1x20xf32> -> vector<2x20xf32>
      %260 = vector.broadcast %44 : vector<2x1xf32> to vector<2x5xf32>
      %261 = arith.mulf %254, %260 : vector<2x5xf32>
      %262 = vector.broadcast %46 : vector<2x1xf32> to vector<2x5xf32>
      %263 = arith.mulf %254, %262 : vector<2x5xf32>
      %264 = tpu.concatenate %261, %263 in 1 : vector<2x5xf32>, vector<2x5xf32> -> vector<2x10xf32>
      %cst_62 = arith.constant dense<0.000000e+00> : vector<2x20xf32>
      %265 = tpu.matmul %264, %32, %cst_62 {dimension_numbers = #tpu.dot_dimension_numbers<[1], [0], [0], [1], [0, 0, 1, 1], [], []>} : vector<2x10xf32>, vector<10x20xf32>, vector<2x20xf32> -> vector<2x20xf32>
      %266 = arith.addf %259, %265 : vector<2x20xf32>
      %267 = arith.addf %266, %33 : vector<2x20xf32>
      %cst_63 = arith.constant 5.000000e-01 : f32
      %268 = vector.broadcast %cst_63 : f32 to vector<2x20xf32>
      %269 = arith.mulf %268, %267 : vector<2x20xf32>
      %270 = math.tanh %269 : vector<2x20xf32>
      %cst_64 = arith.constant 5.000000e-01 : f32
      %271 = vector.broadcast %cst_64 : f32 to vector<2x20xf32>
      %272 = arith.mulf %271, %270 : vector<2x20xf32>
      %cst_65 = arith.constant 5.000000e-01 : f32
      %273 = vector.broadcast %cst_65 : f32 to vector<2x20xf32>
      %274 = arith.addf %272, %273 : vector<2x20xf32>
      %275 = math.tanh %267 : vector<2x20xf32>
      %276 = vector.extract_strided_slice %274 {offsets = [0, 0], sizes = [2, 5], strides = [1, 1]} : vector<2x20xf32> to vector<2x5xf32>
      %277 = vector.extract_strided_slice %274 {offsets = [0, 5], sizes = [2, 5], strides = [1, 1]} : vector<2x20xf32> to vector<2x5xf32>
      %278 = vector.extract_strided_slice %275 {offsets = [0, 10], sizes = [2, 5], strides = [1, 1]} : vector<2x20xf32> to vector<2x5xf32>
      %279 = vector.extract_strided_slice %274 {offsets = [0, 15], sizes = [2, 5], strides = [1, 1]} : vector<2x20xf32> to vector<2x5xf32>
      %280 = arith.mulf %277, %252 : vector<2x5xf32>
      %281 = arith.mulf %276, %278 : vector<2x5xf32>
      %282 = arith.addf %280, %281 : vector<2x5xf32>
      %283 = math.tanh %282 : vector<2x5xf32>
      %284 = arith.mulf %279, %283 : vector<2x5xf32>
      %285 = vector.extract_strided_slice %284 {offsets = [0, 0], sizes = [1, 5], strides = [1, 1]} : vector<2x5xf32> to vector<1x5xf32>
      %286 = vector.extract_strided_slice %284 {offsets = [1, 0], sizes = [1, 5], strides = [1, 1]} : vector<2x5xf32> to vector<1x5xf32>
      %287 = tpu.concatenate %75, %286 in 1 : vector<1x5xf32>, vector<1x5xf32> -> vector<1x10xf32>
      %288 = tpu.concatenate %105, %256 in 1 : vector<1x5xf32>, vector<1x5xf32> -> vector<1x10xf32>
      %289 = tpu.concatenate %135, %226 in 1 : vector<1x5xf32>, vector<1x5xf32> -> vector<1x10xf32>
      %290 = tpu.concatenate %165, %196 in 1 : vector<1x5xf32>, vector<1x5xf32> -> vector<1x10xf32>
      %291 = tpu.concatenate %195, %166 in 1 : vector<1x5xf32>, vector<1x5xf32> -> vector<1x10xf32>
      %292 = tpu.concatenate %225, %136 in 1 : vector<1x5xf32>, vector<1x5xf32> -> vector<1x10xf32>
      %293 = tpu.concatenate %255, %106 in 1 : vector<1x5xf32>, vector<1x5xf32> -> vector<1x10xf32>
      %294 = tpu.concatenate %285, %76 in 1 : vector<1x5xf32>, vector<1x5xf32> -> vector<1x10xf32>
      %295 = tpu.concatenate %287, %288, %289, %290, %291, %292, %293, %294 in 0 : vector<1x10xf32>, vector<1x10xf32>, vector<1x10xf32>, vector<1x10xf32>, vector<1x10xf32>, vector<1x10xf32>, vector<1x10xf32>, vector<1x10xf32> -> vector<8x10xf32>
      %cst_66 = arith.constant 0.000000e+00 : f32
      %296 = vector.broadcast %cst_66 : f32 to vector<8x7xf32>
      %297 = tpu.concatenate %31, %296 in 1 : vector<8x3xf32>, vector<8x7xf32> -> vector<8x10xf32>
      %298 = vector.extract_strided_slice %295 {offsets = [0, 0], sizes = [1, 10], strides = [1, 1]} : vector<8x10xf32> to vector<1x10xf32>
      %299 = vector.extract_strided_slice %297 {offsets = [0, 0], sizes = [1, 10], strides = [1, 1]} : vector<8x10xf32> to vector<1x10xf32>
      %300 = vector.extract_strided_slice %295 {offsets = [1, 0], sizes = [1, 10], strides = [1, 1]} : vector<8x10xf32> to vector<1x10xf32>
      %301 = vector.extract_strided_slice %297 {offsets = [1, 0], sizes = [1, 10], strides = [1, 1]} : vector<8x10xf32> to vector<1x10xf32>
      %302 = vector.extract_strided_slice %295 {offsets = [2, 0], sizes = [1, 10], strides = [1, 1]} : vector<8x10xf32> to vector<1x10xf32>
      %303 = vector.extract_strided_slice %297 {offsets = [2, 0], sizes = [1, 10], strides = [1, 1]} : vector<8x10xf32> to vector<1x10xf32>
      %304 = vector.extract_strided_slice %295 {offsets = [3, 0], sizes = [1, 10], strides = [1, 1]} : vector<8x10xf32> to vector<1x10xf32>
      %305 = vector.extract_strided_slice %297 {offsets = [3, 0], sizes = [1, 10], strides = [1, 1]} : vector<8x10xf32> to vector<1x10xf32>
      %306 = vector.extract_strided_slice %295 {offsets = [4, 0], sizes = [1, 10], strides = [1, 1]} : vector<8x10xf32> to vector<1x10xf32>
      %307 = vector.extract_strided_slice %297 {offsets = [4, 0], sizes = [1, 10], strides = [1, 1]} : vector<8x10xf32> to vector<1x10xf32>
      %308 = vector.extract_strided_slice %295 {offsets = [5, 0], sizes = [1, 10], strides = [1, 1]} : vector<8x10xf32> to vector<1x10xf32>
      %309 = vector.extract_strided_slice %297 {offsets = [5, 0], sizes = [1, 10], strides = [1, 1]} : vector<8x10xf32> to vector<1x10xf32>
      %310 = vector.extract_strided_slice %295 {offsets = [6, 0], sizes = [1, 10], strides = [1, 1]} : vector<8x10xf32> to vector<1x10xf32>
      %311 = vector.extract_strided_slice %297 {offsets = [6, 0], sizes = [1, 10], strides = [1, 1]} : vector<8x10xf32> to vector<1x10xf32>
      %312 = vector.extract_strided_slice %295 {offsets = [7, 0], sizes = [1, 10], strides = [1, 1]} : vector<8x10xf32> to vector<1x10xf32>
      %313 = vector.extract_strided_slice %297 {offsets = [7, 0], sizes = [1, 10], strides = [1, 1]} : vector<8x10xf32> to vector<1x10xf32>
      %314 = tpu.concatenate %298, %299, %300, %301, %302, %303, %304, %305, %306, %307, %308, %309, %310, %311, %312, %313 in 0 : vector<1x10xf32>, vector<1x10xf32>, vector<1x10xf32>, vector<1x10xf32>, vector<1x10xf32>, vector<1x10xf32>, vector<1x10xf32>, vector<1x10xf32>, vector<1x10xf32>, vector<1x10xf32>, vector<1x10xf32>, vector<1x10xf32>, vector<1x10xf32>, vector<1x10xf32>, vector<1x10xf32>, vector<1x10xf32> -> vector<16x10xf32>
      %c0_67 = arith.constant 0 : index
      %c0_68 = arith.constant 0 : index
      %315 = vector.load %arg5[%c0_67, %c0_68] : memref<10x20xf32, #tpu.memory_space<vmem>>, vector<10x20xf32>
      %c0_69 = arith.constant 0 : index
      %c0_70 = arith.constant 0 : index
      %316 = vector.load %arg6[%c0_69, %c0_70] : memref<4x20xf32, #tpu.memory_space<vmem>>, vector<4x20xf32>
      %c0_71 = arith.constant 0 : index
      %c0_72 = arith.constant 0 : index
      %c0_73 = arith.constant 0 : index
      %317 = vector.load %arg4[%c0_71, %c0_72, %c0_73] : memref<2x10x20xf32, #tpu.memory_space<vmem>>, vector<1x10x20xf32>
      %318 = vector.shape_cast %317 : vector<1x10x20xf32> to vector<10x20xf32>
      %cst_74 = arith.constant dense<0.000000e+00> : vector<16x20xf32>
      %319 = tpu.matmul %314, %318, %cst_74 {dimension_numbers = #tpu.dot_dimension_numbers<[1], [0], [0], [1], [0, 0, 1, 1], [], []>} : vector<16x10xf32>, vector<10x20xf32>, vector<16x20xf32> -> vector<16x20xf32>
      %c1_75 = arith.constant 1 : index
      %c0_76 = arith.constant 0 : index
      %c0_77 = arith.constant 0 : index
      %320 = vector.load %arg4[%c1_75, %c0_76, %c0_77] : memref<2x10x20xf32, #tpu.memory_space<vmem>>, vector<1x10x20xf32>
      %321 = vector.shape_cast %320 : vector<1x10x20xf32> to vector<10x20xf32>
      %cst_78 = arith.constant dense<0.000000e+00> : vector<16x20xf32>
      %322 = tpu.matmul %314, %321, %cst_78 {dimension_numbers = #tpu.dot_dimension_numbers<[1], [0], [0], [1], [0, 0, 1, 1], [], []>} : vector<16x10xf32>, vector<10x20xf32>, vector<16x20xf32> -> vector<16x20xf32>
      %323 = tpu.iota {dimensions = array<i32: 0>} : vector<4x1xi32>
      %c2_i32 = arith.constant 2 : i32
      %324 = vector.broadcast %c2_i32 : i32 to vector<4x1xi32>
      %325 = arith.cmpi slt, %323, %324 : vector<4x1xi32>
      %326 = arith.extui %325 : vector<4x1xi1> to vector<4x1xi32>
      %327 = arith.sitofp %326 : vector<4x1xi32> to vector<4x1xf32>
      %cst_79 = arith.constant 1.000000e+00 : f32
      %328 = vector.broadcast %cst_79 : f32 to vector<4x1xf32>
      %329 = arith.subf %328, %327 : vector<4x1xf32>
      %330 = vector.extract_strided_slice %319 {offsets = [0, 0], sizes = [2, 20], strides = [1, 1]} : vector<16x20xf32> to vector<2x20xf32>
      %331 = vector.extract_strided_slice %322 {offsets = [14, 0], sizes = [2, 20], strides = [1, 1]} : vector<16x20xf32> to vector<2x20xf32>
      %332 = tpu.concatenate %330, %331 in 0 : vector<2x20xf32>, vector<2x20xf32> -> vector<4x20xf32>
      %333 = vector.broadcast %327 : vector<4x1xf32> to vector<4x5xf32>
      %334 = arith.mulf %arg20, %333 : vector<4x5xf32>
      %335 = vector.broadcast %329 : vector<4x1xf32> to vector<4x5xf32>
      %336 = arith.mulf %arg20, %335 : vector<4x5xf32>
      %337 = tpu.concatenate %334, %336 in 1 : vector<4x5xf32>, vector<4x5xf32> -> vector<4x10xf32>
      %cst_80 = arith.constant dense<0.000000e+00> : vector<4x20xf32>
      %338 = tpu.matmul %337, %315, %cst_80 {dimension_numbers = #tpu.dot_dimension_numbers<[1], [0], [0], [1], [0, 0, 1, 1], [], []>} : vector<4x10xf32>, vector<10x20xf32>, vector<4x20xf32> -> vector<4x20xf32>
      %339 = arith.addf %332, %338 : vector<4x20xf32>
      %340 = arith.addf %339, %316 : vector<4x20xf32>
      %cst_81 = arith.constant 5.000000e-01 : f32
      %341 = vector.broadcast %cst_81 : f32 to vector<4x20xf32>
      %342 = arith.mulf %341, %340 : vector<4x20xf32>
      %343 = math.tanh %342 : vector<4x20xf32>
      %cst_82 = arith.constant 5.000000e-01 : f32
      %344 = vector.broadcast %cst_82 : f32 to vector<4x20xf32>
      %345 = arith.mulf %344, %343 : vector<4x20xf32>
      %cst_83 = arith.constant 5.000000e-01 : f32
      %346 = vector.broadcast %cst_83 : f32 to vector<4x20xf32>
      %347 = arith.addf %345, %346 : vector<4x20xf32>
      %348 = math.tanh %340 : vector<4x20xf32>
      %349 = vector.extract_strided_slice %347 {offsets = [0, 0], sizes = [4, 5], strides = [1, 1]} : vector<4x20xf32> to vector<4x5xf32>
      %350 = vector.extract_strided_slice %347 {offsets = [0, 5], sizes = [4, 5], strides = [1, 1]} : vector<4x20xf32> to vector<4x5xf32>
      %351 = vector.extract_strided_slice %348 {offsets = [0, 10], sizes = [4, 5], strides = [1, 1]} : vector<4x20xf32> to vector<4x5xf32>
      %352 = vector.extract_strided_slice %347 {offsets = [0, 15], sizes = [4, 5], strides = [1, 1]} : vector<4x20xf32> to vector<4x5xf32>
      %353 = arith.mulf %350, %arg21 : vector<4x5xf32>
      %354 = arith.mulf %349, %351 : vector<4x5xf32>
      %355 = arith.addf %353, %354 : vector<4x5xf32>
      %356 = math.tanh %355 : vector<4x5xf32>
      %357 = arith.mulf %352, %356 : vector<4x5xf32>
      %358 = vector.extract_strided_slice %357 {offsets = [0, 0], sizes = [2, 5], strides = [1, 1]} : vector<4x5xf32> to vector<2x5xf32>
      %359 = vector.extract_strided_slice %357 {offsets = [2, 0], sizes = [2, 5], strides = [1, 1]} : vector<4x5xf32> to vector<2x5xf32>
      %360 = vector.extract_strided_slice %319 {offsets = [2, 0], sizes = [2, 20], strides = [1, 1]} : vector<16x20xf32> to vector<2x20xf32>
      %361 = vector.extract_strided_slice %322 {offsets = [12, 0], sizes = [2, 20], strides = [1, 1]} : vector<16x20xf32> to vector<2x20xf32>
      %362 = tpu.concatenate %360, %361 in 0 : vector<2x20xf32>, vector<2x20xf32> -> vector<4x20xf32>
      %363 = vector.broadcast %327 : vector<4x1xf32> to vector<4x5xf32>
      %364 = arith.mulf %357, %363 : vector<4x5xf32>
      %365 = vector.broadcast %329 : vector<4x1xf32> to vector<4x5xf32>
      %366 = arith.mulf %357, %365 : vector<4x5xf32>
      %367 = tpu.concatenate %364, %366 in 1 : vector<4x5xf32>, vector<4x5xf32> -> vector<4x10xf32>
      %cst_84 = arith.constant dense<0.000000e+00> : vector<4x20xf32>
      %368 = tpu.matmul %367, %315, %cst_84 {dimension_numbers = #tpu.dot_dimension_numbers<[1], [0], [0], [1], [0, 0, 1, 1], [], []>} : vector<4x10xf32>, vector<10x20xf32>, vector<4x20xf32> -> vector<4x20xf32>
      %369 = arith.addf %362, %368 : vector<4x20xf32>
      %370 = arith.addf %369, %316 : vector<4x20xf32>
      %cst_85 = arith.constant 5.000000e-01 : f32
      %371 = vector.broadcast %cst_85 : f32 to vector<4x20xf32>
      %372 = arith.mulf %371, %370 : vector<4x20xf32>
      %373 = math.tanh %372 : vector<4x20xf32>
      %cst_86 = arith.constant 5.000000e-01 : f32
      %374 = vector.broadcast %cst_86 : f32 to vector<4x20xf32>
      %375 = arith.mulf %374, %373 : vector<4x20xf32>
      %cst_87 = arith.constant 5.000000e-01 : f32
      %376 = vector.broadcast %cst_87 : f32 to vector<4x20xf32>
      %377 = arith.addf %375, %376 : vector<4x20xf32>
      %378 = math.tanh %370 : vector<4x20xf32>
      %379 = vector.extract_strided_slice %377 {offsets = [0, 0], sizes = [4, 5], strides = [1, 1]} : vector<4x20xf32> to vector<4x5xf32>
      %380 = vector.extract_strided_slice %377 {offsets = [0, 5], sizes = [4, 5], strides = [1, 1]} : vector<4x20xf32> to vector<4x5xf32>
      %381 = vector.extract_strided_slice %378 {offsets = [0, 10], sizes = [4, 5], strides = [1, 1]} : vector<4x20xf32> to vector<4x5xf32>
      %382 = vector.extract_strided_slice %377 {offsets = [0, 15], sizes = [4, 5], strides = [1, 1]} : vector<4x20xf32> to vector<4x5xf32>
      %383 = arith.mulf %380, %355 : vector<4x5xf32>
      %384 = arith.mulf %379, %381 : vector<4x5xf32>
      %385 = arith.addf %383, %384 : vector<4x5xf32>
      %386 = math.tanh %385 : vector<4x5xf32>
      %387 = arith.mulf %382, %386 : vector<4x5xf32>
      %388 = vector.extract_strided_slice %387 {offsets = [0, 0], sizes = [2, 5], strides = [1, 1]} : vector<4x5xf32> to vector<2x5xf32>
      %389 = vector.extract_strided_slice %387 {offsets = [2, 0], sizes = [2, 5], strides = [1, 1]} : vector<4x5xf32> to vector<2x5xf32>
      %390 = vector.extract_strided_slice %319 {offsets = [4, 0], sizes = [2, 20], strides = [1, 1]} : vector<16x20xf32> to vector<2x20xf32>
      %391 = vector.extract_strided_slice %322 {offsets = [10, 0], sizes = [2, 20], strides = [1, 1]} : vector<16x20xf32> to vector<2x20xf32>
      %392 = tpu.concatenate %390, %391 in 0 : vector<2x20xf32>, vector<2x20xf32> -> vector<4x20xf32>
      %393 = vector.broadcast %327 : vector<4x1xf32> to vector<4x5xf32>
      %394 = arith.mulf %387, %393 : vector<4x5xf32>
      %395 = vector.broadcast %329 : vector<4x1xf32> to vector<4x5xf32>
      %396 = arith.mulf %387, %395 : vector<4x5xf32>
      %397 = tpu.concatenate %394, %396 in 1 : vector<4x5xf32>, vector<4x5xf32> -> vector<4x10xf32>
      %cst_88 = arith.constant dense<0.000000e+00> : vector<4x20xf32>
      %398 = tpu.matmul %397, %315, %cst_88 {dimension_numbers = #tpu.dot_dimension_numbers<[1], [0], [0], [1], [0, 0, 1, 1], [], []>} : vector<4x10xf32>, vector<10x20xf32>, vector<4x20xf32> -> vector<4x20xf32>
      %399 = arith.addf %392, %398 : vector<4x20xf32>
      %400 = arith.addf %399, %316 : vector<4x20xf32>
      %cst_89 = arith.constant 5.000000e-01 : f32
      %401 = vector.broadcast %cst_89 : f32 to vector<4x20xf32>
      %402 = arith.mulf %401, %400 : vector<4x20xf32>
      %403 = math.tanh %402 : vector<4x20xf32>
      %cst_90 = arith.constant 5.000000e-01 : f32
      %404 = vector.broadcast %cst_90 : f32 to vector<4x20xf32>
      %405 = arith.mulf %404, %403 : vector<4x20xf32>
      %cst_91 = arith.constant 5.000000e-01 : f32
      %406 = vector.broadcast %cst_91 : f32 to vector<4x20xf32>
      %407 = arith.addf %405, %406 : vector<4x20xf32>
      %408 = math.tanh %400 : vector<4x20xf32>
      %409 = vector.extract_strided_slice %407 {offsets = [0, 0], sizes = [4, 5], strides = [1, 1]} : vector<4x20xf32> to vector<4x5xf32>
      %410 = vector.extract_strided_slice %407 {offsets = [0, 5], sizes = [4, 5], strides = [1, 1]} : vector<4x20xf32> to vector<4x5xf32>
      %411 = vector.extract_strided_slice %408 {offsets = [0, 10], sizes = [4, 5], strides = [1, 1]} : vector<4x20xf32> to vector<4x5xf32>
      %412 = vector.extract_strided_slice %407 {offsets = [0, 15], sizes = [4, 5], strides = [1, 1]} : vector<4x20xf32> to vector<4x5xf32>
      %413 = arith.mulf %410, %385 : vector<4x5xf32>
      %414 = arith.mulf %409, %411 : vector<4x5xf32>
      %415 = arith.addf %413, %414 : vector<4x5xf32>
      %416 = math.tanh %415 : vector<4x5xf32>
      %417 = arith.mulf %412, %416 : vector<4x5xf32>
      %418 = vector.extract_strided_slice %417 {offsets = [0, 0], sizes = [2, 5], strides = [1, 1]} : vector<4x5xf32> to vector<2x5xf32>
      %419 = vector.extract_strided_slice %417 {offsets = [2, 0], sizes = [2, 5], strides = [1, 1]} : vector<4x5xf32> to vector<2x5xf32>
      %420 = vector.extract_strided_slice %319 {offsets = [6, 0], sizes = [2, 20], strides = [1, 1]} : vector<16x20xf32> to vector<2x20xf32>
      %421 = vector.extract_strided_slice %322 {offsets = [8, 0], sizes = [2, 20], strides = [1, 1]} : vector<16x20xf32> to vector<2x20xf32>
      %422 = tpu.concatenate %420, %421 in 0 : vector<2x20xf32>, vector<2x20xf32> -> vector<4x20xf32>
      %423 = vector.broadcast %327 : vector<4x1xf32> to vector<4x5xf32>
      %424 = arith.mulf %417, %423 : vector<4x5xf32>
      %425 = vector.broadcast %329 : vector<4x1xf32> to vector<4x5xf32>
      %426 = arith.mulf %417, %425 : vector<4x5xf32>
      %427 = tpu.concatenate %424, %426 in 1 : vector<4x5xf32>, vector<4x5xf32> -> vector<4x10xf32>
      %cst_92 = arith.constant dense<0.000000e+00> : vector<4x20xf32>
      %428 = tpu.matmul %427, %315, %cst_92 {dimension_numbers = #tpu.dot_dimension_numbers<[1], [0], [0], [1], [0, 0, 1, 1], [], []>} : vector<4x10xf32>, vector<10x20xf32>, vector<4x20xf32> -> vector<4x20xf32>
      %429 = arith.addf %422, %428 : vector<4x20xf32>
      %430 = arith.addf %429, %316 : vector<4x20xf32>
      %cst_93 = arith.constant 5.000000e-01 : f32
      %431 = vector.broadcast %cst_93 : f32 to vector<4x20xf32>
      %432 = arith.mulf %431, %430 : vector<4x20xf32>
      %433 = math.tanh %432 : vector<4x20xf32>
      %cst_94 = arith.constant 5.000000e-01 : f32
      %434 = vector.broadcast %cst_94 : f32 to vector<4x20xf32>
      %435 = arith.mulf %434, %433 : vector<4x20xf32>
      %cst_95 = arith.constant 5.000000e-01 : f32
      %436 = vector.broadcast %cst_95 : f32 to vector<4x20xf32>
      %437 = arith.addf %435, %436 : vector<4x20xf32>
      %438 = math.tanh %430 : vector<4x20xf32>
      %439 = vector.extract_strided_slice %437 {offsets = [0, 0], sizes = [4, 5], strides = [1, 1]} : vector<4x20xf32> to vector<4x5xf32>
      %440 = vector.extract_strided_slice %437 {offsets = [0, 5], sizes = [4, 5], strides = [1, 1]} : vector<4x20xf32> to vector<4x5xf32>
      %441 = vector.extract_strided_slice %438 {offsets = [0, 10], sizes = [4, 5], strides = [1, 1]} : vector<4x20xf32> to vector<4x5xf32>
      %442 = vector.extract_strided_slice %437 {offsets = [0, 15], sizes = [4, 5], strides = [1, 1]} : vector<4x20xf32> to vector<4x5xf32>
      %443 = arith.mulf %440, %415 : vector<4x5xf32>
      %444 = arith.mulf %439, %441 : vector<4x5xf32>
      %445 = arith.addf %443, %444 : vector<4x5xf32>
      %446 = math.tanh %445 : vector<4x5xf32>
      %447 = arith.mulf %442, %446 : vector<4x5xf32>
      %448 = vector.extract_strided_slice %447 {offsets = [0, 0], sizes = [2, 5], strides = [1, 1]} : vector<4x5xf32> to vector<2x5xf32>
      %449 = vector.extract_strided_slice %447 {offsets = [2, 0], sizes = [2, 5], strides = [1, 1]} : vector<4x5xf32> to vector<2x5xf32>
      %450 = vector.extract_strided_slice %319 {offsets = [8, 0], sizes = [2, 20], strides = [1, 1]} : vector<16x20xf32> to vector<2x20xf32>
      %451 = vector.extract_strided_slice %322 {offsets = [6, 0], sizes = [2, 20], strides = [1, 1]} : vector<16x20xf32> to vector<2x20xf32>
      %452 = tpu.concatenate %450, %451 in 0 : vector<2x20xf32>, vector<2x20xf32> -> vector<4x20xf32>
      %453 = vector.broadcast %327 : vector<4x1xf32> to vector<4x5xf32>
      %454 = arith.mulf %447, %453 : vector<4x5xf32>
      %455 = vector.broadcast %329 : vector<4x1xf32> to vector<4x5xf32>
      %456 = arith.mulf %447, %455 : vector<4x5xf32>
      %457 = tpu.concatenate %454, %456 in 1 : vector<4x5xf32>, vector<4x5xf32> -> vector<4x10xf32>
      %cst_96 = arith.constant dense<0.000000e+00> : vector<4x20xf32>
      %458 = tpu.matmul %457, %315, %cst_96 {dimension_numbers = #tpu.dot_dimension_numbers<[1], [0], [0], [1], [0, 0, 1, 1], [], []>} : vector<4x10xf32>, vector<10x20xf32>, vector<4x20xf32> -> vector<4x20xf32>
      %459 = arith.addf %452, %458 : vector<4x20xf32>
      %460 = arith.addf %459, %316 : vector<4x20xf32>
      %cst_97 = arith.constant 5.000000e-01 : f32
      %461 = vector.broadcast %cst_97 : f32 to vector<4x20xf32>
      %462 = arith.mulf %461, %460 : vector<4x20xf32>
      %463 = math.tanh %462 : vector<4x20xf32>
      %cst_98 = arith.constant 5.000000e-01 : f32
      %464 = vector.broadcast %cst_98 : f32 to vector<4x20xf32>
      %465 = arith.mulf %464, %463 : vector<4x20xf32>
      %cst_99 = arith.constant 5.000000e-01 : f32
      %466 = vector.broadcast %cst_99 : f32 to vector<4x20xf32>
      %467 = arith.addf %465, %466 : vector<4x20xf32>
      %468 = math.tanh %460 : vector<4x20xf32>
      %469 = vector.extract_strided_slice %467 {offsets = [0, 0], sizes = [4, 5], strides = [1, 1]} : vector<4x20xf32> to vector<4x5xf32>
      %470 = vector.extract_strided_slice %467 {offsets = [0, 5], sizes = [4, 5], strides = [1, 1]} : vector<4x20xf32> to vector<4x5xf32>
      %471 = vector.extract_strided_slice %468 {offsets = [0, 10], sizes = [4, 5], strides = [1, 1]} : vector<4x20xf32> to vector<4x5xf32>
      %472 = vector.extract_strided_slice %467 {offsets = [0, 15], sizes = [4, 5], strides = [1, 1]} : vector<4x20xf32> to vector<4x5xf32>
      %473 = arith.mulf %470, %445 : vector<4x5xf32>
      %474 = arith.mulf %469, %471 : vector<4x5xf32>
      %475 = arith.addf %473, %474 : vector<4x5xf32>
      %476 = math.tanh %475 : vector<4x5xf32>
      %477 = arith.mulf %472, %476 : vector<4x5xf32>
      %478 = vector.extract_strided_slice %477 {offsets = [0, 0], sizes = [2, 5], strides = [1, 1]} : vector<4x5xf32> to vector<2x5xf32>
      %479 = vector.extract_strided_slice %477 {offsets = [2, 0], sizes = [2, 5], strides = [1, 1]} : vector<4x5xf32> to vector<2x5xf32>
      %480 = vector.extract_strided_slice %319 {offsets = [10, 0], sizes = [2, 20], strides = [1, 1]} : vector<16x20xf32> to vector<2x20xf32>
      %481 = vector.extract_strided_slice %322 {offsets = [4, 0], sizes = [2, 20], strides = [1, 1]} : vector<16x20xf32> to vector<2x20xf32>
      %482 = tpu.concatenate %480, %481 in 0 : vector<2x20xf32>, vector<2x20xf32> -> vector<4x20xf32>
      %483 = vector.broadcast %327 : vector<4x1xf32> to vector<4x5xf32>
      %484 = arith.mulf %477, %483 : vector<4x5xf32>
      %485 = vector.broadcast %329 : vector<4x1xf32> to vector<4x5xf32>
      %486 = arith.mulf %477, %485 : vector<4x5xf32>
      %487 = tpu.concatenate %484, %486 in 1 : vector<4x5xf32>, vector<4x5xf32> -> vector<4x10xf32>
      %cst_100 = arith.constant dense<0.000000e+00> : vector<4x20xf32>
      %488 = tpu.matmul %487, %315, %cst_100 {dimension_numbers = #tpu.dot_dimension_numbers<[1], [0], [0], [1], [0, 0, 1, 1], [], []>} : vector<4x10xf32>, vector<10x20xf32>, vector<4x20xf32> -> vector<4x20xf32>
      %489 = arith.addf %482, %488 : vector<4x20xf32>
      %490 = arith.addf %489, %316 : vector<4x20xf32>
      %cst_101 = arith.constant 5.000000e-01 : f32
      %491 = vector.broadcast %cst_101 : f32 to vector<4x20xf32>
      %492 = arith.mulf %491, %490 : vector<4x20xf32>
      %493 = math.tanh %492 : vector<4x20xf32>
      %cst_102 = arith.constant 5.000000e-01 : f32
      %494 = vector.broadcast %cst_102 : f32 to vector<4x20xf32>
      %495 = arith.mulf %494, %493 : vector<4x20xf32>
      %cst_103 = arith.constant 5.000000e-01 : f32
      %496 = vector.broadcast %cst_103 : f32 to vector<4x20xf32>
      %497 = arith.addf %495, %496 : vector<4x20xf32>
      %498 = math.tanh %490 : vector<4x20xf32>
      %499 = vector.extract_strided_slice %497 {offsets = [0, 0], sizes = [4, 5], strides = [1, 1]} : vector<4x20xf32> to vector<4x5xf32>
      %500 = vector.extract_strided_slice %497 {offsets = [0, 5], sizes = [4, 5], strides = [1, 1]} : vector<4x20xf32> to vector<4x5xf32>
      %501 = vector.extract_strided_slice %498 {offsets = [0, 10], sizes = [4, 5], strides = [1, 1]} : vector<4x20xf32> to vector<4x5xf32>
      %502 = vector.extract_strided_slice %497 {offsets = [0, 15], sizes = [4, 5], strides = [1, 1]} : vector<4x20xf32> to vector<4x5xf32>
      %503 = arith.mulf %500, %475 : vector<4x5xf32>
      %504 = arith.mulf %499, %501 : vector<4x5xf32>
      %505 = arith.addf %503, %504 : vector<4x5xf32>
      %506 = math.tanh %505 : vector<4x5xf32>
      %507 = arith.mulf %502, %506 : vector<4x5xf32>
      %508 = vector.extract_strided_slice %507 {offsets = [0, 0], sizes = [2, 5], strides = [1, 1]} : vector<4x5xf32> to vector<2x5xf32>
      %509 = vector.extract_strided_slice %507 {offsets = [2, 0], sizes = [2, 5], strides = [1, 1]} : vector<4x5xf32> to vector<2x5xf32>
      %510 = vector.extract_strided_slice %319 {offsets = [12, 0], sizes = [2, 20], strides = [1, 1]} : vector<16x20xf32> to vector<2x20xf32>
      %511 = vector.extract_strided_slice %322 {offsets = [2, 0], sizes = [2, 20], strides = [1, 1]} : vector<16x20xf32> to vector<2x20xf32>
      %512 = tpu.concatenate %510, %511 in 0 : vector<2x20xf32>, vector<2x20xf32> -> vector<4x20xf32>
      %513 = vector.broadcast %327 : vector<4x1xf32> to vector<4x5xf32>
      %514 = arith.mulf %507, %513 : vector<4x5xf32>
      %515 = vector.broadcast %329 : vector<4x1xf32> to vector<4x5xf32>
      %516 = arith.mulf %507, %515 : vector<4x5xf32>
      %517 = tpu.concatenate %514, %516 in 1 : vector<4x5xf32>, vector<4x5xf32> -> vector<4x10xf32>
      %cst_104 = arith.constant dense<0.000000e+00> : vector<4x20xf32>
      %518 = tpu.matmul %517, %315, %cst_104 {dimension_numbers = #tpu.dot_dimension_numbers<[1], [0], [0], [1], [0, 0, 1, 1], [], []>} : vector<4x10xf32>, vector<10x20xf32>, vector<4x20xf32> -> vector<4x20xf32>
      %519 = arith.addf %512, %518 : vector<4x20xf32>
      %520 = arith.addf %519, %316 : vector<4x20xf32>
      %cst_105 = arith.constant 5.000000e-01 : f32
      %521 = vector.broadcast %cst_105 : f32 to vector<4x20xf32>
      %522 = arith.mulf %521, %520 : vector<4x20xf32>
      %523 = math.tanh %522 : vector<4x20xf32>
      %cst_106 = arith.constant 5.000000e-01 : f32
      %524 = vector.broadcast %cst_106 : f32 to vector<4x20xf32>
      %525 = arith.mulf %524, %523 : vector<4x20xf32>
      %cst_107 = arith.constant 5.000000e-01 : f32
      %526 = vector.broadcast %cst_107 : f32 to vector<4x20xf32>
      %527 = arith.addf %525, %526 : vector<4x20xf32>
      %528 = math.tanh %520 : vector<4x20xf32>
      %529 = vector.extract_strided_slice %527 {offsets = [0, 0], sizes = [4, 5], strides = [1, 1]} : vector<4x20xf32> to vector<4x5xf32>
      %530 = vector.extract_strided_slice %527 {offsets = [0, 5], sizes = [4, 5], strides = [1, 1]} : vector<4x20xf32> to vector<4x5xf32>
      %531 = vector.extract_strided_slice %528 {offsets = [0, 10], sizes = [4, 5], strides = [1, 1]} : vector<4x20xf32> to vector<4x5xf32>
      %532 = vector.extract_strided_slice %527 {offsets = [0, 15], sizes = [4, 5], strides = [1, 1]} : vector<4x20xf32> to vector<4x5xf32>
      %533 = arith.mulf %530, %505 : vector<4x5xf32>
      %534 = arith.mulf %529, %531 : vector<4x5xf32>
      %535 = arith.addf %533, %534 : vector<4x5xf32>
      %536 = math.tanh %535 : vector<4x5xf32>
      %537 = arith.mulf %532, %536 : vector<4x5xf32>
      %538 = vector.extract_strided_slice %537 {offsets = [0, 0], sizes = [2, 5], strides = [1, 1]} : vector<4x5xf32> to vector<2x5xf32>
      %539 = vector.extract_strided_slice %537 {offsets = [2, 0], sizes = [2, 5], strides = [1, 1]} : vector<4x5xf32> to vector<2x5xf32>
      %540 = vector.extract_strided_slice %319 {offsets = [14, 0], sizes = [2, 20], strides = [1, 1]} : vector<16x20xf32> to vector<2x20xf32>
      %541 = vector.extract_strided_slice %322 {offsets = [0, 0], sizes = [2, 20], strides = [1, 1]} : vector<16x20xf32> to vector<2x20xf32>
      %542 = tpu.concatenate %540, %541 in 0 : vector<2x20xf32>, vector<2x20xf32> -> vector<4x20xf32>
      %543 = vector.broadcast %327 : vector<4x1xf32> to vector<4x5xf32>
      %544 = arith.mulf %537, %543 : vector<4x5xf32>
      %545 = vector.broadcast %329 : vector<4x1xf32> to vector<4x5xf32>
      %546 = arith.mulf %537, %545 : vector<4x5xf32>
      %547 = tpu.concatenate %544, %546 in 1 : vector<4x5xf32>, vector<4x5xf32> -> vector<4x10xf32>
      %cst_108 = arith.constant dense<0.000000e+00> : vector<4x20xf32>
      %548 = tpu.matmul %547, %315, %cst_108 {dimension_numbers = #tpu.dot_dimension_numbers<[1], [0], [0], [1], [0, 0, 1, 1], [], []>} : vector<4x10xf32>, vector<10x20xf32>, vector<4x20xf32> -> vector<4x20xf32>
      %549 = arith.addf %542, %548 : vector<4x20xf32>
      %550 = arith.addf %549, %316 : vector<4x20xf32>
      %cst_109 = arith.constant 5.000000e-01 : f32
      %551 = vector.broadcast %cst_109 : f32 to vector<4x20xf32>
      %552 = arith.mulf %551, %550 : vector<4x20xf32>
      %553 = math.tanh %552 : vector<4x20xf32>
      %cst_110 = arith.constant 5.000000e-01 : f32
      %554 = vector.broadcast %cst_110 : f32 to vector<4x20xf32>
      %555 = arith.mulf %554, %553 : vector<4x20xf32>
      %cst_111 = arith.constant 5.000000e-01 : f32
      %556 = vector.broadcast %cst_111 : f32 to vector<4x20xf32>
      %557 = arith.addf %555, %556 : vector<4x20xf32>
      %558 = math.tanh %550 : vector<4x20xf32>
      %559 = vector.extract_strided_slice %557 {offsets = [0, 0], sizes = [4, 5], strides = [1, 1]} : vector<4x20xf32> to vector<4x5xf32>
      %560 = vector.extract_strided_slice %557 {offsets = [0, 5], sizes = [4, 5], strides = [1, 1]} : vector<4x20xf32> to vector<4x5xf32>
      %561 = vector.extract_strided_slice %558 {offsets = [0, 10], sizes = [4, 5], strides = [1, 1]} : vector<4x20xf32> to vector<4x5xf32>
      %562 = vector.extract_strided_slice %557 {offsets = [0, 15], sizes = [4, 5], strides = [1, 1]} : vector<4x20xf32> to vector<4x5xf32>
      %563 = arith.mulf %560, %535 : vector<4x5xf32>
      %564 = arith.mulf %559, %561 : vector<4x5xf32>
      %565 = arith.addf %563, %564 : vector<4x5xf32>
      %566 = math.tanh %565 : vector<4x5xf32>
      %567 = arith.mulf %562, %566 : vector<4x5xf32>
      %568 = vector.extract_strided_slice %567 {offsets = [0, 0], sizes = [2, 5], strides = [1, 1]} : vector<4x5xf32> to vector<2x5xf32>
      %569 = vector.extract_strided_slice %567 {offsets = [2, 0], sizes = [2, 5], strides = [1, 1]} : vector<4x5xf32> to vector<2x5xf32>
      %570 = tpu.concatenate %358, %569 in 1 : vector<2x5xf32>, vector<2x5xf32> -> vector<2x10xf32>
      %571 = tpu.concatenate %388, %539 in 1 : vector<2x5xf32>, vector<2x5xf32> -> vector<2x10xf32>
      %572 = tpu.concatenate %418, %509 in 1 : vector<2x5xf32>, vector<2x5xf32> -> vector<2x10xf32>
      %573 = tpu.concatenate %448, %479 in 1 : vector<2x5xf32>, vector<2x5xf32> -> vector<2x10xf32>
      %574 = tpu.concatenate %478, %449 in 1 : vector<2x5xf32>, vector<2x5xf32> -> vector<2x10xf32>
      %575 = tpu.concatenate %508, %419 in 1 : vector<2x5xf32>, vector<2x5xf32> -> vector<2x10xf32>
      %576 = tpu.concatenate %538, %389 in 1 : vector<2x5xf32>, vector<2x5xf32> -> vector<2x10xf32>
      %577 = tpu.concatenate %568, %359 in 1 : vector<2x5xf32>, vector<2x5xf32> -> vector<2x10xf32>
      %578 = tpu.concatenate %570, %571, %572, %573, %574, %575, %576, %577 in 0 : vector<2x10xf32>, vector<2x10xf32>, vector<2x10xf32>, vector<2x10xf32>, vector<2x10xf32>, vector<2x10xf32>, vector<2x10xf32>, vector<2x10xf32> -> vector<16x10xf32>
      %579 = vector.extract_strided_slice %578 {offsets = [0, 0], sizes = [2, 10], strides = [1, 1]} : vector<16x10xf32> to vector<2x10xf32>
      %580 = vector.extract_strided_slice %314 {offsets = [0, 0], sizes = [2, 10], strides = [1, 1]} : vector<16x10xf32> to vector<2x10xf32>
      %581 = vector.extract_strided_slice %578 {offsets = [2, 0], sizes = [2, 10], strides = [1, 1]} : vector<16x10xf32> to vector<2x10xf32>
      %582 = vector.extract_strided_slice %314 {offsets = [2, 0], sizes = [2, 10], strides = [1, 1]} : vector<16x10xf32> to vector<2x10xf32>
      %583 = vector.extract_strided_slice %578 {offsets = [4, 0], sizes = [2, 10], strides = [1, 1]} : vector<16x10xf32> to vector<2x10xf32>
      %584 = vector.extract_strided_slice %314 {offsets = [4, 0], sizes = [2, 10], strides = [1, 1]} : vector<16x10xf32> to vector<2x10xf32>
      %585 = vector.extract_strided_slice %578 {offsets = [6, 0], sizes = [2, 10], strides = [1, 1]} : vector<16x10xf32> to vector<2x10xf32>
      %586 = vector.extract_strided_slice %314 {offsets = [6, 0], sizes = [2, 10], strides = [1, 1]} : vector<16x10xf32> to vector<2x10xf32>
      %587 = vector.extract_strided_slice %578 {offsets = [8, 0], sizes = [2, 10], strides = [1, 1]} : vector<16x10xf32> to vector<2x10xf32>
      %588 = vector.extract_strided_slice %314 {offsets = [8, 0], sizes = [2, 10], strides = [1, 1]} : vector<16x10xf32> to vector<2x10xf32>
      %589 = vector.extract_strided_slice %578 {offsets = [10, 0], sizes = [2, 10], strides = [1, 1]} : vector<16x10xf32> to vector<2x10xf32>
      %590 = vector.extract_strided_slice %314 {offsets = [10, 0], sizes = [2, 10], strides = [1, 1]} : vector<16x10xf32> to vector<2x10xf32>
      %591 = vector.extract_strided_slice %578 {offsets = [12, 0], sizes = [2, 10], strides = [1, 1]} : vector<16x10xf32> to vector<2x10xf32>
      %592 = vector.extract_strided_slice %314 {offsets = [12, 0], sizes = [2, 10], strides = [1, 1]} : vector<16x10xf32> to vector<2x10xf32>
      %593 = vector.extract_strided_slice %578 {offsets = [14, 0], sizes = [2, 10], strides = [1, 1]} : vector<16x10xf32> to vector<2x10xf32>
      %594 = vector.extract_strided_slice %314 {offsets = [14, 0], sizes = [2, 10], strides = [1, 1]} : vector<16x10xf32> to vector<2x10xf32>
      %595 = tpu.concatenate %579, %580, %581, %582, %583, %584, %585, %586, %587, %588, %589, %590, %591, %592, %593, %594 in 0 : vector<2x10xf32>, vector<2x10xf32>, vector<2x10xf32>, vector<2x10xf32>, vector<2x10xf32>, vector<2x10xf32>, vector<2x10xf32>, vector<2x10xf32>, vector<2x10xf32>, vector<2x10xf32>, vector<2x10xf32>, vector<2x10xf32>, vector<2x10xf32>, vector<2x10xf32>, vector<2x10xf32>, vector<2x10xf32> -> vector<32x10xf32>
      %c0_112 = arith.constant 0 : index
      %c0_113 = arith.constant 0 : index
      %596 = vector.load %arg8[%c0_112, %c0_113] : memref<10x20xf32, #tpu.memory_space<vmem>>, vector<10x20xf32>
      %c0_114 = arith.constant 0 : index
      %c0_115 = arith.constant 0 : index
      %597 = vector.load %arg9[%c0_114, %c0_115] : memref<8x20xf32, #tpu.memory_space<vmem>>, vector<8x20xf32>
      %c0_116 = arith.constant 0 : index
      %c0_117 = arith.constant 0 : index
      %c0_118 = arith.constant 0 : index
      %598 = vector.load %arg7[%c0_116, %c0_117, %c0_118] : memref<2x10x20xf32, #tpu.memory_space<vmem>>, vector<1x10x20xf32>
      %599 = vector.shape_cast %598 : vector<1x10x20xf32> to vector<10x20xf32>
      %cst_119 = arith.constant dense<0.000000e+00> : vector<32x20xf32>
      %600 = tpu.matmul %595, %599, %cst_119 {dimension_numbers = #tpu.dot_dimension_numbers<[1], [0], [0], [1], [0, 0, 1, 1], [], []>} : vector<32x10xf32>, vector<10x20xf32>, vector<32x20xf32> -> vector<32x20xf32>
      %c1_120 = arith.constant 1 : index
      %c0_121 = arith.constant 0 : index
      %c0_122 = arith.constant 0 : index
      %601 = vector.load %arg7[%c1_120, %c0_121, %c0_122] : memref<2x10x20xf32, #tpu.memory_space<vmem>>, vector<1x10x20xf32>
      %602 = vector.shape_cast %601 : vector<1x10x20xf32> to vector<10x20xf32>
      %cst_123 = arith.constant dense<0.000000e+00> : vector<32x20xf32>
      %603 = tpu.matmul %595, %602, %cst_123 {dimension_numbers = #tpu.dot_dimension_numbers<[1], [0], [0], [1], [0, 0, 1, 1], [], []>} : vector<32x10xf32>, vector<10x20xf32>, vector<32x20xf32> -> vector<32x20xf32>
      %604 = tpu.iota {dimensions = array<i32: 0>} : vector<8x1xi32>
      %c4_i32 = arith.constant 4 : i32
      %605 = vector.broadcast %c4_i32 : i32 to vector<8x1xi32>
      %606 = arith.cmpi slt, %604, %605 : vector<8x1xi32>
      %607 = arith.extui %606 : vector<8x1xi1> to vector<8x1xi32>
      %608 = arith.sitofp %607 : vector<8x1xi32> to vector<8x1xf32>
      %cst_124 = arith.constant 1.000000e+00 : f32
      %609 = vector.broadcast %cst_124 : f32 to vector<8x1xf32>
      %610 = arith.subf %609, %608 : vector<8x1xf32>
      %611 = vector.extract_strided_slice %600 {offsets = [0, 0], sizes = [4, 20], strides = [1, 1]} : vector<32x20xf32> to vector<4x20xf32>
      %612 = vector.extract_strided_slice %603 {offsets = [28, 0], sizes = [4, 20], strides = [1, 1]} : vector<32x20xf32> to vector<4x20xf32>
      %613 = tpu.concatenate %611, %612 in 0 : vector<4x20xf32>, vector<4x20xf32> -> vector<8x20xf32>
      %614 = vector.broadcast %608 : vector<8x1xf32> to vector<8x5xf32>
      %615 = arith.mulf %arg22, %614 : vector<8x5xf32>
      %616 = vector.broadcast %610 : vector<8x1xf32> to vector<8x5xf32>
      %617 = arith.mulf %arg22, %616 : vector<8x5xf32>
      %618 = tpu.concatenate %615, %617 in 1 : vector<8x5xf32>, vector<8x5xf32> -> vector<8x10xf32>
      %cst_125 = arith.constant dense<0.000000e+00> : vector<8x20xf32>
      %619 = tpu.matmul %618, %596, %cst_125 {dimension_numbers = #tpu.dot_dimension_numbers<[1], [0], [0], [1], [0, 0, 1, 1], [], []>} : vector<8x10xf32>, vector<10x20xf32>, vector<8x20xf32> -> vector<8x20xf32>
      %620 = arith.addf %613, %619 : vector<8x20xf32>
      %621 = arith.addf %620, %597 : vector<8x20xf32>
      %cst_126 = arith.constant 5.000000e-01 : f32
      %622 = vector.broadcast %cst_126 : f32 to vector<8x20xf32>
      %623 = arith.mulf %622, %621 : vector<8x20xf32>
      %624 = math.tanh %623 : vector<8x20xf32>
      %cst_127 = arith.constant 5.000000e-01 : f32
      %625 = vector.broadcast %cst_127 : f32 to vector<8x20xf32>
      %626 = arith.mulf %625, %624 : vector<8x20xf32>
      %cst_128 = arith.constant 5.000000e-01 : f32
      %627 = vector.broadcast %cst_128 : f32 to vector<8x20xf32>
      %628 = arith.addf %626, %627 : vector<8x20xf32>
      %629 = math.tanh %621 : vector<8x20xf32>
      %630 = vector.extract_strided_slice %628 {offsets = [0, 0], sizes = [8, 5], strides = [1, 1]} : vector<8x20xf32> to vector<8x5xf32>
      %631 = vector.extract_strided_slice %628 {offsets = [0, 5], sizes = [8, 5], strides = [1, 1]} : vector<8x20xf32> to vector<8x5xf32>
      %632 = vector.extract_strided_slice %629 {offsets = [0, 10], sizes = [8, 5], strides = [1, 1]} : vector<8x20xf32> to vector<8x5xf32>
      %633 = vector.extract_strided_slice %628 {offsets = [0, 15], sizes = [8, 5], strides = [1, 1]} : vector<8x20xf32> to vector<8x5xf32>
      %634 = arith.mulf %631, %arg23 : vector<8x5xf32>
      %635 = arith.mulf %630, %632 : vector<8x5xf32>
      %636 = arith.addf %634, %635 : vector<8x5xf32>
      %637 = math.tanh %636 : vector<8x5xf32>
      %638 = arith.mulf %633, %637 : vector<8x5xf32>
      %639 = vector.extract_strided_slice %638 {offsets = [0, 0], sizes = [4, 5], strides = [1, 1]} : vector<8x5xf32> to vector<4x5xf32>
      %640 = vector.extract_strided_slice %638 {offsets = [4, 0], sizes = [4, 5], strides = [1, 1]} : vector<8x5xf32> to vector<4x5xf32>
      %641 = vector.extract_strided_slice %600 {offsets = [4, 0], sizes = [4, 20], strides = [1, 1]} : vector<32x20xf32> to vector<4x20xf32>
      %642 = vector.extract_strided_slice %603 {offsets = [24, 0], sizes = [4, 20], strides = [1, 1]} : vector<32x20xf32> to vector<4x20xf32>
      %643 = tpu.concatenate %641, %642 in 0 : vector<4x20xf32>, vector<4x20xf32> -> vector<8x20xf32>
      %644 = vector.broadcast %608 : vector<8x1xf32> to vector<8x5xf32>
      %645 = arith.mulf %638, %644 : vector<8x5xf32>
      %646 = vector.broadcast %610 : vector<8x1xf32> to vector<8x5xf32>
      %647 = arith.mulf %638, %646 : vector<8x5xf32>
      %648 = tpu.concatenate %645, %647 in 1 : vector<8x5xf32>, vector<8x5xf32> -> vector<8x10xf32>
      %cst_129 = arith.constant dense<0.000000e+00> : vector<8x20xf32>
      %649 = tpu.matmul %648, %596, %cst_129 {dimension_numbers = #tpu.dot_dimension_numbers<[1], [0], [0], [1], [0, 0, 1, 1], [], []>} : vector<8x10xf32>, vector<10x20xf32>, vector<8x20xf32> -> vector<8x20xf32>
      %650 = arith.addf %643, %649 : vector<8x20xf32>
      %651 = arith.addf %650, %597 : vector<8x20xf32>
      %cst_130 = arith.constant 5.000000e-01 : f32
      %652 = vector.broadcast %cst_130 : f32 to vector<8x20xf32>
      %653 = arith.mulf %652, %651 : vector<8x20xf32>
      %654 = math.tanh %653 : vector<8x20xf32>
      %cst_131 = arith.constant 5.000000e-01 : f32
      %655 = vector.broadcast %cst_131 : f32 to vector<8x20xf32>
      %656 = arith.mulf %655, %654 : vector<8x20xf32>
      %cst_132 = arith.constant 5.000000e-01 : f32
      %657 = vector.broadcast %cst_132 : f32 to vector<8x20xf32>
      %658 = arith.addf %656, %657 : vector<8x20xf32>
      %659 = math.tanh %651 : vector<8x20xf32>
      %660 = vector.extract_strided_slice %658 {offsets = [0, 0], sizes = [8, 5], strides = [1, 1]} : vector<8x20xf32> to vector<8x5xf32>
      %661 = vector.extract_strided_slice %658 {offsets = [0, 5], sizes = [8, 5], strides = [1, 1]} : vector<8x20xf32> to vector<8x5xf32>
      %662 = vector.extract_strided_slice %659 {offsets = [0, 10], sizes = [8, 5], strides = [1, 1]} : vector<8x20xf32> to vector<8x5xf32>
      %663 = vector.extract_strided_slice %658 {offsets = [0, 15], sizes = [8, 5], strides = [1, 1]} : vector<8x20xf32> to vector<8x5xf32>
      %664 = arith.mulf %661, %636 : vector<8x5xf32>
      %665 = arith.mulf %660, %662 : vector<8x5xf32>
      %666 = arith.addf %664, %665 : vector<8x5xf32>
      %667 = math.tanh %666 : vector<8x5xf32>
      %668 = arith.mulf %663, %667 : vector<8x5xf32>
      %669 = vector.extract_strided_slice %668 {offsets = [0, 0], sizes = [4, 5], strides = [1, 1]} : vector<8x5xf32> to vector<4x5xf32>
      %670 = vector.extract_strided_slice %668 {offsets = [4, 0], sizes = [4, 5], strides = [1, 1]} : vector<8x5xf32> to vector<4x5xf32>
      %671 = vector.extract_strided_slice %600 {offsets = [8, 0], sizes = [4, 20], strides = [1, 1]} : vector<32x20xf32> to vector<4x20xf32>
      %672 = vector.extract_strided_slice %603 {offsets = [20, 0], sizes = [4, 20], strides = [1, 1]} : vector<32x20xf32> to vector<4x20xf32>
      %673 = tpu.concatenate %671, %672 in 0 : vector<4x20xf32>, vector<4x20xf32> -> vector<8x20xf32>
      %674 = vector.broadcast %608 : vector<8x1xf32> to vector<8x5xf32>
      %675 = arith.mulf %668, %674 : vector<8x5xf32>
      %676 = vector.broadcast %610 : vector<8x1xf32> to vector<8x5xf32>
      %677 = arith.mulf %668, %676 : vector<8x5xf32>
      %678 = tpu.concatenate %675, %677 in 1 : vector<8x5xf32>, vector<8x5xf32> -> vector<8x10xf32>
      %cst_133 = arith.constant dense<0.000000e+00> : vector<8x20xf32>
      %679 = tpu.matmul %678, %596, %cst_133 {dimension_numbers = #tpu.dot_dimension_numbers<[1], [0], [0], [1], [0, 0, 1, 1], [], []>} : vector<8x10xf32>, vector<10x20xf32>, vector<8x20xf32> -> vector<8x20xf32>
      %680 = arith.addf %673, %679 : vector<8x20xf32>
      %681 = arith.addf %680, %597 : vector<8x20xf32>
      %cst_134 = arith.constant 5.000000e-01 : f32
      %682 = vector.broadcast %cst_134 : f32 to vector<8x20xf32>
      %683 = arith.mulf %682, %681 : vector<8x20xf32>
      %684 = math.tanh %683 : vector<8x20xf32>
      %cst_135 = arith.constant 5.000000e-01 : f32
      %685 = vector.broadcast %cst_135 : f32 to vector<8x20xf32>
      %686 = arith.mulf %685, %684 : vector<8x20xf32>
      %cst_136 = arith.constant 5.000000e-01 : f32
      %687 = vector.broadcast %cst_136 : f32 to vector<8x20xf32>
      %688 = arith.addf %686, %687 : vector<8x20xf32>
      %689 = math.tanh %681 : vector<8x20xf32>
      %690 = vector.extract_strided_slice %688 {offsets = [0, 0], sizes = [8, 5], strides = [1, 1]} : vector<8x20xf32> to vector<8x5xf32>
      %691 = vector.extract_strided_slice %688 {offsets = [0, 5], sizes = [8, 5], strides = [1, 1]} : vector<8x20xf32> to vector<8x5xf32>
      %692 = vector.extract_strided_slice %689 {offsets = [0, 10], sizes = [8, 5], strides = [1, 1]} : vector<8x20xf32> to vector<8x5xf32>
      %693 = vector.extract_strided_slice %688 {offsets = [0, 15], sizes = [8, 5], strides = [1, 1]} : vector<8x20xf32> to vector<8x5xf32>
      %694 = arith.mulf %691, %666 : vector<8x5xf32>
      %695 = arith.mulf %690, %692 : vector<8x5xf32>
      %696 = arith.addf %694, %695 : vector<8x5xf32>
      %697 = math.tanh %696 : vector<8x5xf32>
      %698 = arith.mulf %693, %697 : vector<8x5xf32>
      %699 = vector.extract_strided_slice %698 {offsets = [0, 0], sizes = [4, 5], strides = [1, 1]} : vector<8x5xf32> to vector<4x5xf32>
      %700 = vector.extract_strided_slice %698 {offsets = [4, 0], sizes = [4, 5], strides = [1, 1]} : vector<8x5xf32> to vector<4x5xf32>
      %701 = vector.extract_strided_slice %600 {offsets = [12, 0], sizes = [4, 20], strides = [1, 1]} : vector<32x20xf32> to vector<4x20xf32>
      %702 = vector.extract_strided_slice %603 {offsets = [16, 0], sizes = [4, 20], strides = [1, 1]} : vector<32x20xf32> to vector<4x20xf32>
      %703 = tpu.concatenate %701, %702 in 0 : vector<4x20xf32>, vector<4x20xf32> -> vector<8x20xf32>
      %704 = vector.broadcast %608 : vector<8x1xf32> to vector<8x5xf32>
      %705 = arith.mulf %698, %704 : vector<8x5xf32>
      %706 = vector.broadcast %610 : vector<8x1xf32> to vector<8x5xf32>
      %707 = arith.mulf %698, %706 : vector<8x5xf32>
      %708 = tpu.concatenate %705, %707 in 1 : vector<8x5xf32>, vector<8x5xf32> -> vector<8x10xf32>
      %cst_137 = arith.constant dense<0.000000e+00> : vector<8x20xf32>
      %709 = tpu.matmul %708, %596, %cst_137 {dimension_numbers = #tpu.dot_dimension_numbers<[1], [0], [0], [1], [0, 0, 1, 1], [], []>} : vector<8x10xf32>, vector<10x20xf32>, vector<8x20xf32> -> vector<8x20xf32>
      %710 = arith.addf %703, %709 : vector<8x20xf32>
      %711 = arith.addf %710, %597 : vector<8x20xf32>
      %cst_138 = arith.constant 5.000000e-01 : f32
      %712 = vector.broadcast %cst_138 : f32 to vector<8x20xf32>
      %713 = arith.mulf %712, %711 : vector<8x20xf32>
      %714 = math.tanh %713 : vector<8x20xf32>
      %cst_139 = arith.constant 5.000000e-01 : f32
      %715 = vector.broadcast %cst_139 : f32 to vector<8x20xf32>
      %716 = arith.mulf %715, %714 : vector<8x20xf32>
      %cst_140 = arith.constant 5.000000e-01 : f32
      %717 = vector.broadcast %cst_140 : f32 to vector<8x20xf32>
      %718 = arith.addf %716, %717 : vector<8x20xf32>
      %719 = math.tanh %711 : vector<8x20xf32>
      %720 = vector.extract_strided_slice %718 {offsets = [0, 0], sizes = [8, 5], strides = [1, 1]} : vector<8x20xf32> to vector<8x5xf32>
      %721 = vector.extract_strided_slice %718 {offsets = [0, 5], sizes = [8, 5], strides = [1, 1]} : vector<8x20xf32> to vector<8x5xf32>
      %722 = vector.extract_strided_slice %719 {offsets = [0, 10], sizes = [8, 5], strides = [1, 1]} : vector<8x20xf32> to vector<8x5xf32>
      %723 = vector.extract_strided_slice %718 {offsets = [0, 15], sizes = [8, 5], strides = [1, 1]} : vector<8x20xf32> to vector<8x5xf32>
      %724 = arith.mulf %721, %696 : vector<8x5xf32>
      %725 = arith.mulf %720, %722 : vector<8x5xf32>
      %726 = arith.addf %724, %725 : vector<8x5xf32>
      %727 = math.tanh %726 : vector<8x5xf32>
      %728 = arith.mulf %723, %727 : vector<8x5xf32>
      %729 = vector.extract_strided_slice %728 {offsets = [0, 0], sizes = [4, 5], strides = [1, 1]} : vector<8x5xf32> to vector<4x5xf32>
      %730 = vector.extract_strided_slice %728 {offsets = [4, 0], sizes = [4, 5], strides = [1, 1]} : vector<8x5xf32> to vector<4x5xf32>
      %731 = vector.extract_strided_slice %600 {offsets = [16, 0], sizes = [4, 20], strides = [1, 1]} : vector<32x20xf32> to vector<4x20xf32>
      %732 = vector.extract_strided_slice %603 {offsets = [12, 0], sizes = [4, 20], strides = [1, 1]} : vector<32x20xf32> to vector<4x20xf32>
      %733 = tpu.concatenate %731, %732 in 0 : vector<4x20xf32>, vector<4x20xf32> -> vector<8x20xf32>
      %734 = vector.broadcast %608 : vector<8x1xf32> to vector<8x5xf32>
      %735 = arith.mulf %728, %734 : vector<8x5xf32>
      %736 = vector.broadcast %610 : vector<8x1xf32> to vector<8x5xf32>
      %737 = arith.mulf %728, %736 : vector<8x5xf32>
      %738 = tpu.concatenate %735, %737 in 1 : vector<8x5xf32>, vector<8x5xf32> -> vector<8x10xf32>
      %cst_141 = arith.constant dense<0.000000e+00> : vector<8x20xf32>
      %739 = tpu.matmul %738, %596, %cst_141 {dimension_numbers = #tpu.dot_dimension_numbers<[1], [0], [0], [1], [0, 0, 1, 1], [], []>} : vector<8x10xf32>, vector<10x20xf32>, vector<8x20xf32> -> vector<8x20xf32>
      %740 = arith.addf %733, %739 : vector<8x20xf32>
      %741 = arith.addf %740, %597 : vector<8x20xf32>
      %cst_142 = arith.constant 5.000000e-01 : f32
      %742 = vector.broadcast %cst_142 : f32 to vector<8x20xf32>
      %743 = arith.mulf %742, %741 : vector<8x20xf32>
      %744 = math.tanh %743 : vector<8x20xf32>
      %cst_143 = arith.constant 5.000000e-01 : f32
      %745 = vector.broadcast %cst_143 : f32 to vector<8x20xf32>
      %746 = arith.mulf %745, %744 : vector<8x20xf32>
      %cst_144 = arith.constant 5.000000e-01 : f32
      %747 = vector.broadcast %cst_144 : f32 to vector<8x20xf32>
      %748 = arith.addf %746, %747 : vector<8x20xf32>
      %749 = math.tanh %741 : vector<8x20xf32>
      %750 = vector.extract_strided_slice %748 {offsets = [0, 0], sizes = [8, 5], strides = [1, 1]} : vector<8x20xf32> to vector<8x5xf32>
      %751 = vector.extract_strided_slice %748 {offsets = [0, 5], sizes = [8, 5], strides = [1, 1]} : vector<8x20xf32> to vector<8x5xf32>
      %752 = vector.extract_strided_slice %749 {offsets = [0, 10], sizes = [8, 5], strides = [1, 1]} : vector<8x20xf32> to vector<8x5xf32>
      %753 = vector.extract_strided_slice %748 {offsets = [0, 15], sizes = [8, 5], strides = [1, 1]} : vector<8x20xf32> to vector<8x5xf32>
      %754 = arith.mulf %751, %726 : vector<8x5xf32>
      %755 = arith.mulf %750, %752 : vector<8x5xf32>
      %756 = arith.addf %754, %755 : vector<8x5xf32>
      %757 = math.tanh %756 : vector<8x5xf32>
      %758 = arith.mulf %753, %757 : vector<8x5xf32>
      %759 = vector.extract_strided_slice %758 {offsets = [0, 0], sizes = [4, 5], strides = [1, 1]} : vector<8x5xf32> to vector<4x5xf32>
      %760 = vector.extract_strided_slice %758 {offsets = [4, 0], sizes = [4, 5], strides = [1, 1]} : vector<8x5xf32> to vector<4x5xf32>
      %761 = vector.extract_strided_slice %600 {offsets = [20, 0], sizes = [4, 20], strides = [1, 1]} : vector<32x20xf32> to vector<4x20xf32>
      %762 = vector.extract_strided_slice %603 {offsets = [8, 0], sizes = [4, 20], strides = [1, 1]} : vector<32x20xf32> to vector<4x20xf32>
      %763 = tpu.concatenate %761, %762 in 0 : vector<4x20xf32>, vector<4x20xf32> -> vector<8x20xf32>
      %764 = vector.broadcast %608 : vector<8x1xf32> to vector<8x5xf32>
      %765 = arith.mulf %758, %764 : vector<8x5xf32>
      %766 = vector.broadcast %610 : vector<8x1xf32> to vector<8x5xf32>
      %767 = arith.mulf %758, %766 : vector<8x5xf32>
      %768 = tpu.concatenate %765, %767 in 1 : vector<8x5xf32>, vector<8x5xf32> -> vector<8x10xf32>
      %cst_145 = arith.constant dense<0.000000e+00> : vector<8x20xf32>
      %769 = tpu.matmul %768, %596, %cst_145 {dimension_numbers = #tpu.dot_dimension_numbers<[1], [0], [0], [1], [0, 0, 1, 1], [], []>} : vector<8x10xf32>, vector<10x20xf32>, vector<8x20xf32> -> vector<8x20xf32>
      %770 = arith.addf %763, %769 : vector<8x20xf32>
      %771 = arith.addf %770, %597 : vector<8x20xf32>
      %cst_146 = arith.constant 5.000000e-01 : f32
      %772 = vector.broadcast %cst_146 : f32 to vector<8x20xf32>
      %773 = arith.mulf %772, %771 : vector<8x20xf32>
      %774 = math.tanh %773 : vector<8x20xf32>
      %cst_147 = arith.constant 5.000000e-01 : f32
      %775 = vector.broadcast %cst_147 : f32 to vector<8x20xf32>
      %776 = arith.mulf %775, %774 : vector<8x20xf32>
      %cst_148 = arith.constant 5.000000e-01 : f32
      %777 = vector.broadcast %cst_148 : f32 to vector<8x20xf32>
      %778 = arith.addf %776, %777 : vector<8x20xf32>
      %779 = math.tanh %771 : vector<8x20xf32>
      %780 = vector.extract_strided_slice %778 {offsets = [0, 0], sizes = [8, 5], strides = [1, 1]} : vector<8x20xf32> to vector<8x5xf32>
      %781 = vector.extract_strided_slice %778 {offsets = [0, 5], sizes = [8, 5], strides = [1, 1]} : vector<8x20xf32> to vector<8x5xf32>
      %782 = vector.extract_strided_slice %779 {offsets = [0, 10], sizes = [8, 5], strides = [1, 1]} : vector<8x20xf32> to vector<8x5xf32>
      %783 = vector.extract_strided_slice %778 {offsets = [0, 15], sizes = [8, 5], strides = [1, 1]} : vector<8x20xf32> to vector<8x5xf32>
      %784 = arith.mulf %781, %756 : vector<8x5xf32>
      %785 = arith.mulf %780, %782 : vector<8x5xf32>
      %786 = arith.addf %784, %785 : vector<8x5xf32>
      %787 = math.tanh %786 : vector<8x5xf32>
      %788 = arith.mulf %783, %787 : vector<8x5xf32>
      %789 = vector.extract_strided_slice %788 {offsets = [0, 0], sizes = [4, 5], strides = [1, 1]} : vector<8x5xf32> to vector<4x5xf32>
      %790 = vector.extract_strided_slice %788 {offsets = [4, 0], sizes = [4, 5], strides = [1, 1]} : vector<8x5xf32> to vector<4x5xf32>
      %791 = vector.extract_strided_slice %600 {offsets = [24, 0], sizes = [4, 20], strides = [1, 1]} : vector<32x20xf32> to vector<4x20xf32>
      %792 = vector.extract_strided_slice %603 {offsets = [4, 0], sizes = [4, 20], strides = [1, 1]} : vector<32x20xf32> to vector<4x20xf32>
      %793 = tpu.concatenate %791, %792 in 0 : vector<4x20xf32>, vector<4x20xf32> -> vector<8x20xf32>
      %794 = vector.broadcast %608 : vector<8x1xf32> to vector<8x5xf32>
      %795 = arith.mulf %788, %794 : vector<8x5xf32>
      %796 = vector.broadcast %610 : vector<8x1xf32> to vector<8x5xf32>
      %797 = arith.mulf %788, %796 : vector<8x5xf32>
      %798 = tpu.concatenate %795, %797 in 1 : vector<8x5xf32>, vector<8x5xf32> -> vector<8x10xf32>
      %cst_149 = arith.constant dense<0.000000e+00> : vector<8x20xf32>
      %799 = tpu.matmul %798, %596, %cst_149 {dimension_numbers = #tpu.dot_dimension_numbers<[1], [0], [0], [1], [0, 0, 1, 1], [], []>} : vector<8x10xf32>, vector<10x20xf32>, vector<8x20xf32> -> vector<8x20xf32>
      %800 = arith.addf %793, %799 : vector<8x20xf32>
      %801 = arith.addf %800, %597 : vector<8x20xf32>
      %cst_150 = arith.constant 5.000000e-01 : f32
      %802 = vector.broadcast %cst_150 : f32 to vector<8x20xf32>
      %803 = arith.mulf %802, %801 : vector<8x20xf32>
      %804 = math.tanh %803 : vector<8x20xf32>
      %cst_151 = arith.constant 5.000000e-01 : f32
      %805 = vector.broadcast %cst_151 : f32 to vector<8x20xf32>
      %806 = arith.mulf %805, %804 : vector<8x20xf32>
      %cst_152 = arith.constant 5.000000e-01 : f32
      %807 = vector.broadcast %cst_152 : f32 to vector<8x20xf32>
      %808 = arith.addf %806, %807 : vector<8x20xf32>
      %809 = math.tanh %801 : vector<8x20xf32>
      %810 = vector.extract_strided_slice %808 {offsets = [0, 0], sizes = [8, 5], strides = [1, 1]} : vector<8x20xf32> to vector<8x5xf32>
      %811 = vector.extract_strided_slice %808 {offsets = [0, 5], sizes = [8, 5], strides = [1, 1]} : vector<8x20xf32> to vector<8x5xf32>
      %812 = vector.extract_strided_slice %809 {offsets = [0, 10], sizes = [8, 5], strides = [1, 1]} : vector<8x20xf32> to vector<8x5xf32>
      %813 = vector.extract_strided_slice %808 {offsets = [0, 15], sizes = [8, 5], strides = [1, 1]} : vector<8x20xf32> to vector<8x5xf32>
      %814 = arith.mulf %811, %786 : vector<8x5xf32>
      %815 = arith.mulf %810, %812 : vector<8x5xf32>
      %816 = arith.addf %814, %815 : vector<8x5xf32>
      %817 = math.tanh %816 : vector<8x5xf32>
      %818 = arith.mulf %813, %817 : vector<8x5xf32>
      %819 = vector.extract_strided_slice %818 {offsets = [0, 0], sizes = [4, 5], strides = [1, 1]} : vector<8x5xf32> to vector<4x5xf32>
      %820 = vector.extract_strided_slice %818 {offsets = [4, 0], sizes = [4, 5], strides = [1, 1]} : vector<8x5xf32> to vector<4x5xf32>
      %821 = vector.extract_strided_slice %600 {offsets = [28, 0], sizes = [4, 20], strides = [1, 1]} : vector<32x20xf32> to vector<4x20xf32>
      %822 = vector.extract_strided_slice %603 {offsets = [0, 0], sizes = [4, 20], strides = [1, 1]} : vector<32x20xf32> to vector<4x20xf32>
      %823 = tpu.concatenate %821, %822 in 0 : vector<4x20xf32>, vector<4x20xf32> -> vector<8x20xf32>
      %824 = vector.broadcast %608 : vector<8x1xf32> to vector<8x5xf32>
      %825 = arith.mulf %818, %824 : vector<8x5xf32>
      %826 = vector.broadcast %610 : vector<8x1xf32> to vector<8x5xf32>
      %827 = arith.mulf %818, %826 : vector<8x5xf32>
      %828 = tpu.concatenate %825, %827 in 1 : vector<8x5xf32>, vector<8x5xf32> -> vector<8x10xf32>
      %cst_153 = arith.constant dense<0.000000e+00> : vector<8x20xf32>
      %829 = tpu.matmul %828, %596, %cst_153 {dimension_numbers = #tpu.dot_dimension_numbers<[1], [0], [0], [1], [0, 0, 1, 1], [], []>} : vector<8x10xf32>, vector<10x20xf32>, vector<8x20xf32> -> vector<8x20xf32>
      %830 = arith.addf %823, %829 : vector<8x20xf32>
      %831 = arith.addf %830, %597 : vector<8x20xf32>
      %cst_154 = arith.constant 5.000000e-01 : f32
      %832 = vector.broadcast %cst_154 : f32 to vector<8x20xf32>
      %833 = arith.mulf %832, %831 : vector<8x20xf32>
      %834 = math.tanh %833 : vector<8x20xf32>
      %cst_155 = arith.constant 5.000000e-01 : f32
      %835 = vector.broadcast %cst_155 : f32 to vector<8x20xf32>
      %836 = arith.mulf %835, %834 : vector<8x20xf32>
      %cst_156 = arith.constant 5.000000e-01 : f32
      %837 = vector.broadcast %cst_156 : f32 to vector<8x20xf32>
      %838 = arith.addf %836, %837 : vector<8x20xf32>
      %839 = math.tanh %831 : vector<8x20xf32>
      %840 = vector.extract_strided_slice %838 {offsets = [0, 0], sizes = [8, 5], strides = [1, 1]} : vector<8x20xf32> to vector<8x5xf32>
      %841 = vector.extract_strided_slice %838 {offsets = [0, 5], sizes = [8, 5], strides = [1, 1]} : vector<8x20xf32> to vector<8x5xf32>
      %842 = vector.extract_strided_slice %839 {offsets = [0, 10], sizes = [8, 5], strides = [1, 1]} : vector<8x20xf32> to vector<8x5xf32>
      %843 = vector.extract_strided_slice %838 {offsets = [0, 15], sizes = [8, 5], strides = [1, 1]} : vector<8x20xf32> to vector<8x5xf32>
      %844 = arith.mulf %841, %816 : vector<8x5xf32>
      %845 = arith.mulf %840, %842 : vector<8x5xf32>
      %846 = arith.addf %844, %845 : vector<8x5xf32>
      %847 = math.tanh %846 : vector<8x5xf32>
      %848 = arith.mulf %843, %847 : vector<8x5xf32>
      %849 = vector.extract_strided_slice %848 {offsets = [0, 0], sizes = [4, 5], strides = [1, 1]} : vector<8x5xf32> to vector<4x5xf32>
      %850 = vector.extract_strided_slice %848 {offsets = [4, 0], sizes = [4, 5], strides = [1, 1]} : vector<8x5xf32> to vector<4x5xf32>
      %851 = tpu.concatenate %639, %850 in 1 : vector<4x5xf32>, vector<4x5xf32> -> vector<4x10xf32>
      %852 = tpu.concatenate %669, %820 in 1 : vector<4x5xf32>, vector<4x5xf32> -> vector<4x10xf32>
      %853 = tpu.concatenate %699, %790 in 1 : vector<4x5xf32>, vector<4x5xf32> -> vector<4x10xf32>
      %854 = tpu.concatenate %729, %760 in 1 : vector<4x5xf32>, vector<4x5xf32> -> vector<4x10xf32>
      %855 = tpu.concatenate %759, %730 in 1 : vector<4x5xf32>, vector<4x5xf32> -> vector<4x10xf32>
      %856 = tpu.concatenate %789, %700 in 1 : vector<4x5xf32>, vector<4x5xf32> -> vector<4x10xf32>
      %857 = tpu.concatenate %819, %670 in 1 : vector<4x5xf32>, vector<4x5xf32> -> vector<4x10xf32>
      %858 = tpu.concatenate %849, %640 in 1 : vector<4x5xf32>, vector<4x5xf32> -> vector<4x10xf32>
      %859 = tpu.concatenate %851, %852, %853, %854, %855, %856, %857, %858 in 0 : vector<4x10xf32>, vector<4x10xf32>, vector<4x10xf32>, vector<4x10xf32>, vector<4x10xf32>, vector<4x10xf32>, vector<4x10xf32>, vector<4x10xf32> -> vector<32x10xf32>
      %c0_157 = arith.constant 0 : index
      %c0_158 = arith.constant 0 : index
      %860 = vector.load %arg14[%c0_157, %c0_158] : memref<8x10xf32, #tpu.memory_space<vmem>>, vector<8x10xf32>
      tpu.vector_store %arg14[%c0_157, %c0_158], %295 {strides = array<i32>} : memref<8x10xf32, #tpu.memory_space<vmem>>, vector<8x10xf32>,
      %c0_159 = arith.constant 0 : index
      %c0_160 = arith.constant 0 : index
      %861 = vector.load %arg15[%c0_159, %c0_160] : memref<16x10xf32, #tpu.memory_space<vmem>>, vector<16x10xf32>
      tpu.vector_store %arg15[%c0_159, %c0_160], %578 {strides = array<i32>} : memref<16x10xf32, #tpu.memory_space<vmem>>, vector<16x10xf32>,
      %c0_161 = arith.constant 0 : index
      %c0_162 = arith.constant 0 : index
      %862 = vector.load %arg16[%c0_161, %c0_162] : memref<32x10xf32, #tpu.memory_space<vmem>>, vector<32x10xf32>
      tpu.vector_store %arg16[%c0_161, %c0_162], %859 {strides = array<i32>} : memref<32x10xf32, #tpu.memory_space<vmem>>, vector<32x10xf32>,
      scf.yield %284, %282, %567, %565, %848, %846 : vector<2x5xf32>, vector<2x5xf32>, vector<4x5xf32>, vector<4x5xf32>, vector<8x5xf32>, vector<8x5xf32>
    }
    %c8_i32_5 = arith.constant 8 : i32
    %c7 = arith.constant 7 : index
    %c0 = arith.constant 0 : index
    %8 = vector.load %arg14[%c7, %c0] : memref<8x10xf32, #tpu.memory_space<vmem>>, vector<1x10xf32>
    %c14 = arith.constant 14 : index
    %c0_6 = arith.constant 0 : index
    %9 = vector.load %arg15[%c14, %c0_6] : memref<16x10xf32, #tpu.memory_space<vmem>>, vector<2x10xf32>
    %c28 = arith.constant 28 : index
    %c0_7 = arith.constant 0 : index
    %10 = vector.load %arg16[%c28, %c0_7] : memref<32x10xf32, #tpu.memory_space<vmem>>, vector<4x10xf32>
    %11 = tpu.concatenate %8, %9, %10 in 0 : vector<1x10xf32>, vector<2x10xf32>, vector<4x10xf32> -> vector<7x10xf32>
    %c0_8 = arith.constant 0 : index
    %c0_9 = arith.constant 0 : index
    %12 = vector.load %arg10[%c0_8, %c0_9] : memref<10x3xf32, #tpu.memory_space<vmem>>, vector<10x3xf32>
    %cst_10 = arith.constant dense<0.000000e+00> : vector<7x3xf32>
    %13 = tpu.matmul %11, %12, %cst_10 {dimension_numbers = #tpu.dot_dimension_numbers<[1], [0], [0], [1], [0, 0, 1, 1], [], []>} : vector<7x10xf32>, vector<10x3xf32>, vector<7x3xf32> -> vector<7x3xf32>
    %c0_11 = arith.constant 0 : index
    %c0_12 = arith.constant 0 : index
    %14 = vector.load %arg11[%c0_11, %c0_12] : memref<1x3xf32, #tpu.memory_space<vmem>>, vector<1x3xf32>
    %15 = vector.broadcast %14 : vector<1x3xf32> to vector<7x3xf32>
    %16 = arith.addf %13, %15 : vector<7x3xf32>
    %c0_13 = arith.constant 0 : index
    %c0_14 = arith.constant 0 : index
    %17 = vector.load %arg12[%c0_13, %c0_14] : memref<7x3xf32, #tpu.memory_space<vmem>>, vector<7x3xf32>
    tpu.vector_store %arg12[%c0_13, %c0_14], %16 {strides = array<i32>} : memref<7x3xf32, #tpu.memory_space<vmem>>, vector<7x3xf32>,
    %cst_15 = arith.constant dense<0xFF800000> : vector<3xf32>
    %18 = vector.multi_reduction <maximumf>, %16, %cst_15 [0] : vector<7x3xf32> to vector<3xf32>
    %19 = vector.shape_cast %18 : vector<3xf32> to vector<1x3xf32>
    %20 = vector.broadcast %19 : vector<1x3xf32> to vector<7x3xf32>
    %21 = arith.subf %16, %20 : vector<7x3xf32>
    %22 = math.exp %21 : vector<7x3xf32>
    %cst_16 = arith.constant dense<0.000000e+00> : vector<3xf32>
    %23 = vector.multi_reduction <add>, %22, %cst_16 [0] : vector<7x3xf32> to vector<3xf32>
    %24 = vector.shape_cast %23 : vector<3xf32> to vector<1x3xf32>
    %25 = tpu.reciprocal %24 {approx = true} : vector<1x3xf32> -> vector<1x3xf32>
    %26 = vector.broadcast %25 : vector<1x3xf32> to vector<7x3xf32>
    %27 = arith.mulf %22, %26 : vector<7x3xf32>
    %c0_17 = arith.constant 0 : index
    %c0_18 = arith.constant 0 : index
    %28 = vector.load %arg13[%c0_17, %c0_18] : memref<7x3xf32, #tpu.memory_space<vmem>>, vector<7x3xf32>
    tpu.vector_store %arg13[%c0_17, %c0_18], %27 {strides = array<i32>} : memref<7x3xf32, #tpu.memory_space<vmem>>, vector<7x3xf32>,
    return
  }
}

</mosaic_0001>

<llo_original>
// kernel: mdrnn_forward.1
$region0: #{mdrnn_forward.1}
  #allocation0 [shape = 'u32[]', space=smem, size = 0x4, offset = 0x4, fixed_abs, tag = 'smem constant byte address 0x4 - core index']
  #allocation1 [shape = 'u32[144,128]{1,0:T(1,128)}', space=vmem, size = 0x12000, scoped, tag = 'internal scratch']
  %s0 = inlined_call_operand.vmem [shape: f32[8,8,3], index: 0, kind: input, shape index: {}]
  %s1 = inlined_call_operand.vmem [shape: f32[2,3,20], index: 1, kind: input, shape index: {}]
  %s2 = inlined_call_operand.vmem [shape: f32[10,20], index: 2, kind: input, shape index: {}]
  %s3 = inlined_call_operand.vmem [shape: f32[2,20], index: 3, kind: input, shape index: {}]
  %s4 = inlined_call_operand.vmem [shape: f32[2,10,20], index: 4, kind: input, shape index: {}]
  %s5 = inlined_call_operand.vmem [shape: f32[10,20], index: 5, kind: input, shape index: {}]
  %s6 = inlined_call_operand.vmem [shape: f32[4,20], index: 6, kind: input, shape index: {}]
  %s7 = inlined_call_operand.vmem [shape: f32[2,10,20], index: 7, kind: input, shape index: {}]
  %s8 = inlined_call_operand.vmem [shape: f32[10,20], index: 8, kind: input, shape index: {}]
  %s9 = inlined_call_operand.vmem [shape: f32[8,20], index: 9, kind: input, shape index: {}]
  %s10 = inlined_call_operand.vmem [shape: f32[10,3], index: 10, kind: input, shape index: {}]
  %s11 = inlined_call_operand.vmem [shape: f32[1,3], index: 11, kind: input, shape index: {}]
  %s12 = inlined_call_operand.vmem [shape: f32[7,3], index: 12, kind: output, shape index: {0}]
  %s13 = inlined_call_operand.vmem [shape: f32[7,3], index: 13, kind: output, shape index: {1}]
  %s14 = inlined_call_operand.hbm [shape: f32[8,10], index: 14, kind: output, shape index: {2}]
  %s15 = inlined_call_operand.hbm [shape: f32[16,10], index: 15, kind: output, shape index: {3}]
  %s16 = inlined_call_operand.hbm [shape: f32[32,10], index: 16, kind: output, shape index: {4}]
  %17 = xla_tuple %s12, %s13, %s14, %s15, %s16
  %s18 = sld [smem:[#allocation0]]
  $region97: #{mdrnn_forward.1} parent=0
    _
  %s20 = ssub.s32 1, %s18
  %s21 = scalar_select 0, %s20, %s18
  $region1: #{mdrnn_forward.1} parent=0
    #allocation2 [shape = 'u8[4096]{0}', space=vmem, size = 0x1000, scoped, tag = 'output window, operand 2, single buffered']
    #allocation3 [shape = 's32[1]{0}', space=sflag, size = 0x4, scoped, tag = 'scoped memory for mdrnn_forward.1']
    #allocation4 [shape = 'u8[8192]{0}', space=vmem, size = 0x2000, scoped, tag = 'output window, operand 3, single buffered']
    #allocation5 [shape = 's32[1]{0}', space=sflag, size = 0x4, scoped, tag = 'scoped memory for mdrnn_forward.1']
    #allocation6 [shape = 'u8[16384]{0}', space=vmem, size = 0x4000, scoped, tag = 'output window, operand 4, single buffered']
    %22 = vsyncpa [#allocation3], 0
    %23 = vsyncpa [#allocation5], 0
    // Predicated region
    $region2: #{mdrnn_forward.1} parent=1 // pred_check
      _
    $region3: #{mdrnn_forward.1} parent=1 // pred_check_branch
      %25 = sbr.rel (0) target = $region5
    $region4: #{mdrnn_forward.1} parent=1 // pred_region
      _
    $region5: #{mdrnn_forward.1} parent=1 // pred_fallthru
      _
    // Predicated region
    $region6: #{mdrnn_forward.1} parent=1 // pred_check
      _
    $region7: #{mdrnn_forward.1} parent=1 // pred_check_branch
      %27 = sbr.rel (0) target = $region9
    $region8: #{mdrnn_forward.1} parent=1 // pred_region
      _
    $region9: #{mdrnn_forward.1} parent=1 // pred_fallthru
      _
    // Predicated region
    $region10: #{mdrnn_forward.1} parent=1 // pred_check
      _
    $region11: #{mdrnn_forward.1} parent=1 // pred_check_branch
      %29 = sbr.rel (0) target = $region13
    $region12: #{mdrnn_forward.1} parent=1 // pred_region
      _
    $region13: #{mdrnn_forward.1} parent=1 // pred_fallthru
      _
    // Predicated region
    $region14: #{mdrnn_forward.1} parent=1 // pred_check
      _
    $region15: #{mdrnn_forward.1} parent=1 // pred_check_branch
      %31 = sbr.rel (0) target = $region17
    $region16: #{mdrnn_forward.1} parent=1 // pred_region
      _
    $region17: #{mdrnn_forward.1} parent=1 // pred_fallthru
      _
    // Predicated region
    $region18: #{mdrnn_forward.1} parent=1 // pred_check
      _
    $region19: #{mdrnn_forward.1} parent=1 // pred_check_branch
      %33 = sbr.rel (0) target = $region21
    $region20: #{mdrnn_forward.1} parent=1 // pred_region
      _
    $region21: #{mdrnn_forward.1} parent=1 // pred_fallthru
      _
    // Predicated region
    $region22: #{mdrnn_forward.1} parent=1 // pred_check
      _
    $region23: #{mdrnn_forward.1} parent=1 // pred_check_branch
      %35 = sbr.rel (0) target = $region25
    $region24: #{mdrnn_forward.1} parent=1 // pred_region
      _
    $region25: #{mdrnn_forward.1} parent=1 // pred_fallthru
      _
    // Predicated region
    $region26: #{mdrnn_forward.1} parent=1 // pred_check
      _
    $region27: #{mdrnn_forward.1} parent=1 // pred_check_branch
      %37 = sbr.rel (0) target = $region29
    $region28: #{mdrnn_forward.1} parent=1 // pred_region
      _
    $region29: #{mdrnn_forward.1} parent=1 // pred_fallthru
      _
    // Predicated region
    $region30: #{mdrnn_forward.1} parent=1 // pred_check
      _
    $region31: #{mdrnn_forward.1} parent=1 // pred_check_branch
      %39 = sbr.rel (0) target = $region33
    $region32: #{mdrnn_forward.1} parent=1 // pred_region
      _
    $region33: #{mdrnn_forward.1} parent=1 // pred_fallthru
      _
    // Predicated region
    $region34: #{mdrnn_forward.1} parent=1 // pred_check
      _
    $region35: #{mdrnn_forward.1} parent=1 // pred_check_branch
      %41 = sbr.rel (0) target = $region37
    $region36: #{mdrnn_forward.1} parent=1 // pred_region
      _
    $region37: #{mdrnn_forward.1} parent=1 // pred_fallthru
      _
    // Predicated region
    $region38: #{mdrnn_forward.1} parent=1 // pred_check
      _
    $region39: #{mdrnn_forward.1} parent=1 // pred_check_branch
      %43 = sbr.rel (0) target = $region41
    $region40: #{mdrnn_forward.1} parent=1 // pred_region
      _
    $region41: #{mdrnn_forward.1} parent=1 // pred_fallthru
      _
    // Predicated region
    $region42: #{mdrnn_forward.1} parent=1 // pred_check
      _
    $region43: #{mdrnn_forward.1} parent=1 // pred_check_branch
      %45 = sbr.rel (0) target = $region45
    $region44: #{mdrnn_forward.1} parent=1 // pred_region
      _
    $region45: #{mdrnn_forward.1} parent=1 // pred_fallthru
      _
    // Predicated region
    $region46: #{mdrnn_forward.1} parent=1 // pred_check
      _
    $region47: #{mdrnn_forward.1} parent=1 // pred_check_branch
      %47 = sbr.rel (0) target = $region49
    $region48: #{mdrnn_forward.1} parent=1 // pred_region
      _
    $region49: #{mdrnn_forward.1} parent=1 // pred_fallthru
      _
    loop: start=0, step=1, limit=8
    $region50: #{mdrnn_forward.1} parent=1 // loop_pre_header
      _
    $region51: #{mdrnn_forward.1} parent=1 // loop_header
      %s49 = sphi 0, %s53
      %p50 = scmp.ge.s32.totalorder %s49, 8
      %v54 = vphi 0.0, %v1134
      %v55 = vphi 0.0, %v1128
      %v56 = vphi 0.0, %v2360
      %v57 = vphi 0.0, %v2354
      %v58 = vphi 0.0, %v3593
      %v59 = vphi 0.0, %v3587
    $region52: #{mdrnn_forward.1} parent=1 // loop_header_branch
      %52 = sbr.rel (%p50) target = $region56
    $region53: #{mdrnn_forward.1} parent=1 // loop_body
      %s60 = smul.u32 %s49, 8
      %s61 = scalar_lea.vmem %s0, %s60
      %v62 = vld [vmem:[%s61] sm:$0xff]
      %v63 = vld [vmem:[%s2] sm:$0xff]
      %v64 = vld [vmem:[%s2 + $0x8] sm:$0x3]
      %v65 = vld [vmem:[%s3] sm:$0x3]
      %v66 = vld [vmem:[%s1] sm:$0x7]
      %vm67 = vcmask 23552
      %v69 = vsel %vm67, %v62, 0
      %vm71 = vcmask 1042432
      %v73 = vsel %vm71, %v66, 0
      %75 = vmatprep.subr.mxu0 0.0
      %76 = vmatpush1.msra.mxu0 %v73
      %77 = vmatprep.subr.mxu0 0.0
      %78 = vmatpush1.msra.mxu0 0.0
      %79 = vmatprep.subr.mxu0 0.0
      %80 = vmatpush1.msra.mxu0 0.0
      %81 = vmatprep.subr.mxu0 0.0
      %82 = vmatpush1.msra.mxu0 0.0
      %83 = vmatprep.subr.mxu0 0.0
      %84 = vmatpush1.msra.mxu0 0.0
      %85 = vmatprep.subr.mxu0 0.0
      %86 = vmatpush1.msra.mxu0 0.0
      %87 = vmatprep.subr.mxu0 0.0
      %88 = vmatpush1.msra.mxu0 0.0
      %89 = vmatprep.subr.mxu0 0.0
      %90 = vmatpush1.msra.mxu0 0.0
      %91 = vmatprep.subr.mxu0 0.0
      %92 = vmatpush1.msra.mxu0 0.0
      %93 = vmatprep.subr.mxu0 0.0
      %94 = vmatpush1.msra.mxu0 0.0
      %95 = vmatprep.subr.mxu0 0.0
      %96 = vmatpush1.msra.mxu0 0.0
      %97 = vmatprep.subr.mxu0 0.0
      %98 = vmatpush1.msra.mxu0 0.0
      %99 = vmatprep.subr.mxu0 0.0
      %100 = vmatpush1.msra.mxu0 0.0
      %101 = vmatprep.subr.mxu0 0.0
      %102 = vmatpush1.msra.mxu0 0.0
      %103 = vmatprep.subr.mxu0 0.0
      %104 = vmatpush1.msra.mxu0 0.0
      %105 = vmatprep.subr.mxu0 0.0
      %106 = vmatpush1.msra.mxu0 0.0
      %107 = vmatprep.subr.mxu0 0.0
      %108 = vmatpush1.msra.mxu0 0.0
      %109 = vmatprep.subr.mxu0 0.0
      %110 = vmatpush1.msra.mxu0 0.0
      %111 = vmatprep.subr.mxu0 0.0
      %112 = vmatpush1.msra.mxu0 0.0
      %113 = vmatprep.subr.mxu0 0.0
      %114 = vmatpush1.msra.mxu0 0.0
      %115 = vmatprep.subr.mxu0 0.0
      %116 = vmatpush1.msra.mxu0 0.0
      %117 = vmatprep.subr.mxu0 0.0
      %118 = vmatpush1.msra.mxu0 0.0
      %119 = vmatprep.subr.mxu0 0.0
      %120 = vmatpush1.msra.mxu0 0.0
      %121 = vmatprep.subr.mxu0 0.0
      %122 = vmatpush1.msra.mxu0 0.0
      %123 = vmatprep.subr.mxu0 0.0
      %124 = vmatpush1.msra.mxu0 0.0
      %125 = vmatprep.subr.mxu0 0.0
      %126 = vmatpush1.msra.mxu0 0.0
      %127 = vmatprep.subr.mxu0 0.0
      %128 = vmatpush1.msra.mxu0 0.0
      %129 = vmatprep.subr.mxu0 0.0
      %130 = vmatpush1.msra.mxu0 0.0
      %131 = vmatprep.subr.mxu0 0.0
      %132 = vmatpush1.msra.mxu0 0.0
      %133 = vmatprep.subr.mxu0 0.0
      %134 = vmatpush1.msra.mxu0 0.0
      %135 = vmatprep.subr.mxu0 0.0
      %136 = vmatpush1.msra.mxu0 0.0
      %137 = vmatprep.subr.mxu0 0.0
      %138 = vmatpush1.msra.mxu0 0.0
      %139 = vmatprep.mubr.f32.mxu0 0.0
      %140 = vmatmul.mubr.f32.gmra.mrb[0].mxu0 %v69
      %v141 = vpop.f32.mrb[0].mxu0
      %v142 = vadd.f32 0.0, %v141
      %v143 = vpop.f32.mrb[0].mxu0
      %144 = vdwg.mxu0
      %s145 = scalar_lea.vmem %s1, 4
      %v146 = vld [vmem:[%s145] sm:$0x7]
      %v148 = vsel %vm71, %v146, 0
      %150 = vmatprep.subr.mxu0 0.0
      %151 = vmatpush1.msra.mxu0 %v148
      %152 = vmatprep.subr.mxu0 0.0
      %153 = vmatpush1.msra.mxu0 0.0
      %154 = vmatprep.subr.mxu0 0.0
      %155 = vmatpush1.msra.mxu0 0.0
      %156 = vmatprep.subr.mxu0 0.0
      %157 = vmatpush1.msra.mxu0 0.0
      %158 = vmatprep.subr.mxu0 0.0
      %159 = vmatpush1.msra.mxu0 0.0
      %160 = vmatprep.subr.mxu0 0.0
      %161 = vmatpush1.msra.mxu0 0.0
      %162 = vmatprep.subr.mxu0 0.0
      %163 = vmatpush1.msra.mxu0 0.0
      %164 = vmatprep.subr.mxu0 0.0
      %165 = vmatpush1.msra.mxu0 0.0
      %166 = vmatprep.subr.mxu0 0.0
      %167 = vmatpush1.msra.mxu0 0.0
      %168 = vmatprep.subr.mxu0 0.0
      %169 = vmatpush1.msra.mxu0 0.0
      %170 = vmatprep.subr.mxu0 0.0
      %171 = vmatpush1.msra.mxu0 0.0
      %172 = vmatprep.subr.mxu0 0.0
      %173 = vmatpush1.msra.mxu0 0.0
      %174 = vmatprep.subr.mxu0 0.0
      %175 = vmatpush1.msra.mxu0 0.0
      %176 = vmatprep.subr.mxu0 0.0
      %177 = vmatpush1.msra.mxu0 0.0
      %178 = vmatprep.subr.mxu0 0.0
      %179 = vmatpush1.msra.mxu0 0.0
      %180 = vmatprep.subr.mxu0 0.0
      %181 = vmatpush1.msra.mxu0 0.0
      %182 = vmatprep.subr.mxu0 0.0
      %183 = vmatpush1.msra.mxu0 0.0
      %184 = vmatprep.subr.mxu0 0.0
      %185 = vmatpush1.msra.mxu0 0.0
      %186 = vmatprep.subr.mxu0 0.0
      %187 = vmatpush1.msra.mxu0 0.0
      %188 = vmatprep.subr.mxu0 0.0
      %189 = vmatpush1.msra.mxu0 0.0
      %190 = vmatprep.subr.mxu0 0.0
      %191 = vmatpush1.msra.mxu0 0.0
      %192 = vmatprep.subr.mxu0 0.0
      %193 = vmatpush1.msra.mxu0 0.0
      %194 = vmatprep.subr.mxu0 0.0
      %195 = vmatpush1.msra.mxu0 0.0
      %196 = vmatprep.subr.mxu0 0.0
      %197 = vmatpush1.msra.mxu0 0.0
      %198 = vmatprep.subr.mxu0 0.0
      %199 = vmatpush1.msra.mxu0 0.0
      %200 = vmatprep.subr.mxu0 0.0
      %201 = vmatpush1.msra.mxu0 0.0
      %202 = vmatprep.subr.mxu0 0.0
      %203 = vmatpush1.msra.mxu0 0.0
      %204 = vmatprep.subr.mxu0 0.0
      %205 = vmatpush1.msra.mxu0 0.0
      %206 = vmatprep.subr.mxu0 0.0
      %207 = vmatpush1.msra.mxu0 0.0
      %208 = vmatprep.subr.mxu0 0.0
      %209 = vmatpush1.msra.mxu0 0.0
      %210 = vmatprep.subr.mxu0 0.0
      %211 = vmatpush1.msra.mxu0 0.0
      %212 = vmatprep.subr.mxu0 0.0
      %213 = vmatpush1.msra.mxu0 0.0
      %214 = vmatprep.mubr.f32.mxu0 0.0
      %215 = vmatmul.mubr.f32.gmra.mrb[0].mxu0 %v69
      %v216 = vpop.f32.mrb[0].mxu0
      %v217 = vadd.f32 0.0, %v216
      %v218 = vpop.f32.mrb[0].mxu0
      %219 = vdwg.mxu0
      %v220 = vlaneseq
      %v221 = vshrl.u32 %v220, 7
      %vm222 = vcmp.lt.s32.totalorder %v221, 1
      %v223 = vsel %vm222, 1, 0
      %v224 = vcvt.s32.f32 %v223
      %v225 = vsub.f32 1.0, %v224
      %v227 = vrot.slane %v217, 6
      %vm229 = vcmask 1040384
      %v230 = vsel %vm229, %v142, %v227
      %v231 = vmul.f32 %v54, %v224
      %v232 = vmul.f32 %v54, %v225
      %234 = vrot.lane.b32.xlu0 %v231, 113
      %v235 = vpop.permute.xlu0 %234
      %238 = vrot.lane.b32.xlu0 %v232, 118
      %v239 = vpop.permute.xlu0 %238
      %vm241 = vcmask 39936
      %v242 = vsel %vm241, %v235, %v239
      %vm243 = vcmask 80896
      %v245 = vsel %vm243, %v242, 0
      %vm247 = vcmask 1041408
      %v249 = vsel %vm247, %v64, 0
      %251 = vmatprep.subr.mxu0 0.0
      %252 = vmatpush1.msra.mxu0 %v63
      %253 = vmatprep.subr.mxu0 0.0
      %254 = vmatpush1.msra.mxu0 %v249
      %255 = vmatprep.subr.mxu0 0.0
      %256 = vmatpush1.msra.mxu0 0.0
      %257 = vmatprep.subr.mxu0 0.0
      %258 = vmatpush1.msra.mxu0 0.0
      %259 = vmatprep.subr.mxu0 0.0
      %260 = vmatpush1.msra.mxu0 0.0
      %261 = vmatprep.subr.mxu0 0.0
      %262 = vmatpush1.msra.mxu0 0.0
      %263 = vmatprep.subr.mxu0 0.0
      %264 = vmatpush1.msra.mxu0 0.0
      %265 = vmatprep.subr.mxu0 0.0
      %266 = vmatpush1.msra.mxu0 0.0
      %267 = vmatprep.subr.mxu0 0.0
      %268 = vmatpush1.msra.mxu0 0.0
      %269 = vmatprep.subr.mxu0 0.0
      %270 = vmatpush1.msra.mxu0 0.0
      %271 = vmatprep.subr.mxu0 0.0
      %272 = vmatpush1.msra.mxu0 0.0
      %273 = vmatprep.subr.mxu0 0.0
      %274 = vmatpush1.msra.mxu0 0.0
      %275 = vmatprep.subr.mxu0 0.0
      %276 = vmatpush1.msra.mxu0 0.0
      %277 = vmatprep.subr.mxu0 0.0
      %278 = vmatpush1.msra.mxu0 0.0
      %279 = vmatprep.subr.mxu0 0.0
      %280 = vmatpush1.msra.mxu0 0.0
      %281 = vmatprep.subr.mxu0 0.0
      %282 = vmatpush1.msra.mxu0 0.0
      %283 = vmatprep.subr.mxu0 0.0
      %284 = vmatpush1.msra.mxu0 0.0
      %285 = vmatprep.subr.mxu0 0.0
      %286 = vmatpush1.msra.mxu0 0.0
      %287 = vmatprep.subr.mxu0 0.0
      %288 = vmatpush1.msra.mxu0 0.0
      %289 = vmatprep.subr.mxu0 0.0
      %290 = vmatpush1.msra.mxu0 0.0
      %291 = vmatprep.subr.mxu0 0.0
      %292 = vmatpush1.msra.mxu0 0.0
      %293 = vmatprep.subr.mxu0 0.0
      %294 = vmatpush1.msra.mxu0 0.0
      %295 = vmatprep.subr.mxu0 0.0
      %296 = vmatpush1.msra.mxu0 0.0
      %297 = vmatprep.subr.mxu0 0.0
      %298 = vmatpush1.msra.mxu0 0.0
      %299 = vmatprep.subr.mxu0 0.0
      %300 = vmatpush1.msra.mxu0 0.0
      %301 = vmatprep.subr.mxu0 0.0
      %302 = vmatpush1.msra.mxu0 0.0
      %303 = vmatprep.subr.mxu0 0.0
      %304 = vmatpush1.msra.mxu0 0.0
      %305 = vmatprep.subr.mxu0 0.0
      %306 = vmatpush1.msra.mxu0 0.0
      %307 = vmatprep.subr.mxu0 0.0
      %308 = vmatpush1.msra.mxu0 0.0
      %309 = vmatprep.subr.mxu0 0.0
      %310 = vmatpush1.msra.mxu0 0.0
      %311 = vmatprep.subr.mxu0 0.0
      %312 = vmatpush1.msra.mxu0 0.0
      %313 = vmatprep.subr.mxu0 0.0
      %314 = vmatpush1.msra.mxu0 0.0
      %315 = vmatprep.mubr.f32.mxu0 0.0
      %316 = vmatmul.mubr.f32.gmra.mrb[0].mxu0 %v245
      %v317 = vpop.f32.mrb[0].mxu0
      %v318 = vadd.f32 0.0, %v317
      %v319 = vpop.f32.mrb[0].mxu0
      %320 = vdwg.mxu0
      %v321 = vadd.f32 %v230, %v318
      %v322 = vadd.f32 %v321, %v65
      %v323 = vmul.f32 %v322, 0.5
      %v324 = vtanh.pop %v323
      %v325 = vmul.f32 %v324, 0.5
      %v326 = vadd.f32 %v325, 0.5
      %v327 = vtanh.pop %v322
      %v328 = vmul.f32 %v326, %v55
      %330 = vrot.lane.b32.xlu0 %v327, 118
      %v331 = vpop.permute.xlu0 %330
      %v333 = vmul.f32 %v326, %v331
      %335 = vrot.lane.b32.xlu0 %v333, 5
      %v336 = vpop.permute.xlu0 %335
      %v338 = vadd.f32 %v328, %v336
      %v339 = vtanh.pop %v338
      %341 = vrot.lane.b32.xlu0 %v339, 10
      %v342 = vpop.permute.xlu0 %341
      %v344 = vmul.f32 %v326, %v342
      %v346 = vrot.slane %v142, 1
      %v348 = vrot.slane %v217, 5
      %v350 = vsel %vm229, %v346, %v348
      %v351 = vmul.f32 %v344, %v224
      %v352 = vmul.f32 %v344, %v225
      %354 = vrot.lane.b32.xlu0 %v351, 113
      %v355 = vpop.permute.xlu0 %354
      %358 = vrot.lane.b32.xlu0 %v352, 118
      %v359 = vpop.permute.xlu0 %358
      %v361 = vsel %vm241, %v355, %v359
      %v363 = vsel %vm243, %v361, 0
      %365 = vmatprep.subr.mxu0 0.0
      %366 = vmatpush1.msra.mxu0 %v63
      %367 = vmatprep.subr.mxu0 0.0
      %368 = vmatpush1.msra.mxu0 %v249
      %369 = vmatprep.subr.mxu0 0.0
      %370 = vmatpush1.msra.mxu0 0.0
      %371 = vmatprep.subr.mxu0 0.0
      %372 = vmatpush1.msra.mxu0 0.0
      %373 = vmatprep.subr.mxu0 0.0
      %374 = vmatpush1.msra.mxu0 0.0
      %375 = vmatprep.subr.mxu0 0.0
      %376 = vmatpush1.msra.mxu0 0.0
      %377 = vmatprep.subr.mxu0 0.0
      %378 = vmatpush1.msra.mxu0 0.0
      %379 = vmatprep.subr.mxu0 0.0
      %380 = vmatpush1.msra.mxu0 0.0
      %381 = vmatprep.subr.mxu0 0.0
      %382 = vmatpush1.msra.mxu0 0.0
      %383 = vmatprep.subr.mxu0 0.0
      %384 = vmatpush1.msra.mxu0 0.0
      %385 = vmatprep.subr.mxu0 0.0
      %386 = vmatpush1.msra.mxu0 0.0
      %387 = vmatprep.subr.mxu0 0.0
      %388 = vmatpush1.msra.mxu0 0.0
      %389 = vmatprep.subr.mxu0 0.0
      %390 = vmatpush1.msra.mxu0 0.0
      %391 = vmatprep.subr.mxu0 0.0
      %392 = vmatpush1.msra.mxu0 0.0
      %393 = vmatprep.subr.mxu0 0.0
      %394 = vmatpush1.msra.mxu0 0.0
      %395 = vmatprep.subr.mxu0 0.0
      %396 = vmatpush1.msra.mxu0 0.0
      %397 = vmatprep.subr.mxu0 0.0
      %398 = vmatpush1.msra.mxu0 0.0
      %399 = vmatprep.subr.mxu0 0.0
      %400 = vmatpush1.msra.mxu0 0.0
      %401 = vmatprep.subr.mxu0 0.0
      %402 = vmatpush1.msra.mxu0 0.0
      %403 = vmatprep.subr.mxu0 0.0
      %404 = vmatpush1.msra.mxu0 0.0
      %405 = vmatprep.subr.mxu0 0.0
      %406 = vmatpush1.msra.mxu0 0.0
      %407 = vmatprep.subr.mxu0 0.0
      %408 = vmatpush1.msra.mxu0 0.0
      %409 = vmatprep.subr.mxu0 0.0
      %410 = vmatpush1.msra.mxu0 0.0
      %411 = vmatprep.subr.mxu0 0.0
      %412 = vmatpush1.msra.mxu0 0.0
      %413 = vmatprep.subr.mxu0 0.0
      %414 = vmatpush1.msra.mxu0 0.0
      %415 = vmatprep.subr.mxu0 0.0
      %416 = vmatpush1.msra.mxu0 0.0
      %417 = vmatprep.subr.mxu0 0.0
      %418 = vmatpush1.msra.mxu0 0.0
      %419 = vmatprep.subr.mxu0 0.0
      %420 = vmatpush1.msra.mxu0 0.0
      %421 = vmatprep.subr.mxu0 0.0
      %422 = vmatpush1.msra.mxu0 0.0
      %423 = vmatprep.subr.mxu0 0.0
      %424 = vmatpush1.msra.mxu0 0.0
      %425 = vmatprep.subr.mxu0 0.0
      %426 = vmatpush1.msra.mxu0 0.0
      %427 = vmatprep.subr.mxu0 0.0
      %428 = vmatpush1.msra.mxu0 0.0
      %429 = vmatprep.mubr.f32.mxu0 0.0
      %430 = vmatmul.mubr.f32.gmra.mrb[0].mxu0 %v363
      %v431 = vpop.f32.mrb[0].mxu0
      %v432 = vadd.f32 0.0, %v431
      %v433 = vpop.f32.mrb[0].mxu0
      %434 = vdwg.mxu0
      %v435 = vadd.f32 %v350, %v432
      %v436 = vadd.f32 %v435, %v65
      %v437 = vmul.f32 %v436, 0.5
      %v438 = vtanh.pop %v437
      %v439 = vmul.f32 %v438, 0.5
      %v440 = vadd.f32 %v439, 0.5
      %v441 = vtanh.pop %v436
      %v442 = vmul.f32 %v440, %v338
      %444 = vrot.lane.b32.xlu0 %v441, 118
      %v445 = vpop.permute.xlu0 %444
      %v447 = vmul.f32 %v440, %v445
      %449 = vrot.lane.b32.xlu0 %v447, 5
      %v450 = vpop.permute.xlu0 %449
      %v452 = vadd.f32 %v442, %v450
      %v453 = vtanh.pop %v452
      %455 = vrot.lane.b32.xlu0 %v453, 10
      %v456 = vpop.permute.xlu0 %455
      %v458 = vmul.f32 %v440, %v456
      %v459 = vrot.slane %v142, 2
      %v461 = vrot.slane %v217, 4
      %v463 = vsel %vm229, %v459, %v461
      %v464 = vmul.f32 %v458, %v224
      %v465 = vmul.f32 %v458, %v225
      %467 = vrot.lane.b32.xlu0 %v464, 113
      %v468 = vpop.permute.xlu0 %467
      %471 = vrot.lane.b32.xlu0 %v465, 118
      %v472 = vpop.permute.xlu0 %471
      %v474 = vsel %vm241, %v468, %v472
      %v476 = vsel %vm243, %v474, 0
      %478 = vmatprep.subr.mxu0 0.0
      %479 = vmatpush1.msra.mxu0 %v63
      %480 = vmatprep.subr.mxu0 0.0
      %481 = vmatpush1.msra.mxu0 %v249
      %482 = vmatprep.subr.mxu0 0.0
      %483 = vmatpush1.msra.mxu0 0.0
      %484 = vmatprep.subr.mxu0 0.0
      %485 = vmatpush1.msra.mxu0 0.0
      %486 = vmatprep.subr.mxu0 0.0
      %487 = vmatpush1.msra.mxu0 0.0
      %488 = vmatprep.subr.mxu0 0.0
      %489 = vmatpush1.msra.mxu0 0.0
      %490 = vmatprep.subr.mxu0 0.0
      %491 = vmatpush1.msra.mxu0 0.0
      %492 = vmatprep.subr.mxu0 0.0
      %493 = vmatpush1.msra.mxu0 0.0
      %494 = vmatprep.subr.mxu0 0.0
      %495 = vmatpush1.msra.mxu0 0.0
      %496 = vmatprep.subr.mxu0 0.0
      %497 = vmatpush1.msra.mxu0 0.0
      %498 = vmatprep.subr.mxu0 0.0
      %499 = vmatpush1.msra.mxu0 0.0
      %500 = vmatprep.subr.mxu0 0.0
      %501 = vmatpush1.msra.mxu0 0.0
      %502 = vmatprep.subr.mxu0 0.0
      %503 = vmatpush1.msra.mxu0 0.0
      %504 = vmatprep.subr.mxu0 0.0
      %505 = vmatpush1.msra.mxu0 0.0
      %506 = vmatprep.subr.mxu0 0.0
      %507 = vmatpush1.msra.mxu0 0.0
      %508 = vmatprep.subr.mxu0 0.0
      %509 = vmatpush1.msra.mxu0 0.0
      %510 = vmatprep.subr.mxu0 0.0
      %511 = vmatpush1.msra.mxu0 0.0
      %512 = vmatprep.subr.mxu0 0.0
      %513 = vmatpush1.msra.mxu0 0.0
      %514 = vmatprep.subr.mxu0 0.0
      %515 = vmatpush1.msra.mxu0 0.0
      %516 = vmatprep.subr.mxu0 0.0
      %517 = vmatpush1.msra.mxu0 0.0
      %518 = vmatprep.subr.mxu0 0.0
      %519 = vmatpush1.msra.mxu0 0.0
      %520 = vmatprep.subr.mxu0 0.0
      %521 = vmatpush1.msra.mxu0 0.0
      %522 = vmatprep.subr.mxu0 0.0
      %523 = vmatpush1.msra.mxu0 0.0
      %524 = vmatprep.subr.mxu0 0.0
      %525 = vmatpush1.msra.mxu0 0.0
      %526 = vmatprep.subr.mxu0 0.0
      %527 = vmatpush1.msra.mxu0 0.0
      %528 = vmatprep.subr.mxu0 0.0
      %529 = vmatpush1.msra.mxu0 0.0
      %530 = vmatprep.subr.mxu0 0.0
      %531 = vmatpush1.msra.mxu0 0.0
      %532 = vmatprep.subr.mxu0 0.0
      %533 = vmatpush1.msra.mxu0 0.0
      %534 = vmatprep.subr.mxu0 0.0
      %535 = vmatpush1.msra.mxu0 0.0
      %536 = vmatprep.subr.mxu0 0.0
      %537 = vmatpush1.msra.mxu0 0.0
      %538 = vmatprep.subr.mxu0 0.0
      %539 = vmatpush1.msra.mxu0 0.0
      %540 = vmatprep.subr.mxu0 0.0
      %541 = vmatpush1.msra.mxu0 0.0
      %542 = vmatprep.mubr.f32.mxu0 0.0
      %543 = vmatmul.mubr.f32.gmra.mrb[0].mxu0 %v476
      %v544 = vpop.f32.mrb[0].mxu0
      %v545 = vadd.f32 0.0, %v544
      %v546 = vpop.f32.mrb[0].mxu0
      %547 = vdwg.mxu0
      %v548 = vadd.f32 %v463, %v545
      %v549 = vadd.f32 %v548, %v65
      %v550 = vmul.f32 %v549, 0.5
      %v551 = vtanh.pop %v550
      %v552 = vmul.f32 %v551, 0.5
      %v553 = vadd.f32 %v552, 0.5
      %v554 = vtanh.pop %v549
      %v555 = vmul.f32 %v553, %v452
      %557 = vrot.lane.b32.xlu0 %v554, 118
      %v558 = vpop.permute.xlu0 %557
      %v560 = vmul.f32 %v553, %v558
      %562 = vrot.lane.b32.xlu0 %v560, 5
      %v563 = vpop.permute.xlu0 %562
      %v565 = vadd.f32 %v555, %v563
      %v566 = vtanh.pop %v565
      %568 = vrot.lane.b32.xlu0 %v566, 10
      %v569 = vpop.permute.xlu0 %568
      %v571 = vmul.f32 %v553, %v569
      %v572 = vrot.slane %v142, 3
      %v574 = vrot.slane %v217, 3
      %v576 = vsel %vm229, %v572, %v574
      %v577 = vmul.f32 %v571, %v224
      %v578 = vmul.f32 %v571, %v225
      %580 = vrot.lane.b32.xlu0 %v577, 113
      %v581 = vpop.permute.xlu0 %580
      %584 = vrot.lane.b32.xlu0 %v578, 118
      %v585 = vpop.permute.xlu0 %584
      %v587 = vsel %vm241, %v581, %v585
      %v589 = vsel %vm243, %v587, 0
      %591 = vmatprep.subr.mxu0 0.0
      %592 = vmatpush1.msra.mxu0 %v63
      %593 = vmatprep.subr.mxu0 0.0
      %594 = vmatpush1.msra.mxu0 %v249
      %595 = vmatprep.subr.mxu0 0.0
      %596 = vmatpush1.msra.mxu0 0.0
      %597 = vmatprep.subr.mxu0 0.0
      %598 = vmatpush1.msra.mxu0 0.0
      %599 = vmatprep.subr.mxu0 0.0
      %600 = vmatpush1.msra.mxu0 0.0
      %601 = vmatprep.subr.mxu0 0.0
      %602 = vmatpush1.msra.mxu0 0.0
      %603 = vmatprep.subr.mxu0 0.0
      %604 = vmatpush1.msra.mxu0 0.0
      %605 = vmatprep.subr.mxu0 0.0
      %606 = vmatpush1.msra.mxu0 0.0
      %607 = vmatprep.subr.mxu0 0.0
      %608 = vmatpush1.msra.mxu0 0.0
      %609 = vmatprep.subr.mxu0 0.0
      %610 = vmatpush1.msra.mxu0 0.0
      %611 = vmatprep.subr.mxu0 0.0
      %612 = vmatpush1.msra.mxu0 0.0
      %613 = vmatprep.subr.mxu0 0.0
      %614 = vmatpush1.msra.mxu0 0.0
      %615 = vmatprep.subr.mxu0 0.0
      %616 = vmatpush1.msra.mxu0 0.0
      %617 = vmatprep.subr.mxu0 0.0
      %618 = vmatpush1.msra.mxu0 0.0
      %619 = vmatprep.subr.mxu0 0.0
      %620 = vmatpush1.msra.mxu0 0.0
      %621 = vmatprep.subr.mxu0 0.0
      %622 = vmatpush1.msra.mxu0 0.0
      %623 = vmatprep.subr.mxu0 0.0
      %624 = vmatpush1.msra.mxu0 0.0
      %625 = vmatprep.subr.mxu0 0.0
      %626 = vmatpush1.msra.mxu0 0.0
      %627 = vmatprep.subr.mxu0 0.0
      %628 = vmatpush1.msra.mxu0 0.0
      %629 = vmatprep.subr.mxu0 0.0
      %630 = vmatpush1.msra.mxu0 0.0
      %631 = vmatprep.subr.mxu0 0.0
      %632 = vmatpush1.msra.mxu0 0.0
      %633 = vmatprep.subr.mxu0 0.0
      %634 = vmatpush1.msra.mxu0 0.0
      %635 = vmatprep.subr.mxu0 0.0
      %636 = vmatpush1.msra.mxu0 0.0
      %637 = vmatprep.subr.mxu0 0.0
      %638 = vmatpush1.msra.mxu0 0.0
      %639 = vmatprep.subr.mxu0 0.0
      %640 = vmatpush1.msra.mxu0 0.0
      %641 = vmatprep.subr.mxu0 0.0
      %642 = vmatpush1.msra.mxu0 0.0
      %643 = vmatprep.subr.mxu0 0.0
      %644 = vmatpush1.msra.mxu0 0.0
      %645 = vmatprep.subr.mxu0 0.0
      %646 = vmatpush1.msra.mxu0 0.0
      %647 = vmatprep.subr.mxu0 0.0
      %648 = vmatpush1.msra.mxu0 0.0
      %649 = vmatprep.subr.mxu0 0.0
      %650 = vmatpush1.msra.mxu0 0.0
      %651 = vmatprep.subr.mxu0 0.0
      %652 = vmatpush1.msra.mxu0 0.0
      %653 = vmatprep.subr.mxu0 0.0
      %654 = vmatpush1.msra.mxu0 0.0
      %655 = vmatprep.mubr.f32.mxu0 0.0
      %656 = vmatmul.mubr.f32.gmra.mrb[0].mxu0 %v589
      %v657 = vpop.f32.mrb[0].mxu0
      %v658 = vadd.f32 0.0, %v657
      %v659 = vpop.f32.mrb[0].mxu0
      %660 = vdwg.mxu0
      %v661 = vadd.f32 %v576, %v658
      %v662 = vadd.f32 %v661, %v65
      %v663 = vmul.f32 %v662, 0.5
      %v664 = vtanh.pop %v663
      %v665 = vmul.f32 %v664, 0.5
      %v666 = vadd.f32 %v665, 0.5
      %v667 = vtanh.pop %v662
      %v668 = vmul.f32 %v666, %v565
      %670 = vrot.lane.b32.xlu0 %v667, 118
      %v671 = vpop.permute.xlu0 %670
      %v673 = vmul.f32 %v666, %v671
      %675 = vrot.lane.b32.xlu0 %v673, 5
      %v676 = vpop.permute.xlu0 %675
      %v678 = vadd.f32 %v668, %v676
      %v679 = vtanh.pop %v678
      %681 = vrot.lane.b32.xlu0 %v679, 10
      %v682 = vpop.permute.xlu0 %681
      %v684 = vmul.f32 %v666, %v682
      %v685 = vrot.slane %v142, 4
      %v687 = vrot.slane %v217, 2
      %v689 = vsel %vm229, %v685, %v687
      %v690 = vmul.f32 %v684, %v224
      %v691 = vmul.f32 %v684, %v225
      %693 = vrot.lane.b32.xlu0 %v690, 113
      %v694 = vpop.permute.xlu0 %693
      %697 = vrot.lane.b32.xlu0 %v691, 118
      %v698 = vpop.permute.xlu0 %697
      %v700 = vsel %vm241, %v694, %v698
      %v702 = vsel %vm243, %v700, 0
      %704 = vmatprep.subr.mxu0 0.0
      %705 = vmatpush1.msra.mxu0 %v63
      %706 = vmatprep.subr.mxu0 0.0
      %707 = vmatpush1.msra.mxu0 %v249
      %708 = vmatprep.subr.mxu0 0.0
      %709 = vmatpush1.msra.mxu0 0.0
      %710 = vmatprep.subr.mxu0 0.0
      %711 = vmatpush1.msra.mxu0 0.0
      %712 = vmatprep.subr.mxu0 0.0
      %713 = vmatpush1.msra.mxu0 0.0
      %714 = vmatprep.subr.mxu0 0.0
      %715 = vmatpush1.msra.mxu0 0.0
      %716 = vmatprep.subr.mxu0 0.0
      %717 = vmatpush1.msra.mxu0 0.0
      %718 = vmatprep.subr.mxu0 0.0
      %719 = vmatpush1.msra.mxu0 0.0
      %720 = vmatprep.subr.mxu0 0.0
      %721 = vmatpush1.msra.mxu0 0.0
      %722 = vmatprep.subr.mxu0 0.0
      %723 = vmatpush1.msra.mxu0 0.0
      %724 = vmatprep.subr.mxu0 0.0
      %725 = vmatpush1.msra.mxu0 0.0
      %726 = vmatprep.subr.mxu0 0.0
      %727 = vmatpush1.msra.mxu0 0.0
      %728 = vmatprep.subr.mxu0 0.0
      %729 = vmatpush1.msra.mxu0 0.0
      %730 = vmatprep.subr.mxu0 0.0
      %731 = vmatpush1.msra.mxu0 0.0
      %732 = vmatprep.subr.mxu0 0.0
      %733 = vmatpush1.msra.mxu0 0.0
      %734 = vmatprep.subr.mxu0 0.0
      %735 = vmatpush1.msra.mxu0 0.0
      %736 = vmatprep.subr.mxu0 0.0
      %737 = vmatpush1.msra.mxu0 0.0
      %738 = vmatprep.subr.mxu0 0.0
      %739 = vmatpush1.msra.mxu0 0.0
      %740 = vmatprep.subr.mxu0 0.0
      %741 = vmatpush1.msra.mxu0 0.0
      %742 = vmatprep.subr.mxu0 0.0
      %743 = vmatpush1.msra.mxu0 0.0
      %744 = vmatprep.subr.mxu0 0.0
      %745 = vmatpush1.msra.mxu0 0.0
      %746 = vmatprep.subr.mxu0 0.0
      %747 = vmatpush1.msra.mxu0 0.0
      %748 = vmatprep.subr.mxu0 0.0
      %749 = vmatpush1.msra.mxu0 0.0
      %750 = vmatprep.subr.mxu0 0.0
      %751 = vmatpush1.msra.mxu0 0.0
      %752 = vmatprep.subr.mxu0 0.0
      %753 = vmatpush1.msra.mxu0 0.0
      %754 = vmatprep.subr.mxu0 0.0
      %755 = vmatpush1.msra.mxu0 0.0
      %756 = vmatprep.subr.mxu0 0.0
      %757 = vmatpush1.msra.mxu0 0.0
      %758 = vmatprep.subr.mxu0 0.0
      %759 = vmatpush1.msra.mxu0 0.0
      %760 = vmatprep.subr.mxu0 0.0
      %761 = vmatpush1.msra.mxu0 0.0
      %762 = vmatprep.subr.mxu0 0.0
      %763 = vmatpush1.msra.mxu0 0.0
      %764 = vmatprep.subr.mxu0 0.0
      %765 = vmatpush1.msra.mxu0 0.0
      %766 = vmatprep.subr.mxu0 0.0
      %767 = vmatpush1.msra.mxu0 0.0
      %768 = vmatprep.mubr.f32.mxu0 0.0
      %769 = vmatmul.mubr.f32.gmra.mrb[0].mxu0 %v702
      %v770 = vpop.f32.mrb[0].mxu0
      %v771 = vadd.f32 0.0, %v770
      %v772 = vpop.f32.mrb[0].mxu0
      %773 = vdwg.mxu0
      %v774 = vadd.f32 %v689, %v771
      %v775 = vadd.f32 %v774, %v65
      %v776 = vmul.f32 %v775, 0.5
      %v777 = vtanh.pop %v776
      %v778 = vmul.f32 %v777, 0.5
      %v779 = vadd.f32 %v778, 0.5
      %v780 = vtanh.pop %v775
      %v781 = vmul.f32 %v779, %v678
      %783 = vrot.lane.b32.xlu0 %v780, 118
      %v784 = vpop.permute.xlu0 %783
      %v786 = vmul.f32 %v779, %v784
      %788 = vrot.lane.b32.xlu0 %v786, 5
      %v789 = vpop.permute.xlu0 %788
      %v791 = vadd.f32 %v781, %v789
      %v792 = vtanh.pop %v791
      %794 = vrot.lane.b32.xlu0 %v792, 10
      %v795 = vpop.permute.xlu0 %794
      %v797 = vmul.f32 %v779, %v795
      %v798 = vrot.slane %v142, 5
      %v800 = vrot.slane %v217, 1
      %v802 = vsel %vm229, %v798, %v800
      %v803 = vmul.f32 %v797, %v224
      %v804 = vmul.f32 %v797, %v225
      %806 = vrot.lane.b32.xlu0 %v803, 113
      %v807 = vpop.permute.xlu0 %806
      %810 = vrot.lane.b32.xlu0 %v804, 118
      %v811 = vpop.permute.xlu0 %810
      %v813 = vsel %vm241, %v807, %v811
      %v815 = vsel %vm243, %v813, 0
      %817 = vmatprep.subr.mxu0 0.0
      %818 = vmatpush1.msra.mxu0 %v63
      %819 = vmatprep.subr.mxu0 0.0
      %820 = vmatpush1.msra.mxu0 %v249
      %821 = vmatprep.subr.mxu0 0.0
      %822 = vmatpush1.msra.mxu0 0.0
      %823 = vmatprep.subr.mxu0 0.0
      %824 = vmatpush1.msra.mxu0 0.0
      %825 = vmatprep.subr.mxu0 0.0
      %826 = vmatpush1.msra.mxu0 0.0
      %827 = vmatprep.subr.mxu0 0.0
      %828 = vmatpush1.msra.mxu0 0.0
      %829 = vmatprep.subr.mxu0 0.0
      %830 = vmatpush1.msra.mxu0 0.0
      %831 = vmatprep.subr.mxu0 0.0
      %832 = vmatpush1.msra.mxu0 0.0
      %833 = vmatprep.subr.mxu0 0.0
      %834 = vmatpush1.msra.mxu0 0.0
      %835 = vmatprep.subr.mxu0 0.0
      %836 = vmatpush1.msra.mxu0 0.0
      %837 = vmatprep.subr.mxu0 0.0
      %838 = vmatpush1.msra.mxu0 0.0
      %839 = vmatprep.subr.mxu0 0.0
      %840 = vmatpush1.msra.mxu0 0.0
      %841 = vmatprep.subr.mxu0 0.0
      %842 = vmatpush1.msra.mxu0 0.0
      %843 = vmatprep.subr.mxu0 0.0
      %844 = vmatpush1.msra.mxu0 0.0
      %845 = vmatprep.subr.mxu0 0.0
      %846 = vmatpush1.msra.mxu0 0.0
      %847 = vmatprep.subr.mxu0 0.0
      %848 = vmatpush1.msra.mxu0 0.0
      %849 = vmatprep.subr.mxu0 0.0
      %850 = vmatpush1.msra.mxu0 0.0
      %851 = vmatprep.subr.mxu0 0.0
      %852 = vmatpush1.msra.mxu0 0.0
      %853 = vmatprep.subr.mxu0 0.0
      %854 = vmatpush1.msra.mxu0 0.0
      %855 = vmatprep.subr.mxu0 0.0
      %856 = vmatpush1.msra.mxu0 0.0
      %857 = vmatprep.subr.mxu0 0.0
      %858 = vmatpush1.msra.mxu0 0.0
      %859 = vmatprep.subr.mxu0 0.0
      %860 = vmatpush1.msra.mxu0 0.0
      %861 = vmatprep.subr.mxu0 0.0
      %862 = vmatpush1.msra.mxu0 0.0
      %863 = vmatprep.subr.mxu0 0.0
      %864 = vmatpush1.msra.mxu0 0.0
      %865 = vmatprep.subr.mxu0 0.0
      %866 = vmatpush1.msra.mxu0 0.0
      %867 = vmatprep.subr.mxu0 0.0
      %868 = vmatpush1.msra.mxu0 0.0
      %869 = vmatprep.subr.mxu0 0.0
      %870 = vmatpush1.msra.mxu0 0.0
      %871 = vmatprep.subr.mxu0 0.0
      %872 = vmatpush1.msra.mxu0 0.0
      %873 = vmatprep.subr.mxu0 0.0
      %874 = vmatpush1.msra.mxu0 0.0
      %875 = vmatprep.subr.mxu0 0.0
      %876 = vmatpush1.msra.mxu0 0.0
      %877 = vmatprep.subr.mxu0 0.0
      %878 = vmatpush1.msra.mxu0 0.0
      %879 = vmatprep.subr.mxu0 0.0
      %880 = vmatpush1.msra.mxu0 0.0
      %881 = vmatprep.mubr.f32.mxu0 0.0
      %882 = vmatmul.mubr.f32.gmra.mrb[0].mxu0 %v815
      %v883 = vpop.f32.mrb[0].mxu0
      %v884 = vadd.f32 0.0, %v883
      %v885 = vpop.f32.mrb[0].mxu0
      %886 = vdwg.mxu0
      %v887 = vadd.f32 %v802, %v884
      %v888 = vadd.f32 %v887, %v65
      %v889 = vmul.f32 %v888, 0.5
      %v890 = vtanh.pop %v889
      %v891 = vmul.f32 %v890, 0.5
      %v892 = vadd.f32 %v891, 0.5
      %v893 = vtanh.pop %v888
      %v894 = vmul.f32 %v892, %v791
      %896 = vrot.lane.b32.xlu0 %v893, 118
      %v897 = vpop.permute.xlu0 %896
      %v899 = vmul.f32 %v892, %v897
      %901 = vrot.lane.b32.xlu0 %v899, 5
      %v902 = vpop.permute.xlu0 %901
      %v904 = vadd.f32 %v894, %v902
      %v905 = vtanh.pop %v904
      %907 = vrot.lane.b32.xlu0 %v905, 10
      %v908 = vpop.permute.xlu0 %907
      %v910 = vmul.f32 %v892, %v908
      %v911 = vrot.slane %v142, 6
      %v913 = vsel %vm229, %v911, %v217
      %v914 = vmul.f32 %v910, %v224
      %v915 = vmul.f32 %v910, %v225
      %917 = vrot.lane.b32.xlu0 %v914, 113
      %v918 = vpop.permute.xlu0 %917
      %921 = vrot.lane.b32.xlu0 %v915, 118
      %v922 = vpop.permute.xlu0 %921
      %v924 = vsel %vm241, %v918, %v922
      %v926 = vsel %vm243, %v924, 0
      %928 = vmatprep.subr.mxu0 0.0
      %929 = vmatpush1.msra.mxu0 %v63
      %930 = vmatprep.subr.mxu0 0.0
      %931 = vmatpush1.msra.mxu0 %v249
      %932 = vmatprep.subr.mxu0 0.0
      %933 = vmatpush1.msra.mxu0 0.0
      %934 = vmatprep.subr.mxu0 0.0
      %935 = vmatpush1.msra.mxu0 0.0
      %936 = vmatprep.subr.mxu0 0.0
      %937 = vmatpush1.msra.mxu0 0.0
      %938 = vmatprep.subr.mxu0 0.0
      %939 = vmatpush1.msra.mxu0 0.0
      %940 = vmatprep.subr.mxu0 0.0
      %941 = vmatpush1.msra.mxu0 0.0
      %942 = vmatprep.subr.mxu0 0.0
      %943 = vmatpush1.msra.mxu0 0.0
      %944 = vmatprep.subr.mxu0 0.0
      %945 = vmatpush1.msra.mxu0 0.0
      %946 = vmatprep.subr.mxu0 0.0
      %947 = vmatpush1.msra.mxu0 0.0
      %948 = vmatprep.subr.mxu0 0.0
      %949 = vmatpush1.msra.mxu0 0.0
      %950 = vmatprep.subr.mxu0 0.0
      %951 = vmatpush1.msra.mxu0 0.0
      %952 = vmatprep.subr.mxu0 0.0
      %953 = vmatpush1.msra.mxu0 0.0
      %954 = vmatprep.subr.mxu0 0.0
      %955 = vmatpush1.msra.mxu0 0.0
      %956 = vmatprep.subr.mxu0 0.0
      %957 = vmatpush1.msra.mxu0 0.0
      %958 = vmatprep.subr.mxu0 0.0
      %959 = vmatpush1.msra.mxu0 0.0
      %960 = vmatprep.subr.mxu0 0.0
      %961 = vmatpush1.msra.mxu0 0.0
      %962 = vmatprep.subr.mxu0 0.0
      %963 = vmatpush1.msra.mxu0 0.0
      %964 = vmatprep.subr.mxu0 0.0
      %965 = vmatpush1.msra.mxu0 0.0
      %966 = vmatprep.subr.mxu0 0.0
      %967 = vmatpush1.msra.mxu0 0.0
      %968 = vmatprep.subr.mxu0 0.0
      %969 = vmatpush1.msra.mxu0 0.0
      %970 = vmatprep.subr.mxu0 0.0
      %971 = vmatpush1.msra.mxu0 0.0
      %972 = vmatprep.subr.mxu0 0.0
      %973 = vmatpush1.msra.mxu0 0.0
      %974 = vmatprep.subr.mxu0 0.0
      %975 = vmatpush1.msra.mxu0 0.0
      %976 = vmatprep.subr.mxu0 0.0
      %977 = vmatpush1.msra.mxu0 0.0
      %978 = vmatprep.subr.mxu0 0.0
      %979 = vmatpush1.msra.mxu0 0.0
      %980 = vmatprep.subr.mxu0 0.0
      %981 = vmatpush1.msra.mxu0 0.0
      %982 = vmatprep.subr.mxu0 0.0
      %983 = vmatpush1.msra.mxu0 0.0
      %984 = vmatprep.subr.mxu0 0.0
      %985 = vmatpush1.msra.mxu0 0.0
      %986 = vmatprep.subr.mxu0 0.0
      %987 = vmatpush1.msra.mxu0 0.0
      %988 = vmatprep.subr.mxu0 0.0
      %989 = vmatpush1.msra.mxu0 0.0
      %990 = vmatprep.subr.mxu0 0.0
      %991 = vmatpush1.msra.mxu0 0.0
      %992 = vmatprep.mubr.f32.mxu0 0.0
      %993 = vmatmul.mubr.f32.gmra.mrb[0].mxu0 %v926
      %v994 = vpop.f32.mrb[0].mxu0
      %v995 = vadd.f32 0.0, %v994
      %v996 = vpop.f32.mrb[0].mxu0
      %997 = vdwg.mxu0
      %v998 = vadd.f32 %v913, %v995
      %v999 = vadd.f32 %v998, %v65
      %v1000 = vmul.f32 %v999, 0.5
      %v1001 = vtanh.pop %v1000
      %v1002 = vmul.f32 %v1001, 0.5
      %v1003 = vadd.f32 %v1002, 0.5
      %v1004 = vtanh.pop %v999
      %v1005 = vmul.f32 %v1003, %v904
      %1007 = vrot.lane.b32.xlu0 %v1004, 118
      %v1008 = vpop.permute.xlu0 %1007
      %v1010 = vmul.f32 %v1003, %v1008
      %1012 = vrot.lane.b32.xlu0 %v1010, 5
      %v1013 = vpop.permute.xlu0 %1012
      %v1015 = vadd.f32 %v1005, %v1013
      %v1016 = vtanh.pop %v1015
      %1018 = vrot.lane.b32.xlu0 %v1016, 10
      %v1019 = vpop.permute.xlu0 %1018
      %v1021 = vmul.f32 %v1003, %v1019
      %v1022 = vrot.slane %v142, 7
      %v1024 = vrot.slane %v217, 7
      %v1026 = vsel %vm229, %v1022, %v1024
      %v1027 = vmul.f32 %v1021, %v224
      %v1028 = vmul.f32 %v1021, %v225
      %1030 = vrot.lane.b32.xlu0 %v1027, 113
      %v1031 = vpop.permute.xlu0 %1030
      %1034 = vrot.lane.b32.xlu0 %v1028, 118
      %v1035 = vpop.permute.xlu0 %1034
      %v1037 = vsel %vm241, %v1031, %v1035
      %v1039 = vsel %vm243, %v1037, 0
      %1041 = vmatprep.subr.mxu0 0.0
      %1042 = vmatpush1.msra.mxu0 %v63
      %1043 = vmatprep.subr.mxu0 0.0
      %1044 = vmatpush1.msra.mxu0 %v249
      %1045 = vmatprep.subr.mxu0 0.0
      %1046 = vmatpush1.msra.mxu0 0.0
      %1047 = vmatprep.subr.mxu0 0.0
      %1048 = vmatpush1.msra.mxu0 0.0
      %1049 = vmatprep.subr.mxu0 0.0
      %1050 = vmatpush1.msra.mxu0 0.0
      %1051 = vmatprep.subr.mxu0 0.0
      %1052 = vmatpush1.msra.mxu0 0.0
      %1053 = vmatprep.subr.mxu0 0.0
      %1054 = vmatpush1.msra.mxu0 0.0
      %1055 = vmatprep.subr.mxu0 0.0
      %1056 = vmatpush1.msra.mxu0 0.0
      %1057 = vmatprep.subr.mxu0 0.0
      %1058 = vmatpush1.msra.mxu0 0.0
      %1059 = vmatprep.subr.mxu0 0.0
      %1060 = vmatpush1.msra.mxu0 0.0
      %1061 = vmatprep.subr.mxu0 0.0
      %1062 = vmatpush1.msra.mxu0 0.0
      %1063 = vmatprep.subr.mxu0 0.0
      %1064 = vmatpush1.msra.mxu0 0.0
      %1065 = vmatprep.subr.mxu0 0.0
      %1066 = vmatpush1.msra.mxu0 0.0
      %1067 = vmatprep.subr.mxu0 0.0
      %1068 = vmatpush1.msra.mxu0 0.0
      %1069 = vmatprep.subr.mxu0 0.0
      %1070 = vmatpush1.msra.mxu0 0.0
      %1071 = vmatprep.subr.mxu0 0.0
      %1072 = vmatpush1.msra.mxu0 0.0
      %1073 = vmatprep.subr.mxu0 0.0
      %1074 = vmatpush1.msra.mxu0 0.0
      %1075 = vmatprep.subr.mxu0 0.0
      %1076 = vmatpush1.msra.mxu0 0.0
      %1077 = vmatprep.subr.mxu0 0.0
      %1078 = vmatpush1.msra.mxu0 0.0
      %1079 = vmatprep.subr.mxu0 0.0
      %1080 = vmatpush1.msra.mxu0 0.0
      %1081 = vmatprep.subr.mxu0 0.0
      %1082 = vmatpush1.msra.mxu0 0.0
      %1083 = vmatprep.subr.mxu0 0.0
      %1084 = vmatpush1.msra.mxu0 0.0
      %1085 = vmatprep.subr.mxu0 0.0
      %1086 = vmatpush1.msra.mxu0 0.0
      %1087 = vmatprep.subr.mxu0 0.0
      %1088 = vmatpush1.msra.mxu0 0.0
      %1089 = vmatprep.subr.mxu0 0.0
      %1090 = vmatpush1.msra.mxu0 0.0
      %1091 = vmatprep.subr.mxu0 0.0
      %1092 = vmatpush1.msra.mxu0 0.0
      %1093 = vmatprep.subr.mxu0 0.0
      %1094 = vmatpush1.msra.mxu0 0.0
      %1095 = vmatprep.subr.mxu0 0.0
      %1096 = vmatpush1.msra.mxu0 0.0
      %1097 = vmatprep.subr.mxu0 0.0
      %1098 = vmatpush1.msra.mxu0 0.0
      %1099 = vmatprep.subr.mxu0 0.0
      %1100 = vmatpush1.msra.mxu0 0.0
      %1101 = vmatprep.subr.mxu0 0.0
      %1102 = vmatpush1.msra.mxu0 0.0
      %1103 = vmatprep.subr.mxu0 0.0
      %1104 = vmatpush1.msra.mxu0 0.0
      %1105 = vmatprep.mubr.f32.mxu0 0.0
      %1106 = vmatmul.mubr.f32.gmra.mrb[0].mxu0 %v1039
      %v1107 = vpop.f32.mrb[0].mxu0
      %v1108 = vadd.f32 0.0, %v1107
      %v1109 = vpop.f32.mrb[0].mxu0
      %1110 = vdwg.mxu0
      %v1111 = vadd.f32 %v1026, %v1108
      %v1112 = vadd.f32 %v1111, %v65
      %v1113 = vmul.f32 %v1112, 0.5
      %v1114 = vtanh.pop %v1113
      %v1115 = vmul.f32 %v1114, 0.5
      %v1116 = vadd.f32 %v1115, 0.5
      %v1117 = vtanh.pop %v1112
      %v1118 = vmul.f32 %v1116, %v1015
      %1120 = vrot.lane.b32.xlu0 %v1117, 118
      %v1121 = vpop.permute.xlu0 %1120
      %v1123 = vmul.f32 %v1116, %v1121
      %1125 = vrot.lane.b32.xlu0 %v1123, 5
      %v1126 = vpop.permute.xlu0 %1125
      %v1128 = vadd.f32 %v1118, %v1126
      %v1129 = vtanh.pop %v1128
      %1131 = vrot.lane.b32.xlu0 %v1129, 10
      %v1132 = vpop.permute.xlu0 %1131
      %v1134 = vmul.f32 %v1116, %v1132
      %1136 = vrot.lane.b32.xlu0 %v344, 113
      %v1137 = vpop.permute.xlu0 %1136
      %v1140 = vrot.slane %v1134, 1
      %1141 = vrot.lane.b32.xlu0 %v1140, 118
      %v1142 = vpop.permute.xlu0 %1141
      %v1144 = vsel %vm241, %v1137, %v1142
      %1146 = vrot.lane.b32.xlu0 %v458, 113
      %v1147 = vpop.permute.xlu0 %1146
      %v1150 = vrot.slane %v1021, 1
      %1151 = vrot.lane.b32.xlu0 %v1150, 118
      %v1152 = vpop.permute.xlu0 %1151
      %v1154 = vsel %vm241, %v1147, %v1152
      %1156 = vrot.lane.b32.xlu0 %v571, 113
      %v1157 = vpop.permute.xlu0 %1156
      %v1160 = vrot.slane %v910, 1
      %1161 = vrot.lane.b32.xlu0 %v1160, 118
      %v1162 = vpop.permute.xlu0 %1161
      %v1164 = vsel %vm241, %v1157, %v1162
      %1166 = vrot.lane.b32.xlu0 %v684, 113
      %v1167 = vpop.permute.xlu0 %1166
      %v1170 = vrot.slane %v797, 1
      %1171 = vrot.lane.b32.xlu0 %v1170, 118
      %v1172 = vpop.permute.xlu0 %1171
      %v1174 = vsel %vm241, %v1167, %v1172
      %1175 = vrot.lane.b32.xlu0 %v797, 113
      %v1176 = vpop.permute.xlu0 %1175
      %v1178 = vrot.slane %v684, 1
      %1179 = vrot.lane.b32.xlu0 %v1178, 118
      %v1180 = vpop.permute.xlu0 %1179
      %v1182 = vsel %vm241, %v1176, %v1180
      %1183 = vrot.lane.b32.xlu0 %v910, 113
      %v1184 = vpop.permute.xlu0 %1183
      %v1186 = vrot.slane %v571, 1
      %1187 = vrot.lane.b32.xlu0 %v1186, 118
      %v1188 = vpop.permute.xlu0 %1187
      %v1190 = vsel %vm241, %v1184, %v1188
      %1191 = vrot.lane.b32.xlu0 %v1021, 113
      %v1192 = vpop.permute.xlu0 %1191
      %v1194 = vrot.slane %v458, 1
      %1195 = vrot.lane.b32.xlu0 %v1194, 118
      %v1196 = vpop.permute.xlu0 %1195
      %v1198 = vsel %vm241, %v1192, %v1196
      %1199 = vrot.lane.b32.xlu0 %v1134, 113
      %v1200 = vpop.permute.xlu0 %1199
      %v1202 = vrot.slane %v344, 1
      %1203 = vrot.lane.b32.xlu0 %v1202, 118
      %v1204 = vpop.permute.xlu0 %1203
      %v1206 = vsel %vm241, %v1200, %v1204
      %v1208 = vrot.slane %v1154, 7
      %v1211 = vrot.slane %v1164, 6
      %v1214 = vrot.slane %v1174, 5
      %v1217 = vrot.slane %v1182, 4
      %v1220 = vrot.slane %v1190, 3
      %v1223 = vrot.slane %v1198, 2
      %v1226 = vrot.slane %v1206, 1
      %v1228 = vsel %vm229, %v1144, %v1208
      %v1229 = vsel %vm247, %v1228, %v1211
      %v1230 = vsel %vm71, %v1229, %v1214
      %vm1231 = vcmask 1043456
      %v1232 = vsel %vm1231, %v1230, %v1217
      %vm1233 = vcmask 1044480
      %v1234 = vsel %vm1233, %v1232, %v1220
      %vm1235 = vcmask 1045504
      %v1236 = vsel %vm1235, %v1234, %v1223
      %vm1237 = vcmask 1046528
      %v1238 = vsel %vm1237, %v1236, %v1226
      %v1239 = vsel %vm67, %v62, 0.0
      %v1241 = vrot.slane %v1239, 7
      %v1244 = vrot.slane %v1238, 7
      %v1246 = vrot.slane %v1239, 6
      %v1248 = vrot.slane %v1238, 6
      %v1250 = vrot.slane %v1239, 5
      %v1252 = vrot.slane %v1238, 5
      %v1254 = vrot.slane %v1239, 4
      %v1256 = vrot.slane %v1238, 4
      %v1258 = vrot.slane %v1239, 3
      %v1260 = vrot.slane %v1238, 3
      %v1262 = vrot.slane %v1239, 2
      %v1264 = vrot.slane %v1238, 2
      %v1266 = vrot.slane %v1239, 1
      %v1268 = vrot.slane %v1238, 1
      %v1270 = vsel %vm229, %v1238, %v1241
      %v1271 = vsel %vm247, %v1270, %v1244
      %v1272 = vsel %vm71, %v1271, %v1246
      %v1273 = vsel %vm1231, %v1272, %v1248
      %v1274 = vsel %vm1233, %v1273, %v1250
      %v1275 = vsel %vm1235, %v1274, %v1252
      %v1276 = vsel %vm1237, %v1275, %v1254
      %v1277 = vsel %vm229, %v1256, %v1258
      %v1278 = vsel %vm247, %v1277, %v1260
      %v1279 = vsel %vm71, %v1278, %v1262
      %v1280 = vsel %vm1231, %v1279, %v1264
      %v1281 = vsel %vm1233, %v1280, %v1266
      %v1282 = vsel %vm1235, %v1281, %v1268
      %v1283 = vsel %vm1237, %v1282, %v1239
      %v1284 = vld [vmem:[%s5] sm:$0xff]
      %v1285 = vld [vmem:[%s5 + $0x8] sm:$0x3]
      %v1286 = vld [vmem:[%s6] sm:$0xf]
      %v1287 = vld [vmem:[%s4] sm:$0xff]
      %v1288 = vld [vmem:[%s4 + $0x8] sm:$0x3]
      %v1290 = vsel %vm243, %v1276, 0
      %v1293 = vsel %vm243, %v1283, 0
      %v1296 = vsel %vm247, %v1288, 0
      %1298 = vmatprep.subr.mxu0 0.0
      %1299 = vmatpush1.msra.mxu0 %v1287
      %1300 = vmatprep.subr.mxu0 0.0
      %1301 = vmatpush1.msra.mxu0 %v1296
      %1302 = vmatprep.subr.mxu0 0.0
      %1303 = vmatpush1.msra.mxu0 0.0
      %1304 = vmatprep.subr.mxu0 0.0
      %1305 = vmatpush1.msra.mxu0 0.0
      %1306 = vmatprep.subr.mxu0 0.0
      %1307 = vmatpush1.msra.mxu0 0.0
      %1308 = vmatprep.subr.mxu0 0.0
      %1309 = vmatpush1.msra.mxu0 0.0
      %1310 = vmatprep.subr.mxu0 0.0
      %1311 = vmatpush1.msra.mxu0 0.0
      %1312 = vmatprep.subr.mxu0 0.0
      %1313 = vmatpush1.msra.mxu0 0.0
      %1314 = vmatprep.subr.mxu0 0.0
      %1315 = vmatpush1.msra.mxu0 0.0
      %1316 = vmatprep.subr.mxu0 0.0
      %1317 = vmatpush1.msra.mxu0 0.0
      %1318 = vmatprep.subr.mxu0 0.0
      %1319 = vmatpush1.msra.mxu0 0.0
      %1320 = vmatprep.subr.mxu0 0.0
      %1321 = vmatpush1.msra.mxu0 0.0
      %1322 = vmatprep.subr.mxu0 0.0
      %1323 = vmatpush1.msra.mxu0 0.0
      %1324 = vmatprep.subr.mxu0 0.0
      %1325 = vmatpush1.msra.mxu0 0.0
      %1326 = vmatprep.subr.mxu0 0.0
      %1327 = vmatpush1.msra.mxu0 0.0
      %1328 = vmatprep.subr.mxu0 0.0
      %1329 = vmatpush1.msra.mxu0 0.0
      %1330 = vmatprep.subr.mxu0 0.0
      %1331 = vmatpush1.msra.mxu0 0.0
      %1332 = vmatprep.subr.mxu0 0.0
      %1333 = vmatpush1.msra.mxu0 0.0
      %1334 = vmatprep.subr.mxu0 0.0
      %1335 = vmatpush1.msra.mxu0 0.0
      %1336 = vmatprep.subr.mxu0 0.0
      %1337 = vmatpush1.msra.mxu0 0.0
      %1338 = vmatprep.subr.mxu0 0.0
      %1339 = vmatpush1.msra.mxu0 0.0
      %1340 = vmatprep.subr.mxu0 0.0
      %1341 = vmatpush1.msra.mxu0 0.0
      %1342 = vmatprep.subr.mxu0 0.0
      %1343 = vmatpush1.msra.mxu0 0.0
      %1344 = vmatprep.subr.mxu0 0.0
      %1345 = vmatpush1.msra.mxu0 0.0
      %1346 = vmatprep.subr.mxu0 0.0
      %1347 = vmatpush1.msra.mxu0 0.0
      %1348 = vmatprep.subr.mxu0 0.0
      %1349 = vmatpush1.msra.mxu0 0.0
      %1350 = vmatprep.subr.mxu0 0.0
      %1351 = vmatpush1.msra.mxu0 0.0
      %1352 = vmatprep.subr.mxu0 0.0
      %1353 = vmatpush1.msra.mxu0 0.0
      %1354 = vmatprep.subr.mxu0 0.0
      %1355 = vmatpush1.msra.mxu0 0.0
      %1356 = vmatprep.subr.mxu0 0.0
      %1357 = vmatpush1.msra.mxu0 0.0
      %1358 = vmatprep.subr.mxu0 0.0
      %1359 = vmatpush1.msra.mxu0 0.0
      %1360 = vmatprep.subr.mxu0 0.0
      %1361 = vmatpush1.msra.mxu0 0.0
      %1362 = vmatprep.mubr.f32.mxu0 0.0
      %1363 = vmatmul.mubr.f32.gmra.mrb[0].mxu0 %v1290
      %v1364 = vpop.f32.mrb[0].mxu0
      %v1365 = vadd.f32 0.0, %v1364
      %v1366 = vpop.f32.mrb[0].mxu0
      %1367 = vmatprep.mubr.f32.mxu0 0.0
      %1368 = vmatmul.mubr.f32.gmra.mrb[0].mxu0 %v1293
      %v1369 = vpop.f32.mrb[0].mxu0
      %v1370 = vadd.f32 0.0, %v1369
      %v1371 = vpop.f32.mrb[0].mxu0
      %1372 = vdwg.mxu0
      %s1373 = scalar_lea.vmem %s4, 16
      %v1374 = vld [vmem:[%s1373] sm:$0xff]
      %v1375 = vld [vmem:[%s1373 + $0x8] sm:$0x3]
      %v1377 = vsel %vm247, %v1375, 0
      %1379 = vmatprep.subr.mxu0 0.0
      %1380 = vmatpush1.msra.mxu0 %v1374
      %1381 = vmatprep.subr.mxu0 0.0
      %1382 = vmatpush1.msra.mxu0 %v1377
      %1383 = vmatprep.subr.mxu0 0.0
      %1384 = vmatpush1.msra.mxu0 0.0
      %1385 = vmatprep.subr.mxu0 0.0
      %1386 = vmatpush1.msra.mxu0 0.0
      %1387 = vmatprep.subr.mxu0 0.0
      %1388 = vmatpush1.msra.mxu0 0.0
      %1389 = vmatprep.subr.mxu0 0.0
      %1390 = vmatpush1.msra.mxu0 0.0
      %1391 = vmatprep.subr.mxu0 0.0
      %1392 = vmatpush1.msra.mxu0 0.0
      %1393 = vmatprep.subr.mxu0 0.0
      %1394 = vmatpush1.msra.mxu0 0.0
      %1395 = vmatprep.subr.mxu0 0.0
      %1396 = vmatpush1.msra.mxu0 0.0
      %1397 = vmatprep.subr.mxu0 0.0
      %1398 = vmatpush1.msra.mxu0 0.0
      %1399 = vmatprep.subr.mxu0 0.0
      %1400 = vmatpush1.msra.mxu0 0.0
      %1401 = vmatprep.subr.mxu0 0.0
      %1402 = vmatpush1.msra.mxu0 0.0
      %1403 = vmatprep.subr.mxu0 0.0
      %1404 = vmatpush1.msra.mxu0 0.0
      %1405 = vmatprep.subr.mxu0 0.0
      %1406 = vmatpush1.msra.mxu0 0.0
      %1407 = vmatprep.subr.mxu0 0.0
      %1408 = vmatpush1.msra.mxu0 0.0
      %1409 = vmatprep.subr.mxu0 0.0
      %1410 = vmatpush1.msra.mxu0 0.0
      %1411 = vmatprep.subr.mxu0 0.0
      %1412 = vmatpush1.msra.mxu0 0.0
      %1413 = vmatprep.subr.mxu0 0.0
      %1414 = vmatpush1.msra.mxu0 0.0
      %1415 = vmatprep.subr.mxu0 0.0
      %1416 = vmatpush1.msra.mxu0 0.0
      %1417 = vmatprep.subr.mxu0 0.0
      %1418 = vmatpush1.msra.mxu0 0.0
      %1419 = vmatprep.subr.mxu0 0.0
      %1420 = vmatpush1.msra.mxu0 0.0
      %1421 = vmatprep.subr.mxu0 0.0
      %1422 = vmatpush1.msra.mxu0 0.0
      %1423 = vmatprep.subr.mxu0 0.0
      %1424 = vmatpush1.msra.mxu0 0.0
      %1425 = vmatprep.subr.mxu0 0.0
      %1426 = vmatpush1.msra.mxu0 0.0
      %1427 = vmatprep.subr.mxu0 0.0
      %1428 = vmatpush1.msra.mxu0 0.0
      %1429 = vmatprep.subr.mxu0 0.0
      %1430 = vmatpush1.msra.mxu0 0.0
      %1431 = vmatprep.subr.mxu0 0.0
      %1432 = vmatpush1.msra.mxu0 0.0
      %1433 = vmatprep.subr.mxu0 0.0
      %1434 = vmatpush1.msra.mxu0 0.0
      %1435 = vmatprep.subr.mxu0 0.0
      %1436 = vmatpush1.msra.mxu0 0.0
      %1437 = vmatprep.subr.mxu0 0.0
      %1438 = vmatpush1.msra.mxu0 0.0
      %1439 = vmatprep.subr.mxu0 0.0
      %1440 = vmatpush1.msra.mxu0 0.0
      %1441 = vmatprep.subr.mxu0 0.0
      %1442 = vmatpush1.msra.mxu0 0.0
      %1443 = vmatprep.mubr.f32.mxu0 0.0
      %1444 = vmatmul.mubr.f32.gmra.mrb[0].mxu0 %v1290
      %v1445 = vpop.f32.mrb[0].mxu0
      %v1446 = vadd.f32 0.0, %v1445
      %v1447 = vpop.f32.mrb[0].mxu0
      %1448 = vmatprep.mubr.f32.mxu0 0.0
      %1449 = vmatmul.mubr.f32.gmra.mrb[0].mxu0 %v1293
      %v1450 = vpop.f32.mrb[0].mxu0
      %v1451 = vadd.f32 0.0, %v1450
      %v1452 = vpop.f32.mrb[0].mxu0
      %1453 = vdwg.mxu0
      %vm1454 = vcmp.lt.s32.totalorder %v221, 2
      %v1455 = vsel %vm1454, 1, 0
      %v1456 = vcvt.s32.f32 %v1455
      %v1457 = vsub.f32 1.0, %v1456
      %v1459 = vrot.slane %v1451, 4
      %v1461 = vsel %vm247, %v1365, %v1459
      %v1462 = vmul.f32 %v56, %v1456
      %v1463 = vmul.f32 %v56, %v1457
      %1465 = vrot.lane.b32.xlu0 %v1462, 113
      %v1466 = vpop.permute.xlu0 %1465
      %1469 = vrot.lane.b32.xlu0 %v1463, 118
      %v1470 = vpop.permute.xlu0 %1469
      %v1472 = vsel %vm241, %v1466, %v1470
      %v1474 = vsel %vm243, %v1472, 0
      %v1477 = vsel %vm247, %v1285, 0
      %1479 = vmatprep.subr.mxu0 0.0
      %1480 = vmatpush1.msra.mxu0 %v1284
      %1481 = vmatprep.subr.mxu0 0.0
      %1482 = vmatpush1.msra.mxu0 %v1477
      %1483 = vmatprep.subr.mxu0 0.0
      %1484 = vmatpush1.msra.mxu0 0.0
      %1485 = vmatprep.subr.mxu0 0.0
      %1486 = vmatpush1.msra.mxu0 0.0
      %1487 = vmatprep.subr.mxu0 0.0
      %1488 = vmatpush1.msra.mxu0 0.0
      %1489 = vmatprep.subr.mxu0 0.0
      %1490 = vmatpush1.msra.mxu0 0.0
      %1491 = vmatprep.subr.mxu0 0.0
      %1492 = vmatpush1.msra.mxu0 0.0
      %1493 = vmatprep.subr.mxu0 0.0
      %1494 = vmatpush1.msra.mxu0 0.0
      %1495 = vmatprep.subr.mxu0 0.0
      %1496 = vmatpush1.msra.mxu0 0.0
      %1497 = vmatprep.subr.mxu0 0.0
      %1498 = vmatpush1.msra.mxu0 0.0
      %1499 = vmatprep.subr.mxu0 0.0
      %1500 = vmatpush1.msra.mxu0 0.0
      %1501 = vmatprep.subr.mxu0 0.0
      %1502 = vmatpush1.msra.mxu0 0.0
      %1503 = vmatprep.subr.mxu0 0.0
      %1504 = vmatpush1.msra.mxu0 0.0
      %1505 = vmatprep.subr.mxu0 0.0
      %1506 = vmatpush1.msra.mxu0 0.0
      %1507 = vmatprep.subr.mxu0 0.0
      %1508 = vmatpush1.msra.mxu0 0.0
      %1509 = vmatprep.subr.mxu0 0.0
      %1510 = vmatpush1.msra.mxu0 0.0
      %1511 = vmatprep.subr.mxu0 0.0
      %1512 = vmatpush1.msra.mxu0 0.0
      %1513 = vmatprep.subr.mxu0 0.0
      %1514 = vmatpush1.msra.mxu0 0.0
      %1515 = vmatprep.subr.mxu0 0.0
      %1516 = vmatpush1.msra.mxu0 0.0
      %1517 = vmatprep.subr.mxu0 0.0
      %1518 = vmatpush1.msra.mxu0 0.0
      %1519 = vmatprep.subr.mxu0 0.0
      %1520 = vmatpush1.msra.mxu0 0.0
      %1521 = vmatprep.subr.mxu0 0.0
      %1522 = vmatpush1.msra.mxu0 0.0
      %1523 = vmatprep.subr.mxu0 0.0
      %1524 = vmatpush1.msra.mxu0 0.0
      %1525 = vmatprep.subr.mxu0 0.0
      %1526 = vmatpush1.msra.mxu0 0.0
      %1527 = vmatprep.subr.mxu0 0.0
      %1528 = vmatpush1.msra.mxu0 0.0
      %1529 = vmatprep.subr.mxu0 0.0
      %1530 = vmatpush1.msra.mxu0 0.0
      %1531 = vmatprep.subr.mxu0 0.0
      %1532 = vmatpush1.msra.mxu0 0.0
      %1533 = vmatprep.subr.mxu0 0.0
      %1534 = vmatpush1.msra.mxu0 0.0
      %1535 = vmatprep.subr.mxu0 0.0
      %1536 = vmatpush1.msra.mxu0 0.0
      %1537 = vmatprep.subr.mxu0 0.0
      %1538 = vmatpush1.msra.mxu0 0.0
      %1539 = vmatprep.subr.mxu0 0.0
      %1540 = vmatpush1.msra.mxu0 0.0
      %1541 = vmatprep.subr.mxu0 0.0
      %1542 = vmatpush1.msra.mxu0 0.0
      %1543 = vmatprep.mubr.f32.mxu0 0.0
      %1544 = vmatmul.mubr.f32.gmra.mrb[0].mxu0 %v1474
      %v1545 = vpop.f32.mrb[0].mxu0
      %v1546 = vadd.f32 0.0, %v1545
      %v1547 = vpop.f32.mrb[0].mxu0
      %1548 = vdwg.mxu0
      %v1549 = vadd.f32 %v1461, %v1546
      %v1550 = vadd.f32 %v1549, %v1286
      %v1551 = vmul.f32 %v1550, 0.5
      %v1552 = vtanh.pop %v1551
      %v1553 = vmul.f32 %v1552, 0.5
      %v1554 = vadd.f32 %v1553, 0.5
      %v1555 = vtanh.pop %v1550
      %v1556 = vmul.f32 %v1554, %v57
      %1558 = vrot.lane.b32.xlu0 %v1555, 118
      %v1559 = vpop.permute.xlu0 %1558
      %v1561 = vmul.f32 %v1554, %v1559
      %1563 = vrot.lane.b32.xlu0 %v1561, 5
      %v1564 = vpop.permute.xlu0 %1563
      %v1566 = vadd.f32 %v1556, %v1564
      %v1567 = vtanh.pop %v1566
      %1569 = vrot.lane.b32.xlu0 %v1567, 10
      %v1570 = vpop.permute.xlu0 %1569
      %v1572 = vmul.f32 %v1554, %v1570
      %v1574 = vrot.slane %v1365, 2
      %v1576 = vrot.slane %v1451, 2
      %v1578 = vsel %vm247, %v1574, %v1576
      %v1579 = vmul.f32 %v1572, %v1456
      %v1580 = vmul.f32 %v1572, %v1457
      %1582 = vrot.lane.b32.xlu0 %v1579, 113
      %v1583 = vpop.permute.xlu0 %1582
      %1586 = vrot.lane.b32.xlu0 %v1580, 118
      %v1587 = vpop.permute.xlu0 %1586
      %v1589 = vsel %vm241, %v1583, %v1587
      %v1591 = vsel %vm243, %v1589, 0
      %1593 = vmatprep.subr.mxu0 0.0
      %1594 = vmatpush1.msra.mxu0 %v1284
      %1595 = vmatprep.subr.mxu0 0.0
      %1596 = vmatpush1.msra.mxu0 %v1477
      %1597 = vmatprep.subr.mxu0 0.0
      %1598 = vmatpush1.msra.mxu0 0.0
      %1599 = vmatprep.subr.mxu0 0.0
      %1600 = vmatpush1.msra.mxu0 0.0
      %1601 = vmatprep.subr.mxu0 0.0
      %1602 = vmatpush1.msra.mxu0 0.0
      %1603 = vmatprep.subr.mxu0 0.0
      %1604 = vmatpush1.msra.mxu0 0.0
      %1605 = vmatprep.subr.mxu0 0.0
      %1606 = vmatpush1.msra.mxu0 0.0
      %1607 = vmatprep.subr.mxu0 0.0
      %1608 = vmatpush1.msra.mxu0 0.0
      %1609 = vmatprep.subr.mxu0 0.0
      %1610 = vmatpush1.msra.mxu0 0.0
      %1611 = vmatprep.subr.mxu0 0.0
      %1612 = vmatpush1.msra.mxu0 0.0
      %1613 = vmatprep.subr.mxu0 0.0
      %1614 = vmatpush1.msra.mxu0 0.0
      %1615 = vmatprep.subr.mxu0 0.0
      %1616 = vmatpush1.msra.mxu0 0.0
      %1617 = vmatprep.subr.mxu0 0.0
      %1618 = vmatpush1.msra.mxu0 0.0
      %1619 = vmatprep.subr.mxu0 0.0
      %1620 = vmatpush1.msra.mxu0 0.0
      %1621 = vmatprep.subr.mxu0 0.0
      %1622 = vmatpush1.msra.mxu0 0.0
      %1623 = vmatprep.subr.mxu0 0.0
      %1624 = vmatpush1.msra.mxu0 0.0
      %1625 = vmatprep.subr.mxu0 0.0
      %1626 = vmatpush1.msra.mxu0 0.0
      %1627 = vmatprep.subr.mxu0 0.0
      %1628 = vmatpush1.msra.mxu0 0.0
      %1629 = vmatprep.subr.mxu0 0.0
      %1630 = vmatpush1.msra.mxu0 0.0
      %1631 = vmatprep.subr.mxu0 0.0
      %1632 = vmatpush1.msra.mxu0 0.0
      %1633 = vmatprep.subr.mxu0 0.0
      %1634 = vmatpush1.msra.mxu0 0.0
      %1635 = vmatprep.subr.mxu0 0.0
      %1636 = vmatpush1.msra.mxu0 0.0
      %1637 = vmatprep.subr.mxu0 0.0
      %1638 = vmatpush1.msra.mxu0 0.0
      %1639 = vmatprep.subr.mxu0 0.0
      %1640 = vmatpush1.msra.mxu0 0.0
      %1641 = vmatprep.subr.mxu0 0.0
      %1642 = vmatpush1.msra.mxu0 0.0
      %1643 = vmatprep.subr.mxu0 0.0
      %1644 = vmatpush1.msra.mxu0 0.0
      %1645 = vmatprep.subr.mxu0 0.0
      %1646 = vmatpush1.msra.mxu0 0.0
      %1647 = vmatprep.subr.mxu0 0.0
      %1648 = vmatpush1.msra.mxu0 0.0
      %1649 = vmatprep.subr.mxu0 0.0
      %1650 = vmatpush1.msra.mxu0 0.0
      %1651 = vmatprep.subr.mxu0 0.0
      %1652 = vmatpush1.msra.mxu0 0.0
      %1653 = vmatprep.subr.mxu0 0.0
      %1654 = vmatpush1.msra.mxu0 0.0
      %1655 = vmatprep.subr.mxu0 0.0
      %1656 = vmatpush1.msra.mxu0 0.0
      %1657 = vmatprep.mubr.f32.mxu0 0.0
      %1658 = vmatmul.mubr.f32.gmra.mrb[0].mxu0 %v1591
      %v1659 = vpop.f32.mrb[0].mxu0
      %v1660 = vadd.f32 0.0, %v1659
      %v1661 = vpop.f32.mrb[0].mxu0
      %1662 = vdwg.mxu0
      %v1663 = vadd.f32 %v1578, %v1660
      %v1664 = vadd.f32 %v1663, %v1286
      %v1665 = vmul.f32 %v1664, 0.5
      %v1666 = vtanh.pop %v1665
      %v1667 = vmul.f32 %v1666, 0.5
      %v1668 = vadd.f32 %v1667, 0.5
      %v1669 = vtanh.pop %v1664
      %v1670 = vmul.f32 %v1668, %v1566
      %1672 = vrot.lane.b32.xlu0 %v1669, 118
      %v1673 = vpop.permute.xlu0 %1672
      %v1675 = vmul.f32 %v1668, %v1673
      %1677 = vrot.lane.b32.xlu0 %v1675, 5
      %v1678 = vpop.permute.xlu0 %1677
      %v1680 = vadd.f32 %v1670, %v1678
      %v1681 = vtanh.pop %v1680
      %1683 = vrot.lane.b32.xlu0 %v1681, 10
      %v1684 = vpop.permute.xlu0 %1683
      %v1686 = vmul.f32 %v1668, %v1684
      %v1687 = vrot.slane %v1365, 4
      %v1689 = vsel %vm247, %v1687, %v1451
      %v1690 = vmul.f32 %v1686, %v1456
      %v1691 = vmul.f32 %v1686, %v1457
      %1693 = vrot.lane.b32.xlu0 %v1690, 113
      %v1694 = vpop.permute.xlu0 %1693
      %1697 = vrot.lane.b32.xlu0 %v1691, 118
      %v1698 = vpop.permute.xlu0 %1697
      %v1700 = vsel %vm241, %v1694, %v1698
      %v1702 = vsel %vm243, %v1700, 0
      %1704 = vmatprep.subr.mxu0 0.0
      %1705 = vmatpush1.msra.mxu0 %v1284
      %1706 = vmatprep.subr.mxu0 0.0
      %1707 = vmatpush1.msra.mxu0 %v1477
      %1708 = vmatprep.subr.mxu0 0.0
      %1709 = vmatpush1.msra.mxu0 0.0
      %1710 = vmatprep.subr.mxu0 0.0
      %1711 = vmatpush1.msra.mxu0 0.0
      %1712 = vmatprep.subr.mxu0 0.0
      %1713 = vmatpush1.msra.mxu0 0.0
      %1714 = vmatprep.subr.mxu0 0.0
      %1715 = vmatpush1.msra.mxu0 0.0
      %1716 = vmatprep.subr.mxu0 0.0
      %1717 = vmatpush1.msra.mxu0 0.0
      %1718 = vmatprep.subr.mxu0 0.0
      %1719 = vmatpush1.msra.mxu0 0.0
      %1720 = vmatprep.subr.mxu0 0.0
      %1721 = vmatpush1.msra.mxu0 0.0
      %1722 = vmatprep.subr.mxu0 0.0
      %1723 = vmatpush1.msra.mxu0 0.0
      %1724 = vmatprep.subr.mxu0 0.0
      %1725 = vmatpush1.msra.mxu0 0.0
      %1726 = vmatprep.subr.mxu0 0.0
      %1727 = vmatpush1.msra.mxu0 0.0
      %1728 = vmatprep.subr.mxu0 0.0
      %1729 = vmatpush1.msra.mxu0 0.0
      %1730 = vmatprep.subr.mxu0 0.0
      %1731 = vmatpush1.msra.mxu0 0.0
      %1732 = vmatprep.subr.mxu0 0.0
      %1733 = vmatpush1.msra.mxu0 0.0
      %1734 = vmatprep.subr.mxu0 0.0
      %1735 = vmatpush1.msra.mxu0 0.0
      %1736 = vmatprep.subr.mxu0 0.0
      %1737 = vmatpush1.msra.mxu0 0.0
      %1738 = vmatprep.subr.mxu0 0.0
      %1739 = vmatpush1.msra.mxu0 0.0
      %1740 = vmatprep.subr.mxu0 0.0
      %1741 = vmatpush1.msra.mxu0 0.0
      %1742 = vmatprep.subr.mxu0 0.0
      %1743 = vmatpush1.msra.mxu0 0.0
      %1744 = vmatprep.subr.mxu0 0.0
      %1745 = vmatpush1.msra.mxu0 0.0
      %1746 = vmatprep.subr.mxu0 0.0
      %1747 = vmatpush1.msra.mxu0 0.0
      %1748 = vmatprep.subr.mxu0 0.0
      %1749 = vmatpush1.msra.mxu0 0.0
      %1750 = vmatprep.subr.mxu0 0.0
      %1751 = vmatpush1.msra.mxu0 0.0
      %1752 = vmatprep.subr.mxu0 0.0
      %1753 = vmatpush1.msra.mxu0 0.0
      %1754 = vmatprep.subr.mxu0 0.0
      %1755 = vmatpush1.msra.mxu0 0.0
      %1756 = vmatprep.subr.mxu0 0.0
      %1757 = vmatpush1.msra.mxu0 0.0
      %1758 = vmatprep.subr.mxu0 0.0
      %1759 = vmatpush1.msra.mxu0 0.0
      %1760 = vmatprep.subr.mxu0 0.0
      %1761 = vmatpush1.msra.mxu0 0.0
      %1762 = vmatprep.subr.mxu0 0.0
      %1763 = vmatpush1.msra.mxu0 0.0
      %1764 = vmatprep.subr.mxu0 0.0
      %1765 = vmatpush1.msra.mxu0 0.0
      %1766 = vmatprep.subr.mxu0 0.0
      %1767 = vmatpush1.msra.mxu0 0.0
      %1768 = vmatprep.mubr.f32.mxu0 0.0
      %1769 = vmatmul.mubr.f32.gmra.mrb[0].mxu0 %v1702
      %v1770 = vpop.f32.mrb[0].mxu0
      %v1771 = vadd.f32 0.0, %v1770
      %v1772 = vpop.f32.mrb[0].mxu0
      %1773 = vdwg.mxu0
      %v1774 = vadd.f32 %v1689, %v1771
      %v1775 = vadd.f32 %v1774, %v1286
      %v1776 = vmul.f32 %v1775, 0.5
      %v1777 = vtanh.pop %v1776
      %v1778 = vmul.f32 %v1777, 0.5
      %v1779 = vadd.f32 %v1778, 0.5
      %v1780 = vtanh.pop %v1775
      %v1781 = vmul.f32 %v1779, %v1680
      %1783 = vrot.lane.b32.xlu0 %v1780, 118
      %v1784 = vpop.permute.xlu0 %1783
      %v1786 = vmul.f32 %v1779, %v1784
      %1788 = vrot.lane.b32.xlu0 %v1786, 5
      %v1789 = vpop.permute.xlu0 %1788
      %v1791 = vadd.f32 %v1781, %v1789
      %v1792 = vtanh.pop %v1791
      %1794 = vrot.lane.b32.xlu0 %v1792, 10
      %v1795 = vpop.permute.xlu0 %1794
      %v1797 = vmul.f32 %v1779, %v1795
      %v1798 = vrot.slane %v1365, 6
      %v1800 = vrot.slane %v1451, 6
      %v1802 = vsel %vm247, %v1798, %v1800
      %v1803 = vmul.f32 %v1797, %v1456
      %v1804 = vmul.f32 %v1797, %v1457
      %1806 = vrot.lane.b32.xlu0 %v1803, 113
      %v1807 = vpop.permute.xlu0 %1806
      %1810 = vrot.lane.b32.xlu0 %v1804, 118
      %v1811 = vpop.permute.xlu0 %1810
      %v1813 = vsel %vm241, %v1807, %v1811
      %v1815 = vsel %vm243, %v1813, 0
      %1817 = vmatprep.subr.mxu0 0.0
      %1818 = vmatpush1.msra.mxu0 %v1284
      %1819 = vmatprep.subr.mxu0 0.0
      %1820 = vmatpush1.msra.mxu0 %v1477
      %1821 = vmatprep.subr.mxu0 0.0
      %1822 = vmatpush1.msra.mxu0 0.0
      %1823 = vmatprep.subr.mxu0 0.0
      %1824 = vmatpush1.msra.mxu0 0.0
      %1825 = vmatprep.subr.mxu0 0.0
      %1826 = vmatpush1.msra.mxu0 0.0
      %1827 = vmatprep.subr.mxu0 0.0
      %1828 = vmatpush1.msra.mxu0 0.0
      %1829 = vmatprep.subr.mxu0 0.0
      %1830 = vmatpush1.msra.mxu0 0.0
      %1831 = vmatprep.subr.mxu0 0.0
      %1832 = vmatpush1.msra.mxu0 0.0
      %1833 = vmatprep.subr.mxu0 0.0
      %1834 = vmatpush1.msra.mxu0 0.0
      %1835 = vmatprep.subr.mxu0 0.0
      %1836 = vmatpush1.msra.mxu0 0.0
      %1837 = vmatprep.subr.mxu0 0.0
      %1838 = vmatpush1.msra.mxu0 0.0
      %1839 = vmatprep.subr.mxu0 0.0
      %1840 = vmatpush1.msra.mxu0 0.0
      %1841 = vmatprep.subr.mxu0 0.0
      %1842 = vmatpush1.msra.mxu0 0.0
      %1843 = vmatprep.subr.mxu0 0.0
      %1844 = vmatpush1.msra.mxu0 0.0
      %1845 = vmatprep.subr.mxu0 0.0
      %1846 = vmatpush1.msra.mxu0 0.0
      %1847 = vmatprep.subr.mxu0 0.0
      %1848 = vmatpush1.msra.mxu0 0.0
      %1849 = vmatprep.subr.mxu0 0.0
      %1850 = vmatpush1.msra.mxu0 0.0
      %1851 = vmatprep.subr.mxu0 0.0
      %1852 = vmatpush1.msra.mxu0 0.0
      %1853 = vmatprep.subr.mxu0 0.0
      %1854 = vmatpush1.msra.mxu0 0.0
      %1855 = vmatprep.subr.mxu0 0.0
      %1856 = vmatpush1.msra.mxu0 0.0
      %1857 = vmatprep.subr.mxu0 0.0
      %1858 = vmatpush1.msra.mxu0 0.0
      %1859 = vmatprep.subr.mxu0 0.0
      %1860 = vmatpush1.msra.mxu0 0.0
      %1861 = vmatprep.subr.mxu0 0.0
      %1862 = vmatpush1.msra.mxu0 0.0
      %1863 = vmatprep.subr.mxu0 0.0
      %1864 = vmatpush1.msra.mxu0 0.0
      %1865 = vmatprep.subr.mxu0 0.0
      %1866 = vmatpush1.msra.mxu0 0.0
      %1867 = vmatprep.subr.mxu0 0.0
      %1868 = vmatpush1.msra.mxu0 0.0
      %1869 = vmatprep.subr.mxu0 0.0
      %1870 = vmatpush1.msra.mxu0 0.0
      %1871 = vmatprep.subr.mxu0 0.0
      %1872 = vmatpush1.msra.mxu0 0.0
      %1873 = vmatprep.subr.mxu0 0.0
      %1874 = vmatpush1.msra.mxu0 0.0
      %1875 = vmatprep.subr.mxu0 0.0
      %1876 = vmatpush1.msra.mxu0 0.0
      %1877 = vmatprep.subr.mxu0 0.0
      %1878 = vmatpush1.msra.mxu0 0.0
      %1879 = vmatprep.subr.mxu0 0.0
      %1880 = vmatpush1.msra.mxu0 0.0
      %1881 = vmatprep.mubr.f32.mxu0 0.0
      %1882 = vmatmul.mubr.f32.gmra.mrb[0].mxu0 %v1815
      %v1883 = vpop.f32.mrb[0].mxu0
      %v1884 = vadd.f32 0.0, %v1883
      %v1885 = vpop.f32.mrb[0].mxu0
      %1886 = vdwg.mxu0
      %v1887 = vadd.f32 %v1802, %v1884
      %v1888 = vadd.f32 %v1887, %v1286
      %v1889 = vmul.f32 %v1888, 0.5
      %v1890 = vtanh.pop %v1889
      %v1891 = vmul.f32 %v1890, 0.5
      %v1892 = vadd.f32 %v1891, 0.5
      %v1893 = vtanh.pop %v1888
      %v1894 = vmul.f32 %v1892, %v1791
      %1896 = vrot.lane.b32.xlu0 %v1893, 118
      %v1897 = vpop.permute.xlu0 %1896
      %v1899 = vmul.f32 %v1892, %v1897
      %1901 = vrot.lane.b32.xlu0 %v1899, 5
      %v1902 = vpop.permute.xlu0 %1901
      %v1904 = vadd.f32 %v1894, %v1902
      %v1905 = vtanh.pop %v1904
      %1907 = vrot.lane.b32.xlu0 %v1905, 10
      %v1908 = vpop.permute.xlu0 %1907
      %v1910 = vmul.f32 %v1892, %v1908
      %v1912 = vrot.slane %v1446, 4
      %v1914 = vsel %vm247, %v1370, %v1912
      %v1915 = vmul.f32 %v1910, %v1456
      %v1916 = vmul.f32 %v1910, %v1457
      %1918 = vrot.lane.b32.xlu0 %v1915, 113
      %v1919 = vpop.permute.xlu0 %1918
      %1922 = vrot.lane.b32.xlu0 %v1916, 118
      %v1923 = vpop.permute.xlu0 %1922
      %v1925 = vsel %vm241, %v1919, %v1923
      %v1927 = vsel %vm243, %v1925, 0
      %1929 = vmatprep.subr.mxu0 0.0
      %1930 = vmatpush1.msra.mxu0 %v1284
      %1931 = vmatprep.subr.mxu0 0.0
      %1932 = vmatpush1.msra.mxu0 %v1477
      %1933 = vmatprep.subr.mxu0 0.0
      %1934 = vmatpush1.msra.mxu0 0.0
      %1935 = vmatprep.subr.mxu0 0.0
      %1936 = vmatpush1.msra.mxu0 0.0
      %1937 = vmatprep.subr.mxu0 0.0
      %1938 = vmatpush1.msra.mxu0 0.0
      %1939 = vmatprep.subr.mxu0 0.0
      %1940 = vmatpush1.msra.mxu0 0.0
      %1941 = vmatprep.subr.mxu0 0.0
      %1942 = vmatpush1.msra.mxu0 0.0
      %1943 = vmatprep.subr.mxu0 0.0
      %1944 = vmatpush1.msra.mxu0 0.0
      %1945 = vmatprep.subr.mxu0 0.0
      %1946 = vmatpush1.msra.mxu0 0.0
      %1947 = vmatprep.subr.mxu0 0.0
      %1948 = vmatpush1.msra.mxu0 0.0
      %1949 = vmatprep.subr.mxu0 0.0
      %1950 = vmatpush1.msra.mxu0 0.0
      %1951 = vmatprep.subr.mxu0 0.0
      %1952 = vmatpush1.msra.mxu0 0.0
      %1953 = vmatprep.subr.mxu0 0.0
      %1954 = vmatpush1.msra.mxu0 0.0
      %1955 = vmatprep.subr.mxu0 0.0
      %1956 = vmatpush1.msra.mxu0 0.0
      %1957 = vmatprep.subr.mxu0 0.0
      %1958 = vmatpush1.msra.mxu0 0.0
      %1959 = vmatprep.subr.mxu0 0.0
      %1960 = vmatpush1.msra.mxu0 0.0
      %1961 = vmatprep.subr.mxu0 0.0
      %1962 = vmatpush1.msra.mxu0 0.0
      %1963 = vmatprep.subr.mxu0 0.0
      %1964 = vmatpush1.msra.mxu0 0.0
      %1965 = vmatprep.subr.mxu0 0.0
      %1966 = vmatpush1.msra.mxu0 0.0
      %1967 = vmatprep.subr.mxu0 0.0
      %1968 = vmatpush1.msra.mxu0 0.0
      %1969 = vmatprep.subr.mxu0 0.0
      %1970 = vmatpush1.msra.mxu0 0.0
      %1971 = vmatprep.subr.mxu0 0.0
      %1972 = vmatpush1.msra.mxu0 0.0
      %1973 = vmatprep.subr.mxu0 0.0
      %1974 = vmatpush1.msra.mxu0 0.0
      %1975 = vmatprep.subr.mxu0 0.0
      %1976 = vmatpush1.msra.mxu0 0.0
      %1977 = vmatprep.subr.mxu0 0.0
      %1978 = vmatpush1.msra.mxu0 0.0
      %1979 = vmatprep.subr.mxu0 0.0
      %1980 = vmatpush1.msra.mxu0 0.0
      %1981 = vmatprep.subr.mxu0 0.0
      %1982 = vmatpush1.msra.mxu0 0.0
      %1983 = vmatprep.subr.mxu0 0.0
      %1984 = vmatpush1.msra.mxu0 0.0
      %1985 = vmatprep.subr.mxu0 0.0
      %1986 = vmatpush1.msra.mxu0 0.0
      %1987 = vmatprep.subr.mxu0 0.0
      %1988 = vmatpush1.msra.mxu0 0.0
      %1989 = vmatprep.subr.mxu0 0.0
      %1990 = vmatpush1.msra.mxu0 0.0
      %1991 = vmatprep.subr.mxu0 0.0
      %1992 = vmatpush1.msra.mxu0 0.0
      %1993 = vmatprep.mubr.f32.mxu0 0.0
      %1994 = vmatmul.mubr.f32.gmra.mrb[0].mxu0 %v1927
      %v1995 = vpop.f32.mrb[0].mxu0
      %v1996 = vadd.f32 0.0, %v1995
      %v1997 = vpop.f32.mrb[0].mxu0
      %1998 = vdwg.mxu0
      %v1999 = vadd.f32 %v1914, %v1996
      %v2000 = vadd.f32 %v1999, %v1286
      %v2001 = vmul.f32 %v2000, 0.5
      %v2002 = vtanh.pop %v2001
      %v2003 = vmul.f32 %v2002, 0.5
      %v2004 = vadd.f32 %v2003, 0.5
      %v2005 = vtanh.pop %v2000
      %v2006 = vmul.f32 %v2004, %v1904
      %2008 = vrot.lane.b32.xlu0 %v2005, 118
      %v2009 = vpop.permute.xlu0 %2008
      %v2011 = vmul.f32 %v2004, %v2009
      %2013 = vrot.lane.b32.xlu0 %v2011, 5
      %v2014 = vpop.permute.xlu0 %2013
      %v2016 = vadd.f32 %v2006, %v2014
      %v2017 = vtanh.pop %v2016
      %2019 = vrot.lane.b32.xlu0 %v2017, 10
      %v2020 = vpop.permute.xlu0 %2019
      %v2022 = vmul.f32 %v2004, %v2020
      %v2024 = vrot.slane %v1370, 2
      %v2026 = vrot.slane %v1446, 2
      %v2028 = vsel %vm247, %v2024, %v2026
      %v2029 = vmul.f32 %v2022, %v1456
      %v2030 = vmul.f32 %v2022, %v1457
      %2032 = vrot.lane.b32.xlu0 %v2029, 113
      %v2033 = vpop.permute.xlu0 %2032
      %2036 = vrot.lane.b32.xlu0 %v2030, 118
      %v2037 = vpop.permute.xlu0 %2036
      %v2039 = vsel %vm241, %v2033, %v2037
      %v2041 = vsel %vm243, %v2039, 0
      %2043 = vmatprep.subr.mxu0 0.0
      %2044 = vmatpush1.msra.mxu0 %v1284
      %2045 = vmatprep.subr.mxu0 0.0
      %2046 = vmatpush1.msra.mxu0 %v1477
      %2047 = vmatprep.subr.mxu0 0.0
      %2048 = vmatpush1.msra.mxu0 0.0
      %2049 = vmatprep.subr.mxu0 0.0
      %2050 = vmatpush1.msra.mxu0 0.0
      %2051 = vmatprep.subr.mxu0 0.0
      %2052 = vmatpush1.msra.mxu0 0.0
      %2053 = vmatprep.subr.mxu0 0.0
      %2054 = vmatpush1.msra.mxu0 0.0
      %2055 = vmatprep.subr.mxu0 0.0
      %2056 = vmatpush1.msra.mxu0 0.0
      %2057 = vmatprep.subr.mxu0 0.0
      %2058 = vmatpush1.msra.mxu0 0.0
      %2059 = vmatprep.subr.mxu0 0.0
      %2060 = vmatpush1.msra.mxu0 0.0
      %2061 = vmatprep.subr.mxu0 0.0
      %2062 = vmatpush1.msra.mxu0 0.0
      %2063 = vmatprep.subr.mxu0 0.0
      %2064 = vmatpush1.msra.mxu0 0.0
      %2065 = vmatprep.subr.mxu0 0.0
      %2066 = vmatpush1.msra.mxu0 0.0
      %2067 = vmatprep.subr.mxu0 0.0
      %2068 = vmatpush1.msra.mxu0 0.0
      %2069 = vmatprep.subr.mxu0 0.0
      %2070 = vmatpush1.msra.mxu0 0.0
      %2071 = vmatprep.subr.mxu0 0.0
      %2072 = vmatpush1.msra.mxu0 0.0
      %2073 = vmatprep.subr.mxu0 0.0
      %2074 = vmatpush1.msra.mxu0 0.0
      %2075 = vmatprep.subr.mxu0 0.0
      %2076 = vmatpush1.msra.mxu0 0.0
      %2077 = vmatprep.subr.mxu0 0.0
      %2078 = vmatpush1.msra.mxu0 0.0
      %2079 = vmatprep.subr.mxu0 0.0
      %2080 = vmatpush1.msra.mxu0 0.0
      %2081 = vmatprep.subr.mxu0 0.0
      %2082 = vmatpush1.msra.mxu0 0.0
      %2083 = vmatprep.subr.mxu0 0.0
      %2084 = vmatpush1.msra.mxu0 0.0
      %2085 = vmatprep.subr.mxu0 0.0
      %2086 = vmatpush1.msra.mxu0 0.0
      %2087 = vmatprep.subr.mxu0 0.0
      %2088 = vmatpush1.msra.mxu0 0.0
      %2089 = vmatprep.subr.mxu0 0.0
      %2090 = vmatpush1.msra.mxu0 0.0
      %2091 = vmatprep.subr.mxu0 0.0
      %2092 = vmatpush1.msra.mxu0 0.0
      %2093 = vmatprep.subr.mxu0 0.0
      %2094 = vmatpush1.msra.mxu0 0.0
      %2095 = vmatprep.subr.mxu0 0.0
      %2096 = vmatpush1.msra.mxu0 0.0
      %2097 = vmatprep.subr.mxu0 0.0
      %2098 = vmatpush1.msra.mxu0 0.0
      %2099 = vmatprep.subr.mxu0 0.0
      %2100 = vmatpush1.msra.mxu0 0.0
      %2101 = vmatprep.subr.mxu0 0.0
      %2102 = vmatpush1.msra.mxu0 0.0
      %2103 = vmatprep.subr.mxu0 0.0
      %2104 = vmatpush1.msra.mxu0 0.0
      %2105 = vmatprep.subr.mxu0 0.0
      %2106 = vmatpush1.msra.mxu0 0.0
      %2107 = vmatprep.mubr.f32.mxu0 0.0
      %2108 = vmatmul.mubr.f32.gmra.mrb[0].mxu0 %v2041
      %v2109 = vpop.f32.mrb[0].mxu0
      %v2110 = vadd.f32 0.0, %v2109
      %v2111 = vpop.f32.mrb[0].mxu0
      %2112 = vdwg.mxu0
      %v2113 = vadd.f32 %v2028, %v2110
      %v2114 = vadd.f32 %v2113, %v1286
      %v2115 = vmul.f32 %v2114, 0.5
      %v2116 = vtanh.pop %v2115
      %v2117 = vmul.f32 %v2116, 0.5
      %v2118 = vadd.f32 %v2117, 0.5
      %v2119 = vtanh.pop %v2114
      %v2120 = vmul.f32 %v2118, %v2016
      %2122 = vrot.lane.b32.xlu0 %v2119, 118
      %v2123 = vpop.permute.xlu0 %2122
      %v2125 = vmul.f32 %v2118, %v2123
      %2127 = vrot.lane.b32.xlu0 %v2125, 5
      %v2128 = vpop.permute.xlu0 %2127
      %v2130 = vadd.f32 %v2120, %v2128
      %v2131 = vtanh.pop %v2130
      %2133 = vrot.lane.b32.xlu0 %v2131, 10
      %v2134 = vpop.permute.xlu0 %2133
      %v2136 = vmul.f32 %v2118, %v2134
      %v2137 = vrot.slane %v1370, 4
      %v2139 = vsel %vm247, %v2137, %v1446
      %v2140 = vmul.f32 %v2136, %v1456
      %v2141 = vmul.f32 %v2136, %v1457
      %2143 = vrot.lane.b32.xlu0 %v2140, 113
      %v2144 = vpop.permute.xlu0 %2143
      %2147 = vrot.lane.b32.xlu0 %v2141, 118
      %v2148 = vpop.permute.xlu0 %2147
      %v2150 = vsel %vm241, %v2144, %v2148
      %v2152 = vsel %vm243, %v2150, 0
      %2154 = vmatprep.subr.mxu0 0.0
      %2155 = vmatpush1.msra.mxu0 %v1284
      %2156 = vmatprep.subr.mxu0 0.0
      %2157 = vmatpush1.msra.mxu0 %v1477
      %2158 = vmatprep.subr.mxu0 0.0
      %2159 = vmatpush1.msra.mxu0 0.0
      %2160 = vmatprep.subr.mxu0 0.0
      %2161 = vmatpush1.msra.mxu0 0.0
      %2162 = vmatprep.subr.mxu0 0.0
      %2163 = vmatpush1.msra.mxu0 0.0
      %2164 = vmatprep.subr.mxu0 0.0
      %2165 = vmatpush1.msra.mxu0 0.0
      %2166 = vmatprep.subr.mxu0 0.0
      %2167 = vmatpush1.msra.mxu0 0.0
      %2168 = vmatprep.subr.mxu0 0.0
      %2169 = vmatpush1.msra.mxu0 0.0
      %2170 = vmatprep.subr.mxu0 0.0
      %2171 = vmatpush1.msra.mxu0 0.0
      %2172 = vmatprep.subr.mxu0 0.0
      %2173 = vmatpush1.msra.mxu0 0.0
      %2174 = vmatprep.subr.mxu0 0.0
      %2175 = vmatpush1.msra.mxu0 0.0
      %2176 = vmatprep.subr.mxu0 0.0
      %2177 = vmatpush1.msra.mxu0 0.0
      %2178 = vmatprep.subr.mxu0 0.0
      %2179 = vmatpush1.msra.mxu0 0.0
      %2180 = vmatprep.subr.mxu0 0.0
      %2181 = vmatpush1.msra.mxu0 0.0
      %2182 = vmatprep.subr.mxu0 0.0
      %2183 = vmatpush1.msra.mxu0 0.0
      %2184 = vmatprep.subr.mxu0 0.0
      %2185 = vmatpush1.msra.mxu0 0.0
      %2186 = vmatprep.subr.mxu0 0.0
      %2187 = vmatpush1.msra.mxu0 0.0
      %2188 = vmatprep.subr.mxu0 0.0
      %2189 = vmatpush1.msra.mxu0 0.0
      %2190 = vmatprep.subr.mxu0 0.0
      %2191 = vmatpush1.msra.mxu0 0.0
      %2192 = vmatprep.subr.mxu0 0.0
      %2193 = vmatpush1.msra.mxu0 0.0
      %2194 = vmatprep.subr.mxu0 0.0
      %2195 = vmatpush1.msra.mxu0 0.0
      %2196 = vmatprep.subr.mxu0 0.0
      %2197 = vmatpush1.msra.mxu0 0.0
      %2198 = vmatprep.subr.mxu0 0.0
      %2199 = vmatpush1.msra.mxu0 0.0
      %2200 = vmatprep.subr.mxu0 0.0
      %2201 = vmatpush1.msra.mxu0 0.0
      %2202 = vmatprep.subr.mxu0 0.0
      %2203 = vmatpush1.msra.mxu0 0.0
      %2204 = vmatprep.subr.mxu0 0.0
      %2205 = vmatpush1.msra.mxu0 0.0
      %2206 = vmatprep.subr.mxu0 0.0
      %2207 = vmatpush1.msra.mxu0 0.0
      %2208 = vmatprep.subr.mxu0 0.0
      %2209 = vmatpush1.msra.mxu0 0.0
      %2210 = vmatprep.subr.mxu0 0.0
      %2211 = vmatpush1.msra.mxu0 0.0
      %2212 = vmatprep.subr.mxu0 0.0
      %2213 = vmatpush1.msra.mxu0 0.0
      %2214 = vmatprep.subr.mxu0 0.0
      %2215 = vmatpush1.msra.mxu0 0.0
      %2216 = vmatprep.subr.mxu0 0.0
      %2217 = vmatpush1.msra.mxu0 0.0
      %2218 = vmatprep.mubr.f32.mxu0 0.0
      %2219 = vmatmul.mubr.f32.gmra.mrb[0].mxu0 %v2152
      %v2220 = vpop.f32.mrb[0].mxu0
      %v2221 = vadd.f32 0.0, %v2220
      %v2222 = vpop.f32.mrb[0].mxu0
      %2223 = vdwg.mxu0
      %v2224 = vadd.f32 %v2139, %v2221
      %v2225 = vadd.f32 %v2224, %v1286
      %v2226 = vmul.f32 %v2225, 0.5
      %v2227 = vtanh.pop %v2226
      %v2228 = vmul.f32 %v2227, 0.5
      %v2229 = vadd.f32 %v2228, 0.5
      %v2230 = vtanh.pop %v2225
      %v2231 = vmul.f32 %v2229, %v2130
      %2233 = vrot.lane.b32.xlu0 %v2230, 118
      %v2234 = vpop.permute.xlu0 %2233
      %v2236 = vmul.f32 %v2229, %v2234
      %2238 = vrot.lane.b32.xlu0 %v2236, 5
      %v2239 = vpop.permute.xlu0 %2238
      %v2241 = vadd.f32 %v2231, %v2239
      %v2242 = vtanh.pop %v2241
      %2244 = vrot.lane.b32.xlu0 %v2242, 10
      %v2245 = vpop.permute.xlu0 %2244
      %v2247 = vmul.f32 %v2229, %v2245
      %v2248 = vrot.slane %v1370, 6
      %v2250 = vrot.slane %v1446, 6
      %v2252 = vsel %vm247, %v2248, %v2250
      %v2253 = vmul.f32 %v2247, %v1456
      %v2254 = vmul.f32 %v2247, %v1457
      %2256 = vrot.lane.b32.xlu0 %v2253, 113
      %v2257 = vpop.permute.xlu0 %2256
      %2260 = vrot.lane.b32.xlu0 %v2254, 118
      %v2261 = vpop.permute.xlu0 %2260
      %v2263 = vsel %vm241, %v2257, %v2261
      %v2265 = vsel %vm243, %v2263, 0
      %2267 = vmatprep.subr.mxu0 0.0
      %2268 = vmatpush1.msra.mxu0 %v1284
      %2269 = vmatprep.subr.mxu0 0.0
      %2270 = vmatpush1.msra.mxu0 %v1477
      %2271 = vmatprep.subr.mxu0 0.0
      %2272 = vmatpush1.msra.mxu0 0.0
      %2273 = vmatprep.subr.mxu0 0.0
      %2274 = vmatpush1.msra.mxu0 0.0
      %2275 = vmatprep.subr.mxu0 0.0
      %2276 = vmatpush1.msra.mxu0 0.0
      %2277 = vmatprep.subr.mxu0 0.0
      %2278 = vmatpush1.msra.mxu0 0.0
      %2279 = vmatprep.subr.mxu0 0.0
      %2280 = vmatpush1.msra.mxu0 0.0
      %2281 = vmatprep.subr.mxu0 0.0
      %2282 = vmatpush1.msra.mxu0 0.0
      %2283 = vmatprep.subr.mxu0 0.0
      %2284 = vmatpush1.msra.mxu0 0.0
      %2285 = vmatprep.subr.mxu0 0.0
      %2286 = vmatpush1.msra.mxu0 0.0
      %2287 = vmatprep.subr.mxu0 0.0
      %2288 = vmatpush1.msra.mxu0 0.0
      %2289 = vmatprep.subr.mxu0 0.0
      %2290 = vmatpush1.msra.mxu0 0.0
      %2291 = vmatprep.subr.mxu0 0.0
      %2292 = vmatpush1.msra.mxu0 0.0
      %2293 = vmatprep.subr.mxu0 0.0
      %2294 = vmatpush1.msra.mxu0 0.0
      %2295 = vmatprep.subr.mxu0 0.0
      %2296 = vmatpush1.msra.mxu0 0.0
      %2297 = vmatprep.subr.mxu0 0.0
      %2298 = vmatpush1.msra.mxu0 0.0
      %2299 = vmatprep.subr.mxu0 0.0
      %2300 = vmatpush1.msra.mxu0 0.0
      %2301 = vmatprep.subr.mxu0 0.0
      %2302 = vmatpush1.msra.mxu0 0.0
      %2303 = vmatprep.subr.mxu0 0.0
      %2304 = vmatpush1.msra.mxu0 0.0
      %2305 = vmatprep.subr.mxu0 0.0
      %2306 = vmatpush1.msra.mxu0 0.0
      %2307 = vmatprep.subr.mxu0 0.0
      %2308 = vmatpush1.msra.mxu0 0.0
      %2309 = vmatprep.subr.mxu0 0.0
      %2310 = vmatpush1.msra.mxu0 0.0
      %2311 = vmatprep.subr.mxu0 0.0
      %2312 = vmatpush1.msra.mxu0 0.0
      %2313 = vmatprep.subr.mxu0 0.0
      %2314 = vmatpush1.msra.mxu0 0.0
      %2315 = vmatprep.subr.mxu0 0.0
      %2316 = vmatpush1.msra.mxu0 0.0
      %2317 = vmatprep.subr.mxu0 0.0
      %2318 = vmatpush1.msra.mxu0 0.0
      %2319 = vmatprep.subr.mxu0 0.0
      %2320 = vmatpush1.msra.mxu0 0.0
      %2321 = vmatprep.subr.mxu0 0.0
      %2322 = vmatpush1.msra.mxu0 0.0
      %2323 = vmatprep.subr.mxu0 0.0
      %2324 = vmatpush1.msra.mxu0 0.0
      %2325 = vmatprep.subr.mxu0 0.0
      %2326 = vmatpush1.msra.mxu0 0.0
      %2327 = vmatprep.subr.mxu0 0.0
      %2328 = vmatpush1.msra.mxu0 0.0
      %2329 = vmatprep.subr.mxu0 0.0
      %2330 = vmatpush1.msra.mxu0 0.0
      %2331 = vmatprep.mubr.f32.mxu0 0.0
      %2332 = vmatmul.mubr.f32.gmra.mrb[0].mxu0 %v2265
      %v2333 = vpop.f32.mrb[0].mxu0
      %v2334 = vadd.f32 0.0, %v2333
      %v2335 = vpop.f32.mrb[0].mxu0
      %2336 = vdwg.mxu0
      %v2337 = vadd.f32 %v2252, %v2334
      %v2338 = vadd.f32 %v2337, %v1286
      %v2339 = vmul.f32 %v2338, 0.5
      %v2340 = vtanh.pop %v2339
      %v2341 = vmul.f32 %v2340, 0.5
      %v2342 = vadd.f32 %v2341, 0.5
      %v2343 = vtanh.pop %v2338
      %v2344 = vmul.f32 %v2342, %v2241
      %2346 = vrot.lane.b32.xlu0 %v2343, 118
      %v2347 = vpop.permute.xlu0 %2346
      %v2349 = vmul.f32 %v2342, %v2347
      %2351 = vrot.lane.b32.xlu0 %v2349, 5
      %v2352 = vpop.permute.xlu0 %2351
      %v2354 = vadd.f32 %v2344, %v2352
      %v2355 = vtanh.pop %v2354
      %2357 = vrot.lane.b32.xlu0 %v2355, 10
      %v2358 = vpop.permute.xlu0 %2357
      %v2360 = vmul.f32 %v2342, %v2358
      %2362 = vrot.lane.b32.xlu0 %v1572, 113
      %v2363 = vpop.permute.xlu0 %2362
      %v2366 = vrot.slane %v2360, 2
      %2367 = vrot.lane.b32.xlu0 %v2366, 118
      %v2368 = vpop.permute.xlu0 %2367
      %v2370 = vsel %vm241, %v2363, %v2368
      %2372 = vrot.lane.b32.xlu0 %v1686, 113
      %v2373 = vpop.permute.xlu0 %2372
      %v2376 = vrot.slane %v2247, 2
      %2377 = vrot.lane.b32.xlu0 %v2376, 118
      %v2378 = vpop.permute.xlu0 %2377
      %v2380 = vsel %vm241, %v2373, %v2378
      %2382 = vrot.lane.b32.xlu0 %v1797, 113
      %v2383 = vpop.permute.xlu0 %2382
      %v2386 = vrot.slane %v2136, 2
      %2387 = vrot.lane.b32.xlu0 %v2386, 118
      %v2388 = vpop.permute.xlu0 %2387
      %v2390 = vsel %vm241, %v2383, %v2388
      %2392 = vrot.lane.b32.xlu0 %v1910, 113
      %v2393 = vpop.permute.xlu0 %2392
      %v2396 = vrot.slane %v2022, 2
      %2397 = vrot.lane.b32.xlu0 %v2396, 118
      %v2398 = vpop.permute.xlu0 %2397
      %v2400 = vsel %vm241, %v2393, %v2398
      %2401 = vrot.lane.b32.xlu0 %v2022, 113
      %v2402 = vpop.permute.xlu0 %2401
      %v2404 = vrot.slane %v1910, 2
      %2405 = vrot.lane.b32.xlu0 %v2404, 118
      %v2406 = vpop.permute.xlu0 %2405
      %v2408 = vsel %vm241, %v2402, %v2406
      %2409 = vrot.lane.b32.xlu0 %v2136, 113
      %v2410 = vpop.permute.xlu0 %2409
      %v2412 = vrot.slane %v1797, 2
      %2413 = vrot.lane.b32.xlu0 %v2412, 118
      %v2414 = vpop.permute.xlu0 %2413
      %v2416 = vsel %vm241, %v2410, %v2414
      %2417 = vrot.lane.b32.xlu0 %v2247, 113
      %v2418 = vpop.permute.xlu0 %2417
      %v2420 = vrot.slane %v1686, 2
      %2421 = vrot.lane.b32.xlu0 %v2420, 118
      %v2422 = vpop.permute.xlu0 %2421
      %v2424 = vsel %vm241, %v2418, %v2422
      %2425 = vrot.lane.b32.xlu0 %v2360, 113
      %v2426 = vpop.permute.xlu0 %2425
      %v2428 = vrot.slane %v1572, 2
      %2429 = vrot.lane.b32.xlu0 %v2428, 118
      %v2430 = vpop.permute.xlu0 %2429
      %v2432 = vsel %vm241, %v2426, %v2430
      %v2434 = vrot.slane %v2380, 6
      %v2437 = vrot.slane %v2390, 4
      %v2440 = vrot.slane %v2400, 2
      %v2443 = vrot.slane %v2416, 6
      %v2446 = vrot.slane %v2424, 4
      %v2449 = vrot.slane %v2432, 2
      %v2451 = vsel %vm247, %v2370, %v2434
      %v2452 = vsel %vm1231, %v2451, %v2437
      %v2453 = vsel %vm1235, %v2452, %v2440
      %v2454 = vsel %vm247, %v2408, %v2443
      %v2455 = vsel %vm1231, %v2454, %v2446
      %v2456 = vsel %vm1235, %v2455, %v2449
      %v2457 = vrot.slane %v1276, 6
      %v2460 = vrot.slane %v2453, 6
      %v2462 = vrot.slane %v1276, 4
      %v2464 = vrot.slane %v2453, 4
      %v2466 = vrot.slane %v1276, 2
      %v2468 = vrot.slane %v2453, 2
      %v2470 = vrot.slane %v1283, 6
      %v2473 = vrot.slane %v2456, 6
      %v2475 = vrot.slane %v1283, 4
      %v2477 = vrot.slane %v2456, 4
      %v2479 = vrot.slane %v1283, 2
      %v2481 = vrot.slane %v2456, 2
      %v2483 = vsel %vm247, %v2453, %v2457
      %v2484 = vsel %vm1231, %v2483, %v2460
      %v2485 = vsel %vm1235, %v2484, %v2462
      %v2486 = vsel %vm247, %v2464, %v2466
      %v2487 = vsel %vm1231, %v2486, %v2468
      %v2488 = vsel %vm1235, %v2487, %v1276
      %v2489 = vsel %vm247, %v2456, %v2470
      %v2490 = vsel %vm1231, %v2489, %v2473
      %v2491 = vsel %vm1235, %v2490, %v2475
      %v2492 = vsel %vm247, %v2477, %v2479
      %v2493 = vsel %vm1231, %v2492, %v2481
      %v2494 = vsel %vm1235, %v2493, %v1283
      %v2495 = vld [vmem:[%s8] sm:$0xff]
      %v2496 = vld [vmem:[%s8 + $0x8] sm:$0x3]
      %v2497 = vld [vmem:[%s9] sm:$0xff]
      %v2498 = vld [vmem:[%s7] sm:$0xff]
      %v2499 = vld [vmem:[%s7 + $0x8] sm:$0x3]
      %v2501 = vsel %vm243, %v2485, 0
      %v2504 = vsel %vm243, %v2488, 0
      %v2507 = vsel %vm243, %v2491, 0
      %v2510 = vsel %vm243, %v2494, 0
      %v2513 = vsel %vm247, %v2499, 0
      %2515 = vmatprep.subr.mxu0 0.0
      %2516 = vmatpush1.msra.mxu0 %v2498
      %2517 = vmatprep.subr.mxu0 0.0
      %2518 = vmatpush1.msra.mxu0 %v2513
      %2519 = vmatprep.subr.mxu0 0.0
      %2520 = vmatpush1.msra.mxu0 0.0
      %2521 = vmatprep.subr.mxu0 0.0
      %2522 = vmatpush1.msra.mxu0 0.0
      %2523 = vmatprep.subr.mxu0 0.0
      %2524 = vmatpush1.msra.mxu0 0.0
      %2525 = vmatprep.subr.mxu0 0.0
      %2526 = vmatpush1.msra.mxu0 0.0
      %2527 = vmatprep.subr.mxu0 0.0
      %2528 = vmatpush1.msra.mxu0 0.0
      %2529 = vmatprep.subr.mxu0 0.0
      %2530 = vmatpush1.msra.mxu0 0.0
      %2531 = vmatprep.subr.mxu0 0.0
      %2532 = vmatpush1.msra.mxu0 0.0
      %2533 = vmatprep.subr.mxu0 0.0
      %2534 = vmatpush1.msra.mxu0 0.0
      %2535 = vmatprep.subr.mxu0 0.0
      %2536 = vmatpush1.msra.mxu0 0.0
      %2537 = vmatprep.subr.mxu0 0.0
      %2538 = vmatpush1.msra.mxu0 0.0
      %2539 = vmatprep.subr.mxu0 0.0
      %2540 = vmatpush1.msra.mxu0 0.0
      %2541 = vmatprep.subr.mxu0 0.0
      %2542 = vmatpush1.msra.mxu0 0.0
      %2543 = vmatprep.subr.mxu0 0.0
      %2544 = vmatpush1.msra.mxu0 0.0
      %2545 = vmatprep.subr.mxu0 0.0
      %2546 = vmatpush1.msra.mxu0 0.0
      %2547 = vmatprep.subr.mxu0 0.0
      %2548 = vmatpush1.msra.mxu0 0.0
      %2549 = vmatprep.subr.mxu0 0.0
      %2550 = vmatpush1.msra.mxu0 0.0
      %2551 = vmatprep.subr.mxu0 0.0
      %2552 = vmatpush1.msra.mxu0 0.0
      %2553 = vmatprep.subr.mxu0 0.0
      %2554 = vmatpush1.msra.mxu0 0.0
      %2555 = vmatprep.subr.mxu0 0.0
      %2556 = vmatpush1.msra.mxu0 0.0
      %2557 = vmatprep.subr.mxu0 0.0
      %2558 = vmatpush1.msra.mxu0 0.0
      %2559 = vmatprep.subr.mxu0 0.0
      %2560 = vmatpush1.msra.mxu0 0.0
      %2561 = vmatprep.subr.mxu0 0.0
      %2562 = vmatpush1.msra.mxu0 0.0
      %2563 = vmatprep.subr.mxu0 0.0
      %2564 = vmatpush1.msra.mxu0 0.0
      %2565 = vmatprep.subr.mxu0 0.0
      %2566 = vmatpush1.msra.mxu0 0.0
      %2567 = vmatprep.subr.mxu0 0.0
      %2568 = vmatpush1.msra.mxu0 0.0
      %2569 = vmatprep.subr.mxu0 0.0
      %2570 = vmatpush1.msra.mxu0 0.0
      %2571 = vmatprep.subr.mxu0 0.0
      %2572 = vmatpush1.msra.mxu0 0.0
      %2573 = vmatprep.subr.mxu0 0.0
      %2574 = vmatpush1.msra.mxu0 0.0
      %2575 = vmatprep.subr.mxu0 0.0
      %2576 = vmatpush1.msra.mxu0 0.0
      %2577 = vmatprep.subr.mxu0 0.0
      %2578 = vmatpush1.msra.mxu0 0.0
      %2579 = vmatprep.mubr.f32.mxu0 0.0
      %2580 = vmatmul.mubr.f32.gmra.mrb[0].mxu0 %v2501
      %v2581 = vpop.f32.mrb[0].mxu0
      %v2582 = vadd.f32 0.0, %v2581
      %v2583 = vpop.f32.mrb[0].mxu0
      %2584 = vmatprep.mubr.f32.mxu0 0.0
      %2585 = vmatmul.mubr.f32.gmra.mrb[0].mxu0 %v2504
      %v2586 = vpop.f32.mrb[0].mxu0
      %v2587 = vadd.f32 0.0, %v2586
      %v2588 = vpop.f32.mrb[0].mxu0
      %2589 = vmatprep.mubr.f32.mxu0 0.0
      %2590 = vmatmul.mubr.f32.gmra.mrb[0].mxu0 %v2507
      %v2591 = vpop.f32.mrb[0].mxu0
      %v2592 = vadd.f32 0.0, %v2591
      %v2593 = vpop.f32.mrb[0].mxu0
      %2594 = vmatprep.mubr.f32.mxu0 0.0
      %2595 = vmatmul.mubr.f32.gmra.mrb[0].mxu0 %v2510
      %v2596 = vpop.f32.mrb[0].mxu0
      %v2597 = vadd.f32 0.0, %v2596
      %v2598 = vpop.f32.mrb[0].mxu0
      %2599 = vdwg.mxu0
      %s2600 = scalar_lea.vmem %s7, 16
      %v2601 = vld [vmem:[%s2600] sm:$0xff]
      %v2602 = vld [vmem:[%s2600 + $0x8] sm:$0x3]
      %v2604 = vsel %vm247, %v2602, 0
      %2606 = vmatprep.subr.mxu0 0.0
      %2607 = vmatpush1.msra.mxu0 %v2601
      %2608 = vmatprep.subr.mxu0 0.0
      %2609 = vmatpush1.msra.mxu0 %v2604
      %2610 = vmatprep.subr.mxu0 0.0
      %2611 = vmatpush1.msra.mxu0 0.0
      %2612 = vmatprep.subr.mxu0 0.0
      %2613 = vmatpush1.msra.mxu0 0.0
      %2614 = vmatprep.subr.mxu0 0.0
      %2615 = vmatpush1.msra.mxu0 0.0
      %2616 = vmatprep.subr.mxu0 0.0
      %2617 = vmatpush1.msra.mxu0 0.0
      %2618 = vmatprep.subr.mxu0 0.0
      %2619 = vmatpush1.msra.mxu0 0.0
      %2620 = vmatprep.subr.mxu0 0.0
      %2621 = vmatpush1.msra.mxu0 0.0
      %2622 = vmatprep.subr.mxu0 0.0
      %2623 = vmatpush1.msra.mxu0 0.0
      %2624 = vmatprep.subr.mxu0 0.0
      %2625 = vmatpush1.msra.mxu0 0.0
      %2626 = vmatprep.subr.mxu0 0.0
      %2627 = vmatpush1.msra.mxu0 0.0
      %2628 = vmatprep.subr.mxu0 0.0
      %2629 = vmatpush1.msra.mxu0 0.0
      %2630 = vmatprep.subr.mxu0 0.0
      %2631 = vmatpush1.msra.mxu0 0.0
      %2632 = vmatprep.subr.mxu0 0.0
      %2633 = vmatpush1.msra.mxu0 0.0
      %2634 = vmatprep.subr.mxu0 0.0
      %2635 = vmatpush1.msra.mxu0 0.0
      %2636 = vmatprep.subr.mxu0 0.0
      %2637 = vmatpush1.msra.mxu0 0.0
      %2638 = vmatprep.subr.mxu0 0.0
      %2639 = vmatpush1.msra.mxu0 0.0
      %2640 = vmatprep.subr.mxu0 0.0
      %2641 = vmatpush1.msra.mxu0 0.0
      %2642 = vmatprep.subr.mxu0 0.0
      %2643 = vmatpush1.msra.mxu0 0.0
      %2644 = vmatprep.subr.mxu0 0.0
      %2645 = vmatpush1.msra.mxu0 0.0
      %2646 = vmatprep.subr.mxu0 0.0
      %2647 = vmatpush1.msra.mxu0 0.0
      %2648 = vmatprep.subr.mxu0 0.0
      %2649 = vmatpush1.msra.mxu0 0.0
      %2650 = vmatprep.subr.mxu0 0.0
      %2651 = vmatpush1.msra.mxu0 0.0
      %2652 = vmatprep.subr.mxu0 0.0
      %2653 = vmatpush1.msra.mxu0 0.0
      %2654 = vmatprep.subr.mxu0 0.0
      %2655 = vmatpush1.msra.mxu0 0.0
      %2656 = vmatprep.subr.mxu0 0.0
      %2657 = vmatpush1.msra.mxu0 0.0
      %2658 = vmatprep.subr.mxu0 0.0
      %2659 = vmatpush1.msra.mxu0 0.0
      %2660 = vmatprep.subr.mxu0 0.0
      %2661 = vmatpush1.msra.mxu0 0.0
      %2662 = vmatprep.subr.mxu0 0.0
      %2663 = vmatpush1.msra.mxu0 0.0
      %2664 = vmatprep.subr.mxu0 0.0
      %2665 = vmatpush1.msra.mxu0 0.0
      %2666 = vmatprep.subr.mxu0 0.0
      %2667 = vmatpush1.msra.mxu0 0.0
      %2668 = vmatprep.subr.mxu0 0.0
      %2669 = vmatpush1.msra.mxu0 0.0
      %2670 = vmatprep.mubr.f32.mxu0 0.0
      %2671 = vmatmul.mubr.f32.gmra.mrb[0].mxu0 %v2501
      %v2672 = vpop.f32.mrb[0].mxu0
      %v2673 = vadd.f32 0.0, %v2672
      %v2674 = vpop.f32.mrb[0].mxu0
      %2675 = vmatprep.mubr.f32.mxu0 0.0
      %2676 = vmatmul.mubr.f32.gmra.mrb[0].mxu0 %v2504
      %v2677 = vpop.f32.mrb[0].mxu0
      %v2678 = vadd.f32 0.0, %v2677
      %v2679 = vpop.f32.mrb[0].mxu0
      %2680 = vmatprep.mubr.f32.mxu0 0.0
      %2681 = vmatmul.mubr.f32.gmra.mrb[0].mxu0 %v2507
      %v2682 = vpop.f32.mrb[0].mxu0
      %v2683 = vadd.f32 0.0, %v2682
      %v2684 = vpop.f32.mrb[0].mxu0
      %2685 = vmatprep.mubr.f32.mxu0 0.0
      %2686 = vmatmul.mubr.f32.gmra.mrb[0].mxu0 %v2510
      %v2687 = vpop.f32.mrb[0].mxu0
      %v2688 = vadd.f32 0.0, %v2687
      %v2689 = vpop.f32.mrb[0].mxu0
      %2690 = vdwg.mxu0
      %vm2691 = vcmp.lt.s32.totalorder %v221, 4
      %v2692 = vsel %vm2691, 1, 0
      %v2693 = vcvt.s32.f32 %v2692
      %v2694 = vsub.f32 1.0, %v2693
      %v2695 = vsel %vm1231, %v2582, %v2688
      %v2696 = vmul.f32 %v58, %v2693
      %v2697 = vmul.f32 %v58, %v2694
      %2699 = vrot.lane.b32.xlu0 %v2696, 113
      %v2700 = vpop.permute.xlu0 %2699
      %2703 = vrot.lane.b32.xlu0 %v2697, 118
      %v2704 = vpop.permute.xlu0 %2703
      %v2706 = vsel %vm241, %v2700, %v2704
      %v2708 = vsel %vm243, %v2706, 0
      %v2711 = vsel %vm247, %v2496, 0
      %2713 = vmatprep.subr.mxu0 0.0
      %2714 = vmatpush1.msra.mxu0 %v2495
      %2715 = vmatprep.subr.mxu0 0.0
      %2716 = vmatpush1.msra.mxu0 %v2711
      %2717 = vmatprep.subr.mxu0 0.0
      %2718 = vmatpush1.msra.mxu0 0.0
      %2719 = vmatprep.subr.mxu0 0.0
      %2720 = vmatpush1.msra.mxu0 0.0
      %2721 = vmatprep.subr.mxu0 0.0
      %2722 = vmatpush1.msra.mxu0 0.0
      %2723 = vmatprep.subr.mxu0 0.0
      %2724 = vmatpush1.msra.mxu0 0.0
      %2725 = vmatprep.subr.mxu0 0.0
      %2726 = vmatpush1.msra.mxu0 0.0
      %2727 = vmatprep.subr.mxu0 0.0
      %2728 = vmatpush1.msra.mxu0 0.0
      %2729 = vmatprep.subr.mxu0 0.0
      %2730 = vmatpush1.msra.mxu0 0.0
      %2731 = vmatprep.subr.mxu0 0.0
      %2732 = vmatpush1.msra.mxu0 0.0
      %2733 = vmatprep.subr.mxu0 0.0
      %2734 = vmatpush1.msra.mxu0 0.0
      %2735 = vmatprep.subr.mxu0 0.0
      %2736 = vmatpush1.msra.mxu0 0.0
      %2737 = vmatprep.subr.mxu0 0.0
      %2738 = vmatpush1.msra.mxu0 0.0
      %2739 = vmatprep.subr.mxu0 0.0
      %2740 = vmatpush1.msra.mxu0 0.0
      %2741 = vmatprep.subr.mxu0 0.0
      %2742 = vmatpush1.msra.mxu0 0.0
      %2743 = vmatprep.subr.mxu0 0.0
      %2744 = vmatpush1.msra.mxu0 0.0
      %2745 = vmatprep.subr.mxu0 0.0
      %2746 = vmatpush1.msra.mxu0 0.0
      %2747 = vmatprep.subr.mxu0 0.0
      %2748 = vmatpush1.msra.mxu0 0.0
      %2749 = vmatprep.subr.mxu0 0.0
      %2750 = vmatpush1.msra.mxu0 0.0
      %2751 = vmatprep.subr.mxu0 0.0
      %2752 = vmatpush1.msra.mxu0 0.0
      %2753 = vmatprep.subr.mxu0 0.0
      %2754 = vmatpush1.msra.mxu0 0.0
      %2755 = vmatprep.subr.mxu0 0.0
      %2756 = vmatpush1.msra.mxu0 0.0
      %2757 = vmatprep.subr.mxu0 0.0
      %2758 = vmatpush1.msra.mxu0 0.0
      %2759 = vmatprep.subr.mxu0 0.0
      %2760 = vmatpush1.msra.mxu0 0.0
      %2761 = vmatprep.subr.mxu0 0.0
      %2762 = vmatpush1.msra.mxu0 0.0
      %2763 = vmatprep.subr.mxu0 0.0
      %2764 = vmatpush1.msra.mxu0 0.0
      %2765 = vmatprep.subr.mxu0 0.0
      %2766 = vmatpush1.msra.mxu0 0.0
      %2767 = vmatprep.subr.mxu0 0.0
      %2768 = vmatpush1.msra.mxu0 0.0
      %2769 = vmatprep.subr.mxu0 0.0
      %2770 = vmatpush1.msra.mxu0 0.0
      %2771 = vmatprep.subr.mxu0 0.0
      %2772 = vmatpush1.msra.mxu0 0.0
      %2773 = vmatprep.subr.mxu0 0.0
      %2774 = vmatpush1.msra.mxu0 0.0
      %2775 = vmatprep.subr.mxu0 0.0
      %2776 = vmatpush1.msra.mxu0 0.0
      %2777 = vmatprep.mubr.f32.mxu0 0.0
      %2778 = vmatmul.mubr.f32.gmra.mrb[0].mxu0 %v2708
      %v2779 = vpop.f32.mrb[0].mxu0
      %v2780 = vadd.f32 0.0, %v2779
      %v2781 = vpop.f32.mrb[0].mxu0
      %2782 = vdwg.mxu0
      %v2783 = vadd.f32 %v2695, %v2780
      %v2784 = vadd.f32 %v2783, %v2497
      %v2785 = vmul.f32 %v2784, 0.5
      %v2786 = vtanh.pop %v2785
      %v2787 = vmul.f32 %v2786, 0.5
      %v2788 = vadd.f32 %v2787, 0.5
      %v2789 = vtanh.pop %v2784
      %v2790 = vmul.f32 %v2788, %v59
      %2792 = vrot.lane.b32.xlu0 %v2789, 118
      %v2793 = vpop.permute.xlu0 %2792
      %v2795 = vmul.f32 %v2788, %v2793
      %2797 = vrot.lane.b32.xlu0 %v2795, 5
      %v2798 = vpop.permute.xlu0 %2797
      %v2800 = vadd.f32 %v2790, %v2798
      %v2801 = vtanh.pop %v2800
      %2803 = vrot.lane.b32.xlu0 %v2801, 10
      %v2804 = vpop.permute.xlu0 %2803
      %v2806 = vmul.f32 %v2788, %v2804
      %v2808 = vrot.slane %v2582, 4
      %v2811 = vrot.slane %v2688, 4
      %v2813 = vsel %vm1231, %v2808, %v2811
      %v2814 = vmul.f32 %v2806, %v2693
      %v2815 = vmul.f32 %v2806, %v2694
      %2817 = vrot.lane.b32.xlu0 %v2814, 113
      %v2818 = vpop.permute.xlu0 %2817
      %2821 = vrot.lane.b32.xlu0 %v2815, 118
      %v2822 = vpop.permute.xlu0 %2821
      %v2824 = vsel %vm241, %v2818, %v2822
      %v2826 = vsel %vm243, %v2824, 0
      %2828 = vmatprep.subr.mxu0 0.0
      %2829 = vmatpush1.msra.mxu0 %v2495
      %2830 = vmatprep.subr.mxu0 0.0
      %2831 = vmatpush1.msra.mxu0 %v2711
      %2832 = vmatprep.subr.mxu0 0.0
      %2833 = vmatpush1.msra.mxu0 0.0
      %2834 = vmatprep.subr.mxu0 0.0
      %2835 = vmatpush1.msra.mxu0 0.0
      %2836 = vmatprep.subr.mxu0 0.0
      %2837 = vmatpush1.msra.mxu0 0.0
      %2838 = vmatprep.subr.mxu0 0.0
      %2839 = vmatpush1.msra.mxu0 0.0
      %2840 = vmatprep.subr.mxu0 0.0
      %2841 = vmatpush1.msra.mxu0 0.0
      %2842 = vmatprep.subr.mxu0 0.0
      %2843 = vmatpush1.msra.mxu0 0.0
      %2844 = vmatprep.subr.mxu0 0.0
      %2845 = vmatpush1.msra.mxu0 0.0
      %2846 = vmatprep.subr.mxu0 0.0
      %2847 = vmatpush1.msra.mxu0 0.0
      %2848 = vmatprep.subr.mxu0 0.0
      %2849 = vmatpush1.msra.mxu0 0.0
      %2850 = vmatprep.subr.mxu0 0.0
      %2851 = vmatpush1.msra.mxu0 0.0
      %2852 = vmatprep.subr.mxu0 0.0
      %2853 = vmatpush1.msra.mxu0 0.0
      %2854 = vmatprep.subr.mxu0 0.0
      %2855 = vmatpush1.msra.mxu0 0.0
      %2856 = vmatprep.subr.mxu0 0.0
      %2857 = vmatpush1.msra.mxu0 0.0
      %2858 = vmatprep.subr.mxu0 0.0
      %2859 = vmatpush1.msra.mxu0 0.0
      %2860 = vmatprep.subr.mxu0 0.0
      %2861 = vmatpush1.msra.mxu0 0.0
      %2862 = vmatprep.subr.mxu0 0.0
      %2863 = vmatpush1.msra.mxu0 0.0
      %2864 = vmatprep.subr.mxu0 0.0
      %2865 = vmatpush1.msra.mxu0 0.0
      %2866 = vmatprep.subr.mxu0 0.0
      %2867 = vmatpush1.msra.mxu0 0.0
      %2868 = vmatprep.subr.mxu0 0.0
      %2869 = vmatpush1.msra.mxu0 0.0
      %2870 = vmatprep.subr.mxu0 0.0
      %2871 = vmatpush1.msra.mxu0 0.0
      %2872 = vmatprep.subr.mxu0 0.0
      %2873 = vmatpush1.msra.mxu0 0.0
      %2874 = vmatprep.subr.mxu0 0.0
      %2875 = vmatpush1.msra.mxu0 0.0
      %2876 = vmatprep.subr.mxu0 0.0
      %2877 = vmatpush1.msra.mxu0 0.0
      %2878 = vmatprep.subr.mxu0 0.0
      %2879 = vmatpush1.msra.mxu0 0.0
      %2880 = vmatprep.subr.mxu0 0.0
      %2881 = vmatpush1.msra.mxu0 0.0
      %2882 = vmatprep.subr.mxu0 0.0
      %2883 = vmatpush1.msra.mxu0 0.0
      %2884 = vmatprep.subr.mxu0 0.0
      %2885 = vmatpush1.msra.mxu0 0.0
      %2886 = vmatprep.subr.mxu0 0.0
      %2887 = vmatpush1.msra.mxu0 0.0
      %2888 = vmatprep.subr.mxu0 0.0
      %2889 = vmatpush1.msra.mxu0 0.0
      %2890 = vmatprep.subr.mxu0 0.0
      %2891 = vmatpush1.msra.mxu0 0.0
      %2892 = vmatprep.mubr.f32.mxu0 0.0
      %2893 = vmatmul.mubr.f32.gmra.mrb[0].mxu0 %v2826
      %v2894 = vpop.f32.mrb[0].mxu0
      %v2895 = vadd.f32 0.0, %v2894
      %v2896 = vpop.f32.mrb[0].mxu0
      %2897 = vdwg.mxu0
      %v2898 = vadd.f32 %v2813, %v2895
      %v2899 = vadd.f32 %v2898, %v2497
      %v2900 = vmul.f32 %v2899, 0.5
      %v2901 = vtanh.pop %v2900
      %v2902 = vmul.f32 %v2901, 0.5
      %v2903 = vadd.f32 %v2902, 0.5
      %v2904 = vtanh.pop %v2899
      %v2905 = vmul.f32 %v2903, %v2800
      %2907 = vrot.lane.b32.xlu0 %v2904, 118
      %v2908 = vpop.permute.xlu0 %2907
      %v2910 = vmul.f32 %v2903, %v2908
      %2912 = vrot.lane.b32.xlu0 %v2910, 5
      %v2913 = vpop.permute.xlu0 %2912
      %v2915 = vadd.f32 %v2905, %v2913
      %v2916 = vtanh.pop %v2915
      %2918 = vrot.lane.b32.xlu0 %v2916, 10
      %v2919 = vpop.permute.xlu0 %2918
      %v2921 = vmul.f32 %v2903, %v2919
      %v2922 = vsel %vm1231, %v2587, %v2683
      %v2923 = vmul.f32 %v2921, %v2693
      %v2924 = vmul.f32 %v2921, %v2694
      %2926 = vrot.lane.b32.xlu0 %v2923, 113
      %v2927 = vpop.permute.xlu0 %2926
      %2930 = vrot.lane.b32.xlu0 %v2924, 118
      %v2931 = vpop.permute.xlu0 %2930
      %v2933 = vsel %vm241, %v2927, %v2931
      %v2935 = vsel %vm243, %v2933, 0
      %2937 = vmatprep.subr.mxu0 0.0
      %2938 = vmatpush1.msra.mxu0 %v2495
      %2939 = vmatprep.subr.mxu0 0.0
      %2940 = vmatpush1.msra.mxu0 %v2711
      %2941 = vmatprep.subr.mxu0 0.0
      %2942 = vmatpush1.msra.mxu0 0.0
      %2943 = vmatprep.subr.mxu0 0.0
      %2944 = vmatpush1.msra.mxu0 0.0
      %2945 = vmatprep.subr.mxu0 0.0
      %2946 = vmatpush1.msra.mxu0 0.0
      %2947 = vmatprep.subr.mxu0 0.0
      %2948 = vmatpush1.msra.mxu0 0.0
      %2949 = vmatprep.subr.mxu0 0.0
      %2950 = vmatpush1.msra.mxu0 0.0
      %2951 = vmatprep.subr.mxu0 0.0
      %2952 = vmatpush1.msra.mxu0 0.0
      %2953 = vmatprep.subr.mxu0 0.0
      %2954 = vmatpush1.msra.mxu0 0.0
      %2955 = vmatprep.subr.mxu0 0.0
      %2956 = vmatpush1.msra.mxu0 0.0
      %2957 = vmatprep.subr.mxu0 0.0
      %2958 = vmatpush1.msra.mxu0 0.0
      %2959 = vmatprep.subr.mxu0 0.0
      %2960 = vmatpush1.msra.mxu0 0.0
      %2961 = vmatprep.subr.mxu0 0.0
      %2962 = vmatpush1.msra.mxu0 0.0
      %2963 = vmatprep.subr.mxu0 0.0
      %2964 = vmatpush1.msra.mxu0 0.0
      %2965 = vmatprep.subr.mxu0 0.0
      %2966 = vmatpush1.msra.mxu0 0.0
      %2967 = vmatprep.subr.mxu0 0.0
      %2968 = vmatpush1.msra.mxu0 0.0
      %2969 = vmatprep.subr.mxu0 0.0
      %2970 = vmatpush1.msra.mxu0 0.0
      %2971 = vmatprep.subr.mxu0 0.0
      %2972 = vmatpush1.msra.mxu0 0.0
      %2973 = vmatprep.subr.mxu0 0.0
      %2974 = vmatpush1.msra.mxu0 0.0
      %2975 = vmatprep.subr.mxu0 0.0
      %2976 = vmatpush1.msra.mxu0 0.0
      %2977 = vmatprep.subr.mxu0 0.0
      %2978 = vmatpush1.msra.mxu0 0.0
      %2979 = vmatprep.subr.mxu0 0.0
      %2980 = vmatpush1.msra.mxu0 0.0
      %2981 = vmatprep.subr.mxu0 0.0
      %2982 = vmatpush1.msra.mxu0 0.0
      %2983 = vmatprep.subr.mxu0 0.0
      %2984 = vmatpush1.msra.mxu0 0.0
      %2985 = vmatprep.subr.mxu0 0.0
      %2986 = vmatpush1.msra.mxu0 0.0
      %2987 = vmatprep.subr.mxu0 0.0
      %2988 = vmatpush1.msra.mxu0 0.0
      %2989 = vmatprep.subr.mxu0 0.0
      %2990 = vmatpush1.msra.mxu0 0.0
      %2991 = vmatprep.subr.mxu0 0.0
      %2992 = vmatpush1.msra.mxu0 0.0
      %2993 = vmatprep.subr.mxu0 0.0
      %2994 = vmatpush1.msra.mxu0 0.0
      %2995 = vmatprep.subr.mxu0 0.0
      %2996 = vmatpush1.msra.mxu0 0.0
      %2997 = vmatprep.subr.mxu0 0.0
      %2998 = vmatpush1.msra.mxu0 0.0
      %2999 = vmatprep.subr.mxu0 0.0
      %3000 = vmatpush1.msra.mxu0 0.0
      %3001 = vmatprep.mubr.f32.mxu0 0.0
      %3002 = vmatmul.mubr.f32.gmra.mrb[0].mxu0 %v2935
      %v3003 = vpop.f32.mrb[0].mxu0
      %v3004 = vadd.f32 0.0, %v3003
      %v3005 = vpop.f32.mrb[0].mxu0
      %3006 = vdwg.mxu0
      %v3007 = vadd.f32 %v2922, %v3004
      %v3008 = vadd.f32 %v3007, %v2497
      %v3009 = vmul.f32 %v3008, 0.5
      %v3010 = vtanh.pop %v3009
      %v3011 = vmul.f32 %v3010, 0.5
      %v3012 = vadd.f32 %v3011, 0.5
      %v3013 = vtanh.pop %v3008
      %v3014 = vmul.f32 %v3012, %v2915
      %3016 = vrot.lane.b32.xlu0 %v3013, 118
      %v3017 = vpop.permute.xlu0 %3016
      %v3019 = vmul.f32 %v3012, %v3017
      %3021 = vrot.lane.b32.xlu0 %v3019, 5
      %v3022 = vpop.permute.xlu0 %3021
      %v3024 = vadd.f32 %v3014, %v3022
      %v3025 = vtanh.pop %v3024
      %3027 = vrot.lane.b32.xlu0 %v3025, 10
      %v3028 = vpop.permute.xlu0 %3027
      %v3030 = vmul.f32 %v3012, %v3028
      %v3032 = vrot.slane %v2587, 4
      %v3035 = vrot.slane %v2683, 4
      %v3037 = vsel %vm1231, %v3032, %v3035
      %v3038 = vmul.f32 %v3030, %v2693
      %v3039 = vmul.f32 %v3030, %v2694
      %3041 = vrot.lane.b32.xlu0 %v3038, 113
      %v3042 = vpop.permute.xlu0 %3041
      %3045 = vrot.lane.b32.xlu0 %v3039, 118
      %v3046 = vpop.permute.xlu0 %3045
      %v3048 = vsel %vm241, %v3042, %v3046
      %v3050 = vsel %vm243, %v3048, 0
      %3052 = vmatprep.subr.mxu0 0.0
      %3053 = vmatpush1.msra.mxu0 %v2495
      %3054 = vmatprep.subr.mxu0 0.0
      %3055 = vmatpush1.msra.mxu0 %v2711
      %3056 = vmatprep.subr.mxu0 0.0
      %3057 = vmatpush1.msra.mxu0 0.0
      %3058 = vmatprep.subr.mxu0 0.0
      %3059 = vmatpush1.msra.mxu0 0.0
      %3060 = vmatprep.subr.mxu0 0.0
      %3061 = vmatpush1.msra.mxu0 0.0
      %3062 = vmatprep.subr.mxu0 0.0
      %3063 = vmatpush1.msra.mxu0 0.0
      %3064 = vmatprep.subr.mxu0 0.0
      %3065 = vmatpush1.msra.mxu0 0.0
      %3066 = vmatprep.subr.mxu0 0.0
      %3067 = vmatpush1.msra.mxu0 0.0
      %3068 = vmatprep.subr.mxu0 0.0
      %3069 = vmatpush1.msra.mxu0 0.0
      %3070 = vmatprep.subr.mxu0 0.0
      %3071 = vmatpush1.msra.mxu0 0.0
      %3072 = vmatprep.subr.mxu0 0.0
      %3073 = vmatpush1.msra.mxu0 0.0
      %3074 = vmatprep.subr.mxu0 0.0
      %3075 = vmatpush1.msra.mxu0 0.0
      %3076 = vmatprep.subr.mxu0 0.0
      %3077 = vmatpush1.msra.mxu0 0.0
      %3078 = vmatprep.subr.mxu0 0.0
      %3079 = vmatpush1.msra.mxu0 0.0
      %3080 = vmatprep.subr.mxu0 0.0
      %3081 = vmatpush1.msra.mxu0 0.0
      %3082 = vmatprep.subr.mxu0 0.0
      %3083 = vmatpush1.msra.mxu0 0.0
      %3084 = vmatprep.subr.mxu0 0.0
      %3085 = vmatpush1.msra.mxu0 0.0
      %3086 = vmatprep.subr.mxu0 0.0
      %3087 = vmatpush1.msra.mxu0 0.0
      %3088 = vmatprep.subr.mxu0 0.0
      %3089 = vmatpush1.msra.mxu0 0.0
      %3090 = vmatprep.subr.mxu0 0.0
      %3091 = vmatpush1.msra.mxu0 0.0
      %3092 = vmatprep.subr.mxu0 0.0
      %3093 = vmatpush1.msra.mxu0 0.0
      %3094 = vmatprep.subr.mxu0 0.0
      %3095 = vmatpush1.msra.mxu0 0.0
      %3096 = vmatprep.subr.mxu0 0.0
      %3097 = vmatpush1.msra.mxu0 0.0
      %3098 = vmatprep.subr.mxu0 0.0
      %3099 = vmatpush1.msra.mxu0 0.0
      %3100 = vmatprep.subr.mxu0 0.0
      %3101 = vmatpush1.msra.mxu0 0.0
      %3102 = vmatprep.subr.mxu0 0.0
      %3103 = vmatpush1.msra.mxu0 0.0
      %3104 = vmatprep.subr.mxu0 0.0
      %3105 = vmatpush1.msra.mxu0 0.0
      %3106 = vmatprep.subr.mxu0 0.0
      %3107 = vmatpush1.msra.mxu0 0.0
      %3108 = vmatprep.subr.mxu0 0.0
      %3109 = vmatpush1.msra.mxu0 0.0
      %3110 = vmatprep.subr.mxu0 0.0
      %3111 = vmatpush1.msra.mxu0 0.0
      %3112 = vmatprep.subr.mxu0 0.0
      %3113 = vmatpush1.msra.mxu0 0.0
      %3114 = vmatprep.subr.mxu0 0.0
      %3115 = vmatpush1.msra.mxu0 0.0
      %3116 = vmatprep.mubr.f32.mxu0 0.0
      %3117 = vmatmul.mubr.f32.gmra.mrb[0].mxu0 %v3050
      %v3118 = vpop.f32.mrb[0].mxu0
      %v3119 = vadd.f32 0.0, %v3118
      %v3120 = vpop.f32.mrb[0].mxu0
      %3121 = vdwg.mxu0
      %v3122 = vadd.f32 %v3037, %v3119
      %v3123 = vadd.f32 %v3122, %v2497
      %v3124 = vmul.f32 %v3123, 0.5
      %v3125 = vtanh.pop %v3124
      %v3126 = vmul.f32 %v3125, 0.5
      %v3127 = vadd.f32 %v3126, 0.5
      %v3128 = vtanh.pop %v3123
      %v3129 = vmul.f32 %v3127, %v3024
      %3131 = vrot.lane.b32.xlu0 %v3128, 118
      %v3132 = vpop.permute.xlu0 %3131
      %v3134 = vmul.f32 %v3127, %v3132
      %3136 = vrot.lane.b32.xlu0 %v3134, 5
      %v3137 = vpop.permute.xlu0 %3136
      %v3139 = vadd.f32 %v3129, %v3137
      %v3140 = vtanh.pop %v3139
      %3142 = vrot.lane.b32.xlu0 %v3140, 10
      %v3143 = vpop.permute.xlu0 %3142
      %v3145 = vmul.f32 %v3127, %v3143
      %v3146 = vsel %vm1231, %v2592, %v2678
      %v3147 = vmul.f32 %v3145, %v2693
      %v3148 = vmul.f32 %v3145, %v2694
      %3150 = vrot.lane.b32.xlu0 %v3147, 113
      %v3151 = vpop.permute.xlu0 %3150
      %3154 = vrot.lane.b32.xlu0 %v3148, 118
      %v3155 = vpop.permute.xlu0 %3154
      %v3157 = vsel %vm241, %v3151, %v3155
      %v3159 = vsel %vm243, %v3157, 0
      %3161 = vmatprep.subr.mxu0 0.0
      %3162 = vmatpush1.msra.mxu0 %v2495
      %3163 = vmatprep.subr.mxu0 0.0
      %3164 = vmatpush1.msra.mxu0 %v2711
      %3165 = vmatprep.subr.mxu0 0.0
      %3166 = vmatpush1.msra.mxu0 0.0
      %3167 = vmatprep.subr.mxu0 0.0
      %3168 = vmatpush1.msra.mxu0 0.0
      %3169 = vmatprep.subr.mxu0 0.0
      %3170 = vmatpush1.msra.mxu0 0.0
      %3171 = vmatprep.subr.mxu0 0.0
      %3172 = vmatpush1.msra.mxu0 0.0
      %3173 = vmatprep.subr.mxu0 0.0
      %3174 = vmatpush1.msra.mxu0 0.0
      %3175 = vmatprep.subr.mxu0 0.0
      %3176 = vmatpush1.msra.mxu0 0.0
      %3177 = vmatprep.subr.mxu0 0.0
      %3178 = vmatpush1.msra.mxu0 0.0
      %3179 = vmatprep.subr.mxu0 0.0
      %3180 = vmatpush1.msra.mxu0 0.0
      %3181 = vmatprep.subr.mxu0 0.0
      %3182 = vmatpush1.msra.mxu0 0.0
      %3183 = vmatprep.subr.mxu0 0.0
      %3184 = vmatpush1.msra.mxu0 0.0
      %3185 = vmatprep.subr.mxu0 0.0
      %3186 = vmatpush1.msra.mxu0 0.0
      %3187 = vmatprep.subr.mxu0 0.0
      %3188 = vmatpush1.msra.mxu0 0.0
      %3189 = vmatprep.subr.mxu0 0.0
      %3190 = vmatpush1.msra.mxu0 0.0
      %3191 = vmatprep.subr.mxu0 0.0
      %3192 = vmatpush1.msra.mxu0 0.0
      %3193 = vmatprep.subr.mxu0 0.0
      %3194 = vmatpush1.msra.mxu0 0.0
      %3195 = vmatprep.subr.mxu0 0.0
      %3196 = vmatpush1.msra.mxu0 0.0
      %3197 = vmatprep.subr.mxu0 0.0
      %3198 = vmatpush1.msra.mxu0 0.0
      %3199 = vmatprep.subr.mxu0 0.0
      %3200 = vmatpush1.msra.mxu0 0.0
      %3201 = vmatprep.subr.mxu0 0.0
      %3202 = vmatpush1.msra.mxu0 0.0
      %3203 = vmatprep.subr.mxu0 0.0
      %3204 = vmatpush1.msra.mxu0 0.0
      %3205 = vmatprep.subr.mxu0 0.0
      %3206 = vmatpush1.msra.mxu0 0.0
      %3207 = vmatprep.subr.mxu0 0.0
      %3208 = vmatpush1.msra.mxu0 0.0
      %3209 = vmatprep.subr.mxu0 0.0
      %3210 = vmatpush1.msra.mxu0 0.0
      %3211 = vmatprep.subr.mxu0 0.0
      %3212 = vmatpush1.msra.mxu0 0.0
      %3213 = vmatprep.subr.mxu0 0.0
      %3214 = vmatpush1.msra.mxu0 0.0
      %3215 = vmatprep.subr.mxu0 0.0
      %3216 = vmatpush1.msra.mxu0 0.0
      %3217 = vmatprep.subr.mxu0 0.0
      %3218 = vmatpush1.msra.mxu0 0.0
      %3219 = vmatprep.subr.mxu0 0.0
      %3220 = vmatpush1.msra.mxu0 0.0
      %3221 = vmatprep.subr.mxu0 0.0
      %3222 = vmatpush1.msra.mxu0 0.0
      %3223 = vmatprep.subr.mxu0 0.0
      %3224 = vmatpush1.msra.mxu0 0.0
      %3225 = vmatprep.mubr.f32.mxu0 0.0
      %3226 = vmatmul.mubr.f32.gmra.mrb[0].mxu0 %v3159
      %v3227 = vpop.f32.mrb[0].mxu0
      %v3228 = vadd.f32 0.0, %v3227
      %v3229 = vpop.f32.mrb[0].mxu0
      %3230 = vdwg.mxu0
      %v3231 = vadd.f32 %v3146, %v3228
      %v3232 = vadd.f32 %v3231, %v2497
      %v3233 = vmul.f32 %v3232, 0.5
      %v3234 = vtanh.pop %v3233
      %v3235 = vmul.f32 %v3234, 0.5
      %v3236 = vadd.f32 %v3235, 0.5
      %v3237 = vtanh.pop %v3232
      %v3238 = vmul.f32 %v3236, %v3139
      %3240 = vrot.lane.b32.xlu0 %v3237, 118
      %v3241 = vpop.permute.xlu0 %3240
      %v3243 = vmul.f32 %v3236, %v3241
      %3245 = vrot.lane.b32.xlu0 %v3243, 5
      %v3246 = vpop.permute.xlu0 %3245
      %v3248 = vadd.f32 %v3238, %v3246
      %v3249 = vtanh.pop %v3248
      %3251 = vrot.lane.b32.xlu0 %v3249, 10
      %v3252 = vpop.permute.xlu0 %3251
      %v3254 = vmul.f32 %v3236, %v3252
      %v3256 = vrot.slane %v2592, 4
      %v3259 = vrot.slane %v2678, 4
      %v3261 = vsel %vm1231, %v3256, %v3259
      %v3262 = vmul.f32 %v3254, %v2693
      %v3263 = vmul.f32 %v3254, %v2694
      %3265 = vrot.lane.b32.xlu0 %v3262, 113
      %v3266 = vpop.permute.xlu0 %3265
      %3269 = vrot.lane.b32.xlu0 %v3263, 118
      %v3270 = vpop.permute.xlu0 %3269
      %v3272 = vsel %vm241, %v3266, %v3270
      %v3274 = vsel %vm243, %v3272, 0
      %3276 = vmatprep.subr.mxu0 0.0
      %3277 = vmatpush1.msra.mxu0 %v2495
      %3278 = vmatprep.subr.mxu0 0.0
      %3279 = vmatpush1.msra.mxu0 %v2711
      %3280 = vmatprep.subr.mxu0 0.0
      %3281 = vmatpush1.msra.mxu0 0.0
      %3282 = vmatprep.subr.mxu0 0.0
      %3283 = vmatpush1.msra.mxu0 0.0
      %3284 = vmatprep.subr.mxu0 0.0
      %3285 = vmatpush1.msra.mxu0 0.0
      %3286 = vmatprep.subr.mxu0 0.0
      %3287 = vmatpush1.msra.mxu0 0.0
      %3288 = vmatprep.subr.mxu0 0.0
      %3289 = vmatpush1.msra.mxu0 0.0
      %3290 = vmatprep.subr.mxu0 0.0
      %3291 = vmatpush1.msra.mxu0 0.0
      %3292 = vmatprep.subr.mxu0 0.0
      %3293 = vmatpush1.msra.mxu0 0.0
      %3294 = vmatprep.subr.mxu0 0.0
      %3295 = vmatpush1.msra.mxu0 0.0
      %3296 = vmatprep.subr.mxu0 0.0
      %3297 = vmatpush1.msra.mxu0 0.0
      %3298 = vmatprep.subr.mxu0 0.0
      %3299 = vmatpush1.msra.mxu0 0.0
      %3300 = vmatprep.subr.mxu0 0.0
      %3301 = vmatpush1.msra.mxu0 0.0
      %3302 = vmatprep.subr.mxu0 0.0
      %3303 = vmatpush1.msra.mxu0 0.0
      %3304 = vmatprep.subr.mxu0 0.0
      %3305 = vmatpush1.msra.mxu0 0.0
      %3306 = vmatprep.subr.mxu0 0.0
      %3307 = vmatpush1.msra.mxu0 0.0
      %3308 = vmatprep.subr.mxu0 0.0
      %3309 = vmatpush1.msra.mxu0 0.0
      %3310 = vmatprep.subr.mxu0 0.0
      %3311 = vmatpush1.msra.mxu0 0.0
      %3312 = vmatprep.subr.mxu0 0.0
      %3313 = vmatpush1.msra.mxu0 0.0
      %3314 = vmatprep.subr.mxu0 0.0
      %3315 = vmatpush1.msra.mxu0 0.0
      %3316 = vmatprep.subr.mxu0 0.0
      %3317 = vmatpush1.msra.mxu0 0.0
      %3318 = vmatprep.subr.mxu0 0.0
      %3319 = vmatpush1.msra.mxu0 0.0
      %3320 = vmatprep.subr.mxu0 0.0
      %3321 = vmatpush1.msra.mxu0 0.0
      %3322 = vmatprep.subr.mxu0 0.0
      %3323 = vmatpush1.msra.mxu0 0.0
      %3324 = vmatprep.subr.mxu0 0.0
      %3325 = vmatpush1.msra.mxu0 0.0
      %3326 = vmatprep.subr.mxu0 0.0
      %3327 = vmatpush1.msra.mxu0 0.0
      %3328 = vmatprep.subr.mxu0 0.0
      %3329 = vmatpush1.msra.mxu0 0.0
      %3330 = vmatprep.subr.mxu0 0.0
      %3331 = vmatpush1.msra.mxu0 0.0
      %3332 = vmatprep.subr.mxu0 0.0
      %3333 = vmatpush1.msra.mxu0 0.0
      %3334 = vmatprep.subr.mxu0 0.0
      %3335 = vmatpush1.msra.mxu0 0.0
      %3336 = vmatprep.subr.mxu0 0.0
      %3337 = vmatpush1.msra.mxu0 0.0
      %3338 = vmatprep.subr.mxu0 0.0
      %3339 = vmatpush1.msra.mxu0 0.0
      %3340 = vmatprep.mubr.f32.mxu0 0.0
      %3341 = vmatmul.mubr.f32.gmra.mrb[0].mxu0 %v3274
      %v3342 = vpop.f32.mrb[0].mxu0
      %v3343 = vadd.f32 0.0, %v3342
      %v3344 = vpop.f32.mrb[0].mxu0
      %3345 = vdwg.mxu0
      %v3346 = vadd.f32 %v3261, %v3343
      %v3347 = vadd.f32 %v3346, %v2497
      %v3348 = vmul.f32 %v3347, 0.5
      %v3349 = vtanh.pop %v3348
      %v3350 = vmul.f32 %v3349, 0.5
      %v3351 = vadd.f32 %v3350, 0.5
      %v3352 = vtanh.pop %v3347
      %v3353 = vmul.f32 %v3351, %v3248
      %3355 = vrot.lane.b32.xlu0 %v3352, 118
      %v3356 = vpop.permute.xlu0 %3355
      %v3358 = vmul.f32 %v3351, %v3356
      %3360 = vrot.lane.b32.xlu0 %v3358, 5
      %v3361 = vpop.permute.xlu0 %3360
      %v3363 = vadd.f32 %v3353, %v3361
      %v3364 = vtanh.pop %v3363
      %3366 = vrot.lane.b32.xlu0 %v3364, 10
      %v3367 = vpop.permute.xlu0 %3366
      %v3369 = vmul.f32 %v3351, %v3367
      %v3370 = vsel %vm1231, %v2597, %v2673
      %v3371 = vmul.f32 %v3369, %v2693
      %v3372 = vmul.f32 %v3369, %v2694
      %3374 = vrot.lane.b32.xlu0 %v3371, 113
      %v3375 = vpop.permute.xlu0 %3374
      %3378 = vrot.lane.b32.xlu0 %v3372, 118
      %v3379 = vpop.permute.xlu0 %3378
      %v3381 = vsel %vm241, %v3375, %v3379
      %v3383 = vsel %vm243, %v3381, 0
      %3385 = vmatprep.subr.mxu0 0.0
      %3386 = vmatpush1.msra.mxu0 %v2495
      %3387 = vmatprep.subr.mxu0 0.0
      %3388 = vmatpush1.msra.mxu0 %v2711
      %3389 = vmatprep.subr.mxu0 0.0
      %3390 = vmatpush1.msra.mxu0 0.0
      %3391 = vmatprep.subr.mxu0 0.0
      %3392 = vmatpush1.msra.mxu0 0.0
      %3393 = vmatprep.subr.mxu0 0.0
      %3394 = vmatpush1.msra.mxu0 0.0
      %3395 = vmatprep.subr.mxu0 0.0
      %3396 = vmatpush1.msra.mxu0 0.0
      %3397 = vmatprep.subr.mxu0 0.0
      %3398 = vmatpush1.msra.mxu0 0.0
      %3399 = vmatprep.subr.mxu0 0.0
      %3400 = vmatpush1.msra.mxu0 0.0
      %3401 = vmatprep.subr.mxu0 0.0
      %3402 = vmatpush1.msra.mxu0 0.0
      %3403 = vmatprep.subr.mxu0 0.0
      %3404 = vmatpush1.msra.mxu0 0.0
      %3405 = vmatprep.subr.mxu0 0.0
      %3406 = vmatpush1.msra.mxu0 0.0
      %3407 = vmatprep.subr.mxu0 0.0
      %3408 = vmatpush1.msra.mxu0 0.0
      %3409 = vmatprep.subr.mxu0 0.0
      %3410 = vmatpush1.msra.mxu0 0.0
      %3411 = vmatprep.subr.mxu0 0.0
      %3412 = vmatpush1.msra.mxu0 0.0
      %3413 = vmatprep.subr.mxu0 0.0
      %3414 = vmatpush1.msra.mxu0 0.0
      %3415 = vmatprep.subr.mxu0 0.0
      %3416 = vmatpush1.msra.mxu0 0.0
      %3417 = vmatprep.subr.mxu0 0.0
      %3418 = vmatpush1.msra.mxu0 0.0
      %3419 = vmatprep.subr.mxu0 0.0
      %3420 = vmatpush1.msra.mxu0 0.0
      %3421 = vmatprep.subr.mxu0 0.0
      %3422 = vmatpush1.msra.mxu0 0.0
      %3423 = vmatprep.subr.mxu0 0.0
      %3424 = vmatpush1.msra.mxu0 0.0
      %3425 = vmatprep.subr.mxu0 0.0
      %3426 = vmatpush1.msra.mxu0 0.0
      %3427 = vmatprep.subr.mxu0 0.0
      %3428 = vmatpush1.msra.mxu0 0.0
      %3429 = vmatprep.subr.mxu0 0.0
      %3430 = vmatpush1.msra.mxu0 0.0
      %3431 = vmatprep.subr.mxu0 0.0
      %3432 = vmatpush1.msra.mxu0 0.0
      %3433 = vmatprep.subr.mxu0 0.0
      %3434 = vmatpush1.msra.mxu0 0.0
      %3435 = vmatprep.subr.mxu0 0.0
      %3436 = vmatpush1.msra.mxu0 0.0
      %3437 = vmatprep.subr.mxu0 0.0
      %3438 = vmatpush1.msra.mxu0 0.0
      %3439 = vmatprep.subr.mxu0 0.0
      %3440 = vmatpush1.msra.mxu0 0.0
      %3441 = vmatprep.subr.mxu0 0.0
      %3442 = vmatpush1.msra.mxu0 0.0
      %3443 = vmatprep.subr.mxu0 0.0
      %3444 = vmatpush1.msra.mxu0 0.0
      %3445 = vmatprep.subr.mxu0 0.0
      %3446 = vmatpush1.msra.mxu0 0.0
      %3447 = vmatprep.subr.mxu0 0.0
      %3448 = vmatpush1.msra.mxu0 0.0
      %3449 = vmatprep.mubr.f32.mxu0 0.0
      %3450 = vmatmul.mubr.f32.gmra.mrb[0].mxu0 %v3383
      %v3451 = vpop.f32.mrb[0].mxu0
      %v3452 = vadd.f32 0.0, %v3451
      %v3453 = vpop.f32.mrb[0].mxu0
      %3454 = vdwg.mxu0
      %v3455 = vadd.f32 %v3370, %v3452
      %v3456 = vadd.f32 %v3455, %v2497
      %v3457 = vmul.f32 %v3456, 0.5
      %v3458 = vtanh.pop %v3457
      %v3459 = vmul.f32 %v3458, 0.5
      %v3460 = vadd.f32 %v3459, 0.5
      %v3461 = vtanh.pop %v3456
      %v3462 = vmul.f32 %v3460, %v3363
      %3464 = vrot.lane.b32.xlu0 %v3461, 118
      %v3465 = vpop.permute.xlu0 %3464
      %v3467 = vmul.f32 %v3460, %v3465
      %3469 = vrot.lane.b32.xlu0 %v3467, 5
      %v3470 = vpop.permute.xlu0 %3469
      %v3472 = vadd.f32 %v3462, %v3470
      %v3473 = vtanh.pop %v3472
      %3475 = vrot.lane.b32.xlu0 %v3473, 10
      %v3476 = vpop.permute.xlu0 %3475
      %v3478 = vmul.f32 %v3460, %v3476
      %v3480 = vrot.slane %v2597, 4
      %v3483 = vrot.slane %v2673, 4
      %v3485 = vsel %vm1231, %v3480, %v3483
      %v3486 = vmul.f32 %v3478, %v2693
      %v3487 = vmul.f32 %v3478, %v2694
      %3489 = vrot.lane.b32.xlu0 %v3486, 113
      %v3490 = vpop.permute.xlu0 %3489
      %3493 = vrot.lane.b32.xlu0 %v3487, 118
      %v3494 = vpop.permute.xlu0 %3493
      %v3496 = vsel %vm241, %v3490, %v3494
      %v3498 = vsel %vm243, %v3496, 0
      %3500 = vmatprep.subr.mxu0 0.0
      %3501 = vmatpush1.msra.mxu0 %v2495
      %3502 = vmatprep.subr.mxu0 0.0
      %3503 = vmatpush1.msra.mxu0 %v2711
      %3504 = vmatprep.subr.mxu0 0.0
      %3505 = vmatpush1.msra.mxu0 0.0
      %3506 = vmatprep.subr.mxu0 0.0
      %3507 = vmatpush1.msra.mxu0 0.0
      %3508 = vmatprep.subr.mxu0 0.0
      %3509 = vmatpush1.msra.mxu0 0.0
      %3510 = vmatprep.subr.mxu0 0.0
      %3511 = vmatpush1.msra.mxu0 0.0
      %3512 = vmatprep.subr.mxu0 0.0
      %3513 = vmatpush1.msra.mxu0 0.0
      %3514 = vmatprep.subr.mxu0 0.0
      %3515 = vmatpush1.msra.mxu0 0.0
      %3516 = vmatprep.subr.mxu0 0.0
      %3517 = vmatpush1.msra.mxu0 0.0
      %3518 = vmatprep.subr.mxu0 0.0
      %3519 = vmatpush1.msra.mxu0 0.0
      %3520 = vmatprep.subr.mxu0 0.0
      %3521 = vmatpush1.msra.mxu0 0.0
      %3522 = vmatprep.subr.mxu0 0.0
      %3523 = vmatpush1.msra.mxu0 0.0
      %3524 = vmatprep.subr.mxu0 0.0
      %3525 = vmatpush1.msra.mxu0 0.0
      %3526 = vmatprep.subr.mxu0 0.0
      %3527 = vmatpush1.msra.mxu0 0.0
      %3528 = vmatprep.subr.mxu0 0.0
      %3529 = vmatpush1.msra.mxu0 0.0
      %3530 = vmatprep.subr.mxu0 0.0
      %3531 = vmatpush1.msra.mxu0 0.0
      %3532 = vmatprep.subr.mxu0 0.0
      %3533 = vmatpush1.msra.mxu0 0.0
      %3534 = vmatprep.subr.mxu0 0.0
      %3535 = vmatpush1.msra.mxu0 0.0
      %3536 = vmatprep.subr.mxu0 0.0
      %3537 = vmatpush1.msra.mxu0 0.0
      %3538 = vmatprep.subr.mxu0 0.0
      %3539 = vmatpush1.msra.mxu0 0.0
      %3540 = vmatprep.subr.mxu0 0.0
      %3541 = vmatpush1.msra.mxu0 0.0
      %3542 = vmatprep.subr.mxu0 0.0
      %3543 = vmatpush1.msra.mxu0 0.0
      %3544 = vmatprep.subr.mxu0 0.0
      %3545 = vmatpush1.msra.mxu0 0.0
      %3546 = vmatprep.subr.mxu0 0.0
      %3547 = vmatpush1.msra.mxu0 0.0
      %3548 = vmatprep.subr.mxu0 0.0
      %3549 = vmatpush1.msra.mxu0 0.0
      %3550 = vmatprep.subr.mxu0 0.0
      %3551 = vmatpush1.msra.mxu0 0.0
      %3552 = vmatprep.subr.mxu0 0.0
      %3553 = vmatpush1.msra.mxu0 0.0
      %3554 = vmatprep.subr.mxu0 0.0
      %3555 = vmatpush1.msra.mxu0 0.0
      %3556 = vmatprep.subr.mxu0 0.0
      %3557 = vmatpush1.msra.mxu0 0.0
      %3558 = vmatprep.subr.mxu0 0.0
      %3559 = vmatpush1.msra.mxu0 0.0
      %3560 = vmatprep.subr.mxu0 0.0
      %3561 = vmatpush1.msra.mxu0 0.0
      %3562 = vmatprep.subr.mxu0 0.0
      %3563 = vmatpush1.msra.mxu0 0.0
      %3564 = vmatprep.mubr.f32.mxu0 0.0
      %3565 = vmatmul.mubr.f32.gmra.mrb[0].mxu0 %v3498
      %v3566 = vpop.f32.mrb[0].mxu0
      %v3567 = vadd.f32 0.0, %v3566
      %v3568 = vpop.f32.mrb[0].mxu0
      %3569 = vdwg.mxu0
      %v3570 = vadd.f32 %v3485, %v3567
      %v3571 = vadd.f32 %v3570, %v2497
      %v3572 = vmul.f32 %v3571, 0.5
      %v3573 = vtanh.pop %v3572
      %v3574 = vmul.f32 %v3573, 0.5
      %v3575 = vadd.f32 %v3574, 0.5
      %v3576 = vtanh.pop %v3571
      %v3577 = vmul.f32 %v3575, %v3472
      %3579 = vrot.lane.b32.xlu0 %v3576, 118
      %v3580 = vpop.permute.xlu0 %3579
      %v3582 = vmul.f32 %v3575, %v3580
      %3584 = vrot.lane.b32.xlu0 %v3582, 5
      %v3585 = vpop.permute.xlu0 %3584
      %v3587 = vadd.f32 %v3577, %v3585
      %v3588 = vtanh.pop %v3587
      %3590 = vrot.lane.b32.xlu0 %v3588, 10
      %v3591 = vpop.permute.xlu0 %3590
      %v3593 = vmul.f32 %v3575, %v3591
      %3595 = vrot.lane.b32.xlu0 %v2806, 113
      %v3596 = vpop.permute.xlu0 %3595
      %v3599 = vrot.slane %v3593, 4
      %3600 = vrot.lane.b32.xlu0 %v3599, 118
      %v3601 = vpop.permute.xlu0 %3600
      %v3603 = vsel %vm241, %v3596, %v3601
      %3605 = vrot.lane.b32.xlu0 %v2921, 113
      %v3606 = vpop.permute.xlu0 %3605
      %v3609 = vrot.slane %v3478, 4
      %3610 = vrot.lane.b32.xlu0 %v3609, 118
      %v3611 = vpop.permute.xlu0 %3610
      %v3613 = vsel %vm241, %v3606, %v3611
      %3615 = vrot.lane.b32.xlu0 %v3030, 113
      %v3616 = vpop.permute.xlu0 %3615
      %v3619 = vrot.slane %v3369, 4
      %3620 = vrot.lane.b32.xlu0 %v3619, 118
      %v3621 = vpop.permute.xlu0 %3620
      %v3623 = vsel %vm241, %v3616, %v3621
      %3625 = vrot.lane.b32.xlu0 %v3145, 113
      %v3626 = vpop.permute.xlu0 %3625
      %v3629 = vrot.slane %v3254, 4
      %3630 = vrot.lane.b32.xlu0 %v3629, 118
      %v3631 = vpop.permute.xlu0 %3630
      %v3633 = vsel %vm241, %v3626, %v3631
      %3634 = vrot.lane.b32.xlu0 %v3254, 113
      %v3635 = vpop.permute.xlu0 %3634
      %v3637 = vrot.slane %v3145, 4
      %3638 = vrot.lane.b32.xlu0 %v3637, 118
      %v3639 = vpop.permute.xlu0 %3638
      %v3641 = vsel %vm241, %v3635, %v3639
      %3642 = vrot.lane.b32.xlu0 %v3369, 113
      %v3643 = vpop.permute.xlu0 %3642
      %v3645 = vrot.slane %v3030, 4
      %3646 = vrot.lane.b32.xlu0 %v3645, 118
      %v3647 = vpop.permute.xlu0 %3646
      %v3649 = vsel %vm241, %v3643, %v3647
      %3650 = vrot.lane.b32.xlu0 %v3478, 113
      %v3651 = vpop.permute.xlu0 %3650
      %v3653 = vrot.slane %v2921, 4
      %3654 = vrot.lane.b32.xlu0 %v3653, 118
      %v3655 = vpop.permute.xlu0 %3654
      %v3657 = vsel %vm241, %v3651, %v3655
      %3658 = vrot.lane.b32.xlu0 %v3593, 113
      %v3659 = vpop.permute.xlu0 %3658
      %v3661 = vrot.slane %v2806, 4
      %3662 = vrot.lane.b32.xlu0 %v3661, 118
      %v3663 = vpop.permute.xlu0 %3662
      %v3665 = vsel %vm241, %v3659, %v3663
      %v3667 = vrot.slane %v3613, 4
      %v3670 = vrot.slane %v3633, 4
      %v3673 = vrot.slane %v3649, 4
      %v3676 = vrot.slane %v3665, 4
      %v3678 = vsel %vm1231, %v3603, %v3667
      %v3679 = vsel %vm1231, %v3623, %v3670
      %v3680 = vsel %vm1231, %v3641, %v3673
      %v3681 = vsel %vm1231, %v3657, %v3676
      %3682 = vst.msk [vmem:[#allocation2] sm:$0xff] %vm243, %v1238
      %3683 = vst.msk [vmem:[#allocation4] sm:$0xff] %vm243, %v2453
      %3684 = vst.msk [vmem:[#allocation4 + $0x8] sm:$0xff] %vm243, %v2456
      %3685 = vst.msk [vmem:[#allocation6] sm:$0xff] %vm243, %v3678
      %3686 = vst.msk [vmem:[#allocation6 + $0x8] sm:$0xff] %vm243, %v3679
      %3687 = vst.msk [vmem:[#allocation6 + $0x10] sm:$0xff] %vm243, %v3680
      %3688 = vst.msk [vmem:[#allocation6 + $0x18] sm:$0xff] %vm243, %v3681
    $region54: #{mdrnn_forward.1} parent=1 // loop_footer
      %s53 = sadd.s32 1, %s49
    $region55: #{mdrnn_forward.1} parent=1 // loop_footer_branch
      %48 = sbr.rel target = $region51
    $region56: #{mdrnn_forward.1} parent=1 // loop_exit
      _
    %v3689 = vld [vmem:[#allocation2 + $0x7] sm:$0x1]
    %v3690 = vld [vmem:[#allocation4 + $0xe] sm:$0x3]
    %v3691 = vld [vmem:[#allocation6 + $0x1c] sm:$0xf]
    %v3693 = vrot.slane %v3690, 7
    %v3696 = vrot.slane %v3691, 5
    %vm3698 = vcmask 1040384
    %v3699 = vsel %vm3698, %v3689, %v3693
    %vm3700 = vcmask 1042432
    %v3701 = vsel %vm3700, %v3699, %v3696
    %v3702 = vld [vmem:[%s10] sm:$0xff]
    %v3703 = vld [vmem:[%s10 + $0x8] sm:$0x3]
    %v3704 = vld [vmem:[%s11] sm:$0x1]
    %v3706 = vlaneseq
    %v3707 = vshrl.u32 %v3706, 7
    %v3708 = vsub.s32 0, %v3707
    %v3709 = vrot.slane %v3704, %v3708
    %vm3711 = vcmask 80896
    %v3713 = vsel %vm3711, %v3701, 0
    %vm3715 = vcmask 1041408
    %v3717 = vsel %vm3715, %v3703, 0
    %3719 = vmatprep.subr.mxu0 0.0
    %3720 = vmatpush1.msra.mxu0 %v3702
    %3721 = vmatprep.subr.mxu0 0.0
    %3722 = vmatpush1.msra.mxu0 %v3717
    %3723 = vmatprep.subr.mxu0 0.0
    %3724 = vmatpush1.msra.mxu0 0.0
    %3725 = vmatprep.subr.mxu0 0.0
    %3726 = vmatpush1.msra.mxu0 0.0
    %3727 = vmatprep.subr.mxu0 0.0
    %3728 = vmatpush1.msra.mxu0 0.0
    %3729 = vmatprep.subr.mxu0 0.0
    %3730 = vmatpush1.msra.mxu0 0.0
    %3731 = vmatprep.subr.mxu0 0.0
    %3732 = vmatpush1.msra.mxu0 0.0
    %3733 = vmatprep.subr.mxu0 0.0
    %3734 = vmatpush1.msra.mxu0 0.0
    %3735 = vmatprep.subr.mxu0 0.0
    %3736 = vmatpush1.msra.mxu0 0.0
    %3737 = vmatprep.subr.mxu0 0.0
    %3738 = vmatpush1.msra.mxu0 0.0
    %3739 = vmatprep.subr.mxu0 0.0
    %3740 = vmatpush1.msra.mxu0 0.0
    %3741 = vmatprep.subr.mxu0 0.0
    %3742 = vmatpush1.msra.mxu0 0.0
    %3743 = vmatprep.subr.mxu0 0.0
    %3744 = vmatpush1.msra.mxu0 0.0
    %3745 = vmatprep.subr.mxu0 0.0
    %3746 = vmatpush1.msra.mxu0 0.0
    %3747 = vmatprep.subr.mxu0 0.0
    %3748 = vmatpush1.msra.mxu0 0.0
    %3749 = vmatprep.subr.mxu0 0.0
    %3750 = vmatpush1.msra.mxu0 0.0
    %3751 = vmatprep.subr.mxu0 0.0
    %3752 = vmatpush1.msra.mxu0 0.0
    %3753 = vmatprep.subr.mxu0 0.0
    %3754 = vmatpush1.msra.mxu0 0.0
    %3755 = vmatprep.subr.mxu0 0.0
    %3756 = vmatpush1.msra.mxu0 0.0
    %3757 = vmatprep.subr.mxu0 0.0
    %3758 = vmatpush1.msra.mxu0 0.0
    %3759 = vmatprep.subr.mxu0 0.0
    %3760 = vmatpush1.msra.mxu0 0.0
    %3761 = vmatprep.subr.mxu0 0.0
    %3762 = vmatpush1.msra.mxu0 0.0
    %3763 = vmatprep.subr.mxu0 0.0
    %3764 = vmatpush1.msra.mxu0 0.0
    %3765 = vmatprep.subr.mxu0 0.0
    %3766 = vmatpush1.msra.mxu0 0.0
    %3767 = vmatprep.subr.mxu0 0.0
    %3768 = vmatpush1.msra.mxu0 0.0
    %3769 = vmatprep.subr.mxu0 0.0
    %3770 = vmatpush1.msra.mxu0 0.0
    %3771 = vmatprep.subr.mxu0 0.0
    %3772 = vmatpush1.msra.mxu0 0.0
    %3773 = vmatprep.subr.mxu0 0.0
    %3774 = vmatpush1.msra.mxu0 0.0
    %3775 = vmatprep.subr.mxu0 0.0
    %3776 = vmatpush1.msra.mxu0 0.0
    %3777 = vmatprep.subr.mxu0 0.0
    %3778 = vmatpush1.msra.mxu0 0.0
    %3779 = vmatprep.subr.mxu0 0.0
    %3780 = vmatpush1.msra.mxu0 0.0
    %3781 = vmatprep.subr.mxu0 0.0
    %3782 = vmatpush1.msra.mxu0 0.0
    %3783 = vmatprep.mubr.f32.mxu0 0.0
    %3784 = vmatmul.mubr.f32.gmra.mrb[0].mxu0 %v3713
    %v3785 = vpop.f32.mrb[0].mxu0
    %v3786 = vadd.f32 %v3709, %v3785
    %v3787 = vpop.f32.mrb[0].mxu0
    %3788 = vdwg.mxu0
    %vm3789 = vcmask 22528
    %3790 = vst.msk [vmem:[%s12] sm:$0x7f] %vm3789, %v3786
    %v3791 = vsel %vm3789, %v3786, -inf
    %v3792 = vrot.slane %v3791, 4
    %v3793 = vmax.f32 %v3791, %v3792
    %v3794 = vrot.slane %v3793, 2
    %v3795 = vmax.f32 %v3793, %v3794
    %v3796 = vrot.slane %v3795, 1
    %v3797 = vmax.f32 %v3795, %v3796
    %v3798 = vsub.f32 %v3786, %v3797
    %v3799 = vmul.f32 %v3798, 1.442695
    %v3800 = vpow.pop %v3799
    %v3801 = vsel %vm3789, %v3800, 0.0
    %v3802 = vrot.slane %v3801, 4
    %v3803 = vadd.f32 %v3801, %v3802
    %v3804 = vrot.slane %v3803, 2
    %v3805 = vadd.f32 %v3803, %v3804
    %v3806 = vrot.slane %v3805, 1
    %v3807 = vadd.f32 %v3805, %v3806
    %v3808 = vrcp.pop %v3807
    %v3809 = vmul.f32 %v3800, %v3808
    %3810 = vst.msk [vmem:[%s13] sm:$0x7f] %vm3789, %v3809
    // Predicated region
    $region57: #{mdrnn_forward.1} parent=1 // pred_check
      _
    $region58: #{mdrnn_forward.1} parent=1 // pred_check_branch
      %3812 = sbr.rel (0) target = $region60
    $region59: #{mdrnn_forward.1} parent=1 // pred_region
      _
    $region60: #{mdrnn_forward.1} parent=1 // pred_fallthru
      _
    // Predicated region
    $region61: #{mdrnn_forward.1} parent=1 // pred_check
      _
    $region62: #{mdrnn_forward.1} parent=1 // pred_check_branch
      %3814 = sbr.rel (0) target = $region64
    $region63: #{mdrnn_forward.1} parent=1 // pred_region
      _
    $region64: #{mdrnn_forward.1} parent=1 // pred_fallthru
      _
    // Predicated region
    $region65: #{mdrnn_forward.1} parent=1 // pred_check
      _
    $region66: #{mdrnn_forward.1} parent=1 // pred_check_branch
      %3816 = sbr.rel (0) target = $region68
    $region67: #{mdrnn_forward.1} parent=1 // pred_region
      %s3818 = ssub.s32 128, 128
      %3819 = vsyncadd [#allocation3], %s3818
      %s3821 = sshll.u32 [#allocation2], 4
      %s3822 = int_to_ptr.vmem [resolvable:$true] %s3821
      %3824 = dma.vmem_to_hbm [thread:$0]  %s3822, 128, %s14, [#allocation3]
    $region68: #{mdrnn_forward.1} parent=1 // pred_fallthru
      _
    // Predicated region
    $region69: #{mdrnn_forward.1} parent=1 // pred_check
      _
    $region70: #{mdrnn_forward.1} parent=1 // pred_check_branch
      %3826 = sbr.rel (0) target = $region72
    $region71: #{mdrnn_forward.1} parent=1 // pred_region
      %s3828 = ssub.s32 256, 256
      %3829 = vsyncadd [#allocation5], %s3828
      %s3830 = sshll.u32 [#allocation4], 4
      %s3831 = int_to_ptr.vmem [resolvable:$true] %s3830
      %3836 = dma.vmem_to_hbm [thread:$0]  %s3831, 256, %s15, [#allocation5], 128, 128, 8
    $region72: #{mdrnn_forward.1} parent=1 // pred_fallthru
      _
    // Predicated region
    $region73: #{mdrnn_forward.1} parent=1 // pred_check
      _
    $region74: #{mdrnn_forward.1} parent=1 // pred_check_branch
      %3838 = sbr.rel (0) target = $region76
    $region75: #{mdrnn_forward.1} parent=1 // pred_region
      %s3840 = ssub.s32 512, 512
      %3841 = vsyncadd [#allocation5], %s3840
      %s3842 = sshll.u32 [#allocation6], 4
      %s3843 = int_to_ptr.vmem [resolvable:$true] %s3842
      %3848 = dma.vmem_to_hbm [thread:$0]  %s3843, 512, %s16, [#allocation5], 128, 128, 8
    $region76: #{mdrnn_forward.1} parent=1 // pred_fallthru
      _
    // Predicated region
    $region77: #{mdrnn_forward.1} parent=1 // pred_check
      _
    $region78: #{mdrnn_forward.1} parent=1 // pred_check_branch
      %3850 = sbr.rel (0) target = $region80
    $region79: #{mdrnn_forward.1} parent=1 // pred_region
      _
    $region80: #{mdrnn_forward.1} parent=1 // pred_fallthru
      _
    // Predicated region
    $region81: #{mdrnn_forward.1} parent=1 // pred_check
      _
    $region82: #{mdrnn_forward.1} parent=1 // pred_check_branch
      %3852 = sbr.rel (0) target = $region84
    $region83: #{mdrnn_forward.1} parent=1 // pred_region
      _
    $region84: #{mdrnn_forward.1} parent=1 // pred_fallthru
      _
    // Predicated region
    $region85: #{mdrnn_forward.1} parent=1 // pred_check
      _
    $region86: #{mdrnn_forward.1} parent=1 // pred_check_branch
      %3854 = sbr.rel (0) target = $region88
    $region87: #{mdrnn_forward.1} parent=1 // pred_region
      %3855 = dma.done [#allocation3], 128
    $region88: #{mdrnn_forward.1} parent=1 // pred_fallthru
      _
    // Predicated region
    $region89: #{mdrnn_forward.1} parent=1 // pred_check
      _
    $region90: #{mdrnn_forward.1} parent=1 // pred_check_branch
      %3857 = sbr.rel (0) target = $region92
    $region91: #{mdrnn_forward.1} parent=1 // pred_region
      %3858 = dma.done [#allocation5], 256
    $region92: #{mdrnn_forward.1} parent=1 // pred_fallthru
      _
    // Predicated region
    $region93: #{mdrnn_forward.1} parent=1 // pred_check
      _
    $region94: #{mdrnn_forward.1} parent=1 // pred_check_branch
      %3860 = sbr.rel (0) target = $region96
    $region95: #{mdrnn_forward.1} parent=1 // pred_region
      %3861 = dma.done [#allocation5], 512
    $region96: #{mdrnn_forward.1} parent=1 // pred_fallthru
      _
    %3862 = vsyncpa [#allocation3], 1
    %3863 = vsyncpa [#allocation5], 1

</llo_original>
